<compile_context>
chip_gen: v5e
topology: v5e:2x2
jax: 0.10.0
libtpu: 0.0.40
codegen_flags: <defaults>
</compile_context>

<pallas_src>
import math

import jax
import jax.numpy as jnp
from jax import lax
from jax.experimental import pallas as pl
from jax.experimental.pallas import tpu as pltpu


def _complex_mask_kernel(x_ref, m_ref, o_ref):
    # Blocks are (tile_r, cols); lanes hold interleaved (re, im) pairs.
    x = x_ref[...].astype(jnp.float32)
    m = m_ref[...].astype(jnp.float32)
    nrows_b, c = x.shape  # static block shape

    lane = lax.broadcasted_iota(jnp.int32, (nrows_b, c), 1)
    even = (lane & 1) == 0

    # Probe the rotate convention once (constant-foldable): does roll(.,1) bring lane i-1?
    lane_f = lane.astype(jnp.float32)
    probe = pltpu.roll(lane_f, shift=1, axis=1)
    prev_idx = jnp.where(lane == 0, float(c - 1), lane_f - 1.0)
    fwd_is_prev = probe == prev_idx  # all-true or all-false

    def neighbors(v):
        a = pltpu.roll(v, shift=1, axis=1)
        b = pltpu.roll(v, shift=c - 1, axis=1)
        v_prev = jnp.where(fwd_is_prev, a, b)  # v[i-1]
        v_next = jnp.where(fwd_is_prev, b, a)  # v[i+1]
        return v_prev, v_next

    m_prev, m_next = neighbors(m)
    x_prev, x_next = neighbors(x)

    m_re = jnp.where(even, m, m_prev)       # Re(m) duplicated on both lanes of its pair
    m_im = jnp.where(even, m_next, m)       # Im(m) duplicated on both lanes of its pair
    x_sw = jnp.where(even, x_next, x_prev)  # pair-swapped x: (im, re)

    s = m_re * m_re + m_im * m_im                       # |m|^2 (same on both lanes)
    r = jnp.where(s > 0.0, lax.rsqrt(s), 0.0)           # 1/|m|, 0 at |m| == 0
    coef = jnp.tanh(s * r) * r                          # tanh(|m|)/|m|

    cross = m_im * x_sw
    prod = m_re * x + jnp.where(even, -cross, cross)    # interleaved Re/Im of m*x
    o_ref[...] = (coef * prod).astype(o_ref.dtype)


_TARGET_BLOCK_BYTES = 1 << 20  # ~1 MiB per array per grid step
_LANE_CANDIDATES = (8192, 4096, 2048, 1024, 512, 256)


def _choose_rows_tile(rows, cols, itemsize):
    sub = {4: 8, 2: 16, 1: 32}.get(itemsize, 8)
    budget = max(sub, (_TARGET_BLOCK_BYTES // (cols * itemsize)) // sub * sub)
    return rows if rows <= budget else budget


def _complex_mask_2d(x2d, m2d):
    rows, cols = x2d.shape
    itemsize = jnp.dtype(x2d.dtype).itemsize
    tile_r = _choose_rows_tile(rows, cols, itemsize)
    grid = (pl.cdiv(rows, tile_r),)
    spec = pl.BlockSpec((tile_r, cols), lambda i: (i, 0))

    n = rows * cols
    cost = pl.CostEstimate(
        flops=16 * n,
        transcendentals=2 * n,
        bytes_accessed=3 * n * itemsize,  # read x, read m, write out
    )
    return pl.pallas_call(
        _complex_mask_kernel,
        out_shape=jax.ShapeDtypeStruct((rows, cols), x2d.dtype),
        grid_spec=pltpu.PrefetchScalarGridSpec(
            num_scalar_prefetch=0,
            grid=grid,
            in_specs=[spec, spec],
            out_specs=spec,
        ),
        compiler_params=pltpu.CompilerParams(
            dimension_semantics=("parallel",),
            vmem_limit_bytes=32 << 20,
        ),
        cost_estimate=cost,
    )(x2d, m2d)


def complex_mask_on_polar_coo(sound_with_noise, unet_out):
    """Drop-in analogue of the PyTorch forward: inputs/outputs are (..., 2)."""
    assert sound_with_noise.shape == unet_out.shape
    assert sound_with_noise.shape[-1] == 2, "expect complex-as-real-pair last dim"
    shape = sound_with_noise.shape
    total = math.prod(shape)

    x = sound_with_noise.reshape(-1)
    m = unet_out.reshape(-1)
    pad = (-total) % 256
    if pad:  # rare: keep lanes 128-aligned; zero padding is an exact no-op for this op
        x = jnp.pad(x, (0, pad))
        m = jnp.pad(m, (0, pad))
    tot = total + pad
    cols = next(c for c in _LANE_CANDIDATES if tot % c == 0)
    rows = tot // cols

    out = _complex_mask_2d(x.reshape(rows, cols), m.reshape(rows, cols))
    out = out.reshape(-1)
    if pad:
        out = out[:total]
    return out.reshape(shape)


def _reference(sound_with_noise, unet_out):
    # Pure-JAX transcription of the PyTorch forward (magphase + trig).
    m_re, m_im = unet_out[..., 0], unet_out[..., 1]
    x_re, x_im = sound_with_noise[..., 0], sound_with_noise[..., 1]
    mag_mask = jnp.sqrt(m_re**2 + m_im**2)
    phase_mask = jnp.arctan2(m_im, m_re)
    mag_in = jnp.sqrt(x_re**2 + x_im**2)
    phase_in = jnp.arctan2(x_im, x_re)
    mag = jnp.tanh(mag_mask) * mag_in
    phase = phase_mask + phase_in
    return jnp.stack([mag * jnp.cos(phase), mag * jnp.sin(phase)], axis=-1)


if __name__ == "__main__":
    key = jax.random.PRNGKey(0)
    k1, k2 = jax.random.split(key)
    # (B, F, T, 2): batch=2, freq bins=16, time frames=128, real/imag pair
    shape = (2, 16, 128, 2)
    sound_with_noise = jax.random.normal(k1, shape, dtype=jnp.float32)
    unet_out = jax.random.normal(k2, shape, dtype=jnp.float32)

    out = jax.block_until_ready(complex_mask_on_polar_coo(sound_with_noise, unet_out))
    ref = jax.block_until_ready(_reference(sound_with_noise, unet_out))

    assert out.shape == shape
    assert jnp.allclose(out, ref, atol=1e-5, rtol=1e-5), "mismatch vs reference"

    print("KERNEL_OK")
</pallas_src>

<mosaic_0001>
module attributes {stable_mosaic.version = 11 : i64} {
  func.func @_complex_mask_kernel(%arg0: i32, %arg1: memref<1x8192xf32, #tpu.memory_space<vmem>>, %arg2: memref<1x8192xf32, #tpu.memory_space<vmem>>, %arg3: memref<1x8192xf32, #tpu.memory_space<vmem>>) attributes {dimension_semantics = [#tpu.dimension_semantics<parallel>], iteration_bounds = array<i64: 1>, scalar_prefetch = 0 : i64, scratch_operands = 0 : i64, tpu.core_type = #tpu.core_type<tc>, window_params = [{transform_indices = @transform_0, window_bounds = array<i64: 1, 8192>}, {transform_indices = @transform_1, window_bounds = array<i64: 1, 8192>}, {transform_indices = @transform_2, window_bounds = array<i64: 1, 8192>}]} {
    %c0 = arith.constant 0 : index
    %c0_0 = arith.constant 0 : index
    %0 = vector.load %arg1[%c0, %c0_0] : memref<1x8192xf32, #tpu.memory_space<vmem>>, vector<1x8192xf32>
    %c0_1 = arith.constant 0 : index
    %c0_2 = arith.constant 0 : index
    %1 = vector.load %arg2[%c0_1, %c0_2] : memref<1x8192xf32, #tpu.memory_space<vmem>>, vector<1x8192xf32>
    %2 = tpu.iota {dimensions = array<i32: 1>} : vector<1x8192xi32>
    %c1_i32 = arith.constant 1 : i32
    %3 = vector.broadcast %c1_i32 : i32 to vector<1x8192xi32>
    %4 = arith.andi %2, %3 : vector<1x8192xi32>
    %c0_i32 = arith.constant 0 : i32
    %5 = vector.broadcast %c0_i32 : i32 to vector<1x8192xi32>
    %6 = arith.cmpi eq, %4, %5 : vector<1x8192xi32>
    %7 = arith.sitofp %2 : vector<1x8192xi32> to vector<1x8192xf32>
    %c1_i32_3 = arith.constant 1 : i32
    %8 = tpu.dynamic_rotate %7 by %c1_i32_3 dim 1 : vector<1x8192xf32>, i32 -> vector<1x8192xf32>
    %c0_i32_4 = arith.constant 0 : i32
    %9 = vector.broadcast %c0_i32_4 : i32 to vector<1x8192xi32>
    %10 = arith.cmpi eq, %2, %9 : vector<1x8192xi32>
    %cst = arith.constant 1.000000e+00 : f32
    %11 = vector.broadcast %cst : f32 to vector<1x8192xf32>
    %12 = arith.subf %7, %11 : vector<1x8192xf32>
    %cst_5 = arith.constant 8.191000e+03 : f32
    %13 = vector.broadcast %cst_5 : f32 to vector<1x8192xf32>
    %14 = arith.select %10, %13, %12 : vector<1x8192xi1>, vector<1x8192xf32>
    %15 = arith.cmpf oeq, %8, %14 : vector<1x8192xf32>
    %c1_i32_6 = arith.constant 1 : i32
    %16 = tpu.dynamic_rotate %1 by %c1_i32_6 dim 1 : vector<1x8192xf32>, i32 -> vector<1x8192xf32>
    %c8191_i32 = arith.constant 8191 : i32
    %17 = tpu.dynamic_rotate %1 by %c8191_i32 dim 1 : vector<1x8192xf32>, i32 -> vector<1x8192xf32>
    %18 = arith.select %15, %16, %17 : vector<1x8192xi1>, vector<1x8192xf32>
    %19 = arith.select %15, %17, %16 : vector<1x8192xi1>, vector<1x8192xf32>
    %c1_i32_7 = arith.constant 1 : i32
    %20 = tpu.dynamic_rotate %0 by %c1_i32_7 dim 1 : vector<1x8192xf32>, i32 -> vector<1x8192xf32>
    %c8191_i32_8 = arith.constant 8191 : i32
    %21 = tpu.dynamic_rotate %0 by %c8191_i32_8 dim 1 : vector<1x8192xf32>, i32 -> vector<1x8192xf32>
    %22 = arith.select %15, %20, %21 : vector<1x8192xi1>, vector<1x8192xf32>
    %23 = arith.select %15, %21, %20 : vector<1x8192xi1>, vector<1x8192xf32>
    %24 = arith.select %6, %1, %18 : vector<1x8192xi1>, vector<1x8192xf32>
    %25 = arith.select %6, %19, %1 : vector<1x8192xi1>, vector<1x8192xf32>
    %26 = arith.select %6, %23, %22 : vector<1x8192xi1>, vector<1x8192xf32>
    %27 = arith.mulf %24, %24 : vector<1x8192xf32>
    %28 = arith.mulf %25, %25 : vector<1x8192xf32>
    %29 = arith.addf %27, %28 : vector<1x8192xf32>
    %cst_9 = arith.constant 0.000000e+00 : f32
    %30 = vector.broadcast %cst_9 : f32 to vector<1x8192xf32>
    %31 = arith.cmpf ogt, %29, %30 : vector<1x8192xf32>
    %32 = math.rsqrt %29 : vector<1x8192xf32>
    %cst_10 = arith.constant 0.000000e+00 : f32
    %33 = vector.broadcast %cst_10 : f32 to vector<1x8192xf32>
    %34 = arith.select %31, %32, %33 : vector<1x8192xi1>, vector<1x8192xf32>
    %35 = arith.mulf %29, %34 : vector<1x8192xf32>
    %36 = math.tanh %35 : vector<1x8192xf32>
    %37 = arith.mulf %36, %34 : vector<1x8192xf32>
    %38 = arith.mulf %25, %26 : vector<1x8192xf32>
    %39 = arith.mulf %24, %0 : vector<1x8192xf32>
    %cst_11 = arith.constant 0.000000e+00 : f32
    %40 = vector.broadcast %cst_11 : f32 to vector<1x8192xf32>
    %41 = arith.subf %40, %38 : vector<1x8192xf32>
    %42 = arith.select %6, %41, %38 : vector<1x8192xi1>, vector<1x8192xf32>
    %43 = arith.addf %39, %42 : vector<1x8192xf32>
    %44 = arith.mulf %37, %43 : vector<1x8192xf32>
    %c0_12 = arith.constant 0 : index
    %c0_13 = arith.constant 0 : index
    %45 = vector.load %arg3[%c0_12, %c0_13] : memref<1x8192xf32, #tpu.memory_space<vmem>>, vector<1x8192xf32>
    tpu.vector_store %arg3[%c0_12, %c0_13], %44 {strides = array<i32>} : memref<1x8192xf32, #tpu.memory_space<vmem>>, vector<1x8192xf32>,
    return
  }
  func.func @transform_0(%arg0: i32) -> (i32, i32) {
    %c0_i32 = arith.constant 0 : i32
    %c0_i32_0 = arith.constant 0 : i32
    return %arg0, %c0_i32 : i32, i32
  }
  func.func @transform_1(%arg0: i32) -> (i32, i32) {
    %c0_i32 = arith.constant 0 : i32
    %c0_i32_0 = arith.constant 0 : i32
    return %arg0, %c0_i32 : i32, i32
  }
  func.func @transform_2(%arg0: i32) -> (i32, i32) {
    %c0_i32 = arith.constant 0 : i32
    %c0_i32_0 = arith.constant 0 : i32
    return %arg0, %c0_i32 : i32, i32
  }
}

</mosaic_0001>

<llo_original>
// kernel: tpu_custom_call.1
$region0: #{tpu_custom_call.1}
  #allocation0 [shape = 'u32[]', space=smem, size = 0x4, offset = 0x4, fixed_abs, tag = 'smem constant byte address 0x4 - core index']
  #allocation1 [shape = 'u32[72,128]{1,0:T(1,128)}', space=vmem, size = 0x9000, scoped, tag = 'internal scratch']
  %s0 = inlined_call_operand.hbm [shape: f32[1,8192], index: 0, kind: input, shape index: {}]
  %s1 = inlined_call_operand.hbm [shape: f32[1,8192], index: 1, kind: input, shape index: {}]
  %s2 = inlined_call_operand.hbm [shape: f32[1,8192], index: 2, kind: output, shape index: {}]
  %s3 = sld [smem:[#allocation0]]
  $region26: #{tpu_custom_call.1} parent=0
    _
  %s5 = ssub.s32 1, %s3
  %s6 = scalar_select 0, %s5, %s3
  $region1: #{tpu_custom_call.1} parent=0
    #allocation2 [shape = 'u8[32768]{0}', space=vmem, size = 0x8000, scoped, tag = 'input window, operand 0, single buffered']
    #allocation3 [shape = 's32[1]{0}', space=sflag, size = 0x4, scoped, tag = 'scoped memory for tpu_custom_call.1']
    #allocation4 [shape = 's32[1]{0}', space=sflag, size = 0x4, scoped, tag = 'scoped memory for tpu_custom_call.1']
    #allocation5 [shape = 'u8[32768]{0}', space=vmem, size = 0x8000, scoped, tag = 'input window, operand 1, single buffered']
    #allocation6 [shape = 's32[1]{0}', space=sflag, size = 0x4, scoped, tag = 'scoped memory for tpu_custom_call.1']
    #allocation7 [shape = 'u8[32768]{0}', space=vmem, size = 0x8000, scoped, tag = 'output window, operand 0, single buffered']
    %7 = vsyncpa [#allocation3], 0
    %8 = vsyncpa [#allocation6], 0
    %9 = vsyncpa [#allocation4], 0
    // Predicated region
    $region2: #{tpu_custom_call.1} parent=1 // pred_check
      _
    $region3: #{tpu_custom_call.1} parent=1 // pred_check_branch
      %11 = sbr.rel (0) target = $region5
    $region4: #{tpu_custom_call.1} parent=1 // pred_region
      %13 = vsyncadd [#allocation3], 0
      %s15 = sshll.u32 %s0, 4
      %s16 = int_to_ptr.hbm [resolvable:$true] %s15
      %s17 = sshll.u32 [#allocation2], 4
      %s18 = int_to_ptr.vmem [resolvable:$true] %s17
      %20 = dma.hbm_to_vmem [thread:$0]  %s16, 1024, %s18, [#allocation3]
    $region5: #{tpu_custom_call.1} parent=1 // pred_fallthru
      _
    // Predicated region
    $region6: #{tpu_custom_call.1} parent=1 // pred_check
      _
    $region7: #{tpu_custom_call.1} parent=1 // pred_check_branch
      %22 = sbr.rel (0) target = $region9
    $region8: #{tpu_custom_call.1} parent=1 // pred_region
      %24 = vsyncadd [#allocation6], 0
      %s26 = sshll.u32 %s1, 4
      %s27 = int_to_ptr.hbm [resolvable:$true] %s26
      %s28 = sshll.u32 [#allocation5], 4
      %s29 = int_to_ptr.vmem [resolvable:$true] %s28
      %31 = dma.hbm_to_vmem [thread:$0]  %s27, 1024, %s29, [#allocation6]
    $region9: #{tpu_custom_call.1} parent=1 // pred_fallthru
      _
    // Predicated region
    $region10: #{tpu_custom_call.1} parent=1 // pred_check
      _
    $region11: #{tpu_custom_call.1} parent=1 // pred_check_branch
      %33 = sbr.rel (0) target = $region13
    $region12: #{tpu_custom_call.1} parent=1 // pred_region
      %35 = dma.done [#allocation3], 1024
    $region13: #{tpu_custom_call.1} parent=1 // pred_fallthru
      _
    // Predicated region
    $region14: #{tpu_custom_call.1} parent=1 // pred_check
      _
    $region15: #{tpu_custom_call.1} parent=1 // pred_check_branch
      %37 = sbr.rel (0) target = $region17
    $region16: #{tpu_custom_call.1} parent=1 // pred_region
      %39 = dma.done [#allocation6], 1024
    $region17: #{tpu_custom_call.1} parent=1 // pred_fallthru
      _
    %v40 = vld [vmem:[#allocation2] sm:$0xff]
    %v41 = vld [vmem:[#allocation2 + $0x8] sm:$0xff]
    %v42 = vld [vmem:[#allocation2 + $0x10] sm:$0xff]
    %v43 = vld [vmem:[#allocation2 + $0x18] sm:$0xff]
    %v44 = vld [vmem:[#allocation2 + $0x20] sm:$0xff]
    %v45 = vld [vmem:[#allocation2 + $0x28] sm:$0xff]
    %v46 = vld [vmem:[#allocation2 + $0x30] sm:$0xff]
    %v47 = vld [vmem:[#allocation2 + $0x38] sm:$0xff]
    %v48 = vld [vmem:[#allocation5] sm:$0xff]
    %v49 = vld [vmem:[#allocation5 + $0x8] sm:$0xff]
    %v50 = vld [vmem:[#allocation5 + $0x10] sm:$0xff]
    %v51 = vld [vmem:[#allocation5 + $0x18] sm:$0xff]
    %v52 = vld [vmem:[#allocation5 + $0x20] sm:$0xff]
    %v53 = vld [vmem:[#allocation5 + $0x28] sm:$0xff]
    %v54 = vld [vmem:[#allocation5 + $0x30] sm:$0xff]
    %v55 = vld [vmem:[#allocation5 + $0x38] sm:$0xff]
    %v56 = vlaneseq
    %v57 = vand.u32 %v56, 127
    %v58 = vadd.s32 %v57, 128
    %v59 = vadd.s32 %v57, 256
    %v60 = vadd.s32 %v57, 384
    %v61 = vadd.s32 %v57, 512
    %v62 = vadd.s32 %v57, 640
    %v63 = vadd.s32 %v57, 768
    %v64 = vadd.s32 %v57, 896
    %v65 = vadd.s32 %v57, 1024
    %v66 = vadd.s32 %v57, 1152
    %v67 = vadd.s32 %v57, 1280
    %v68 = vadd.s32 %v57, 1408
    %v69 = vadd.s32 %v57, 1536
    %v70 = vadd.s32 %v57, 1664
    %v71 = vadd.s32 %v57, 1792
    %v72 = vadd.s32 %v57, 1920
    %v73 = vadd.s32 %v57, 2048
    %v74 = vadd.s32 %v57, 2176
    %v75 = vadd.s32 %v57, 2304
    %v76 = vadd.s32 %v57, 2432
    %v77 = vadd.s32 %v57, 2560
    %v78 = vadd.s32 %v57, 2688
    %v79 = vadd.s32 %v57, 2816
    %v80 = vadd.s32 %v57, 2944
    %v81 = vadd.s32 %v57, 3072
    %v82 = vadd.s32 %v57, 3200
    %v83 = vadd.s32 %v57, 3328
    %v84 = vadd.s32 %v57, 3456
    %v85 = vadd.s32 %v57, 3584
    %v86 = vadd.s32 %v57, 3712
    %v87 = vadd.s32 %v57, 3840
    %v88 = vadd.s32 %v57, 3968
    %v89 = vadd.s32 %v57, 4096
    %v90 = vadd.s32 %v57, 4224
    %v91 = vadd.s32 %v57, 4352
    %v92 = vadd.s32 %v57, 4480
    %v93 = vadd.s32 %v57, 4608
    %v94 = vadd.s32 %v57, 4736
    %v95 = vadd.s32 %v57, 4864
    %v96 = vadd.s32 %v57, 4992
    %v97 = vadd.s32 %v57, 5120
    %v98 = vadd.s32 %v57, 5248
    %v99 = vadd.s32 %v57, 5376
    %v100 = vadd.s32 %v57, 5504
    %v101 = vadd.s32 %v57, 5632
    %v102 = vadd.s32 %v57, 5760
    %v103 = vadd.s32 %v57, 5888
    %v104 = vadd.s32 %v57, 6016
    %v105 = vadd.s32 %v57, 6144
    %v106 = vadd.s32 %v57, 6272
    %v107 = vadd.s32 %v57, 6400
    %v108 = vadd.s32 %v57, 6528
    %v109 = vadd.s32 %v57, 6656
    %v110 = vadd.s32 %v57, 6784
    %v111 = vadd.s32 %v57, 6912
    %v112 = vadd.s32 %v57, 7040
    %v113 = vadd.s32 %v57, 7168
    %v114 = vadd.s32 %v57, 7296
    %v115 = vadd.s32 %v57, 7424
    %v116 = vadd.s32 %v57, 7552
    %v117 = vadd.s32 %v57, 7680
    %v118 = vadd.s32 %v57, 7808
    %v119 = vadd.s32 %v57, 7936
    %v120 = vadd.s32 %v57, 8064
    %v121 = vand.u32 %v57, 1
    %v122 = vand.u32 %v58, 1
    %v123 = vand.u32 %v59, 1
    %v124 = vand.u32 %v60, 1
    %v125 = vand.u32 %v61, 1
    %v126 = vand.u32 %v62, 1
    %v127 = vand.u32 %v63, 1
    %v128 = vand.u32 %v64, 1
    %v129 = vand.u32 %v65, 1
    %v130 = vand.u32 %v66, 1
    %v131 = vand.u32 %v67, 1
    %v132 = vand.u32 %v68, 1
    %v133 = vand.u32 %v69, 1
    %v134 = vand.u32 %v70, 1
    %v135 = vand.u32 %v71, 1
    %v136 = vand.u32 %v72, 1
    %v137 = vand.u32 %v73, 1
    %v138 = vand.u32 %v74, 1
    %v139 = vand.u32 %v75, 1
    %v140 = vand.u32 %v76, 1
    %v141 = vand.u32 %v77, 1
    %v142 = vand.u32 %v78, 1
    %v143 = vand.u32 %v79, 1
    %v144 = vand.u32 %v80, 1
    %v145 = vand.u32 %v81, 1
    %v146 = vand.u32 %v82, 1
    %v147 = vand.u32 %v83, 1
    %v148 = vand.u32 %v84, 1
    %v149 = vand.u32 %v85, 1
    %v150 = vand.u32 %v86, 1
    %v151 = vand.u32 %v87, 1
    %v152 = vand.u32 %v88, 1
    %v153 = vand.u32 %v89, 1
    %v154 = vand.u32 %v90, 1
    %v155 = vand.u32 %v91, 1
    %v156 = vand.u32 %v92, 1
    %v157 = vand.u32 %v93, 1
    %v158 = vand.u32 %v94, 1
    %v159 = vand.u32 %v95, 1
    %v160 = vand.u32 %v96, 1
    %v161 = vand.u32 %v97, 1
    %v162 = vand.u32 %v98, 1
    %v163 = vand.u32 %v99, 1
    %v164 = vand.u32 %v100, 1
    %v165 = vand.u32 %v101, 1
    %v166 = vand.u32 %v102, 1
    %v167 = vand.u32 %v103, 1
    %v168 = vand.u32 %v104, 1
    %v169 = vand.u32 %v105, 1
    %v170 = vand.u32 %v106, 1
    %v171 = vand.u32 %v107, 1
    %v172 = vand.u32 %v108, 1
    %v173 = vand.u32 %v109, 1
    %v174 = vand.u32 %v110, 1
    %v175 = vand.u32 %v111, 1
    %v176 = vand.u32 %v112, 1
    %v177 = vand.u32 %v113, 1
    %v178 = vand.u32 %v114, 1
    %v179 = vand.u32 %v115, 1
    %v180 = vand.u32 %v116, 1
    %v181 = vand.u32 %v117, 1
    %v182 = vand.u32 %v118, 1
    %v183 = vand.u32 %v119, 1
    %v184 = vand.u32 %v120, 1
    %vm185 = vcmp.eq.s32.totalorder %v121, 0
    %vm186 = vcmp.eq.s32.totalorder %v122, 0
    %vm187 = vcmp.eq.s32.totalorder %v123, 0
    %vm188 = vcmp.eq.s32.totalorder %v124, 0
    %vm189 = vcmp.eq.s32.totalorder %v125, 0
    %vm190 = vcmp.eq.s32.totalorder %v126, 0
    %vm191 = vcmp.eq.s32.totalorder %v127, 0
    %vm192 = vcmp.eq.s32.totalorder %v128, 0
    %vm193 = vcmp.eq.s32.totalorder %v129, 0
    %vm194 = vcmp.eq.s32.totalorder %v130, 0
    %vm195 = vcmp.eq.s32.totalorder %v131, 0
    %vm196 = vcmp.eq.s32.totalorder %v132, 0
    %vm197 = vcmp.eq.s32.totalorder %v133, 0
    %vm198 = vcmp.eq.s32.totalorder %v134, 0
    %vm199 = vcmp.eq.s32.totalorder %v135, 0
    %vm200 = vcmp.eq.s32.totalorder %v136, 0
    %vm201 = vcmp.eq.s32.totalorder %v137, 0
    %vm202 = vcmp.eq.s32.totalorder %v138, 0
    %vm203 = vcmp.eq.s32.totalorder %v139, 0
    %vm204 = vcmp.eq.s32.totalorder %v140, 0
    %vm205 = vcmp.eq.s32.totalorder %v141, 0
    %vm206 = vcmp.eq.s32.totalorder %v142, 0
    %vm207 = vcmp.eq.s32.totalorder %v143, 0
    %vm208 = vcmp.eq.s32.totalorder %v144, 0
    %vm209 = vcmp.eq.s32.totalorder %v145, 0
    %vm210 = vcmp.eq.s32.totalorder %v146, 0
    %vm211 = vcmp.eq.s32.totalorder %v147, 0
    %vm212 = vcmp.eq.s32.totalorder %v148, 0
    %vm213 = vcmp.eq.s32.totalorder %v149, 0
    %vm214 = vcmp.eq.s32.totalorder %v150, 0
    %vm215 = vcmp.eq.s32.totalorder %v151, 0
    %vm216 = vcmp.eq.s32.totalorder %v152, 0
    %vm217 = vcmp.eq.s32.totalorder %v153, 0
    %vm218 = vcmp.eq.s32.totalorder %v154, 0
    %vm219 = vcmp.eq.s32.totalorder %v155, 0
    %vm220 = vcmp.eq.s32.totalorder %v156, 0
    %vm221 = vcmp.eq.s32.totalorder %v157, 0
    %vm222 = vcmp.eq.s32.totalorder %v158, 0
    %vm223 = vcmp.eq.s32.totalorder %v159, 0
    %vm224 = vcmp.eq.s32.totalorder %v160, 0
    %vm225 = vcmp.eq.s32.totalorder %v161, 0
    %vm226 = vcmp.eq.s32.totalorder %v162, 0
    %vm227 = vcmp.eq.s32.totalorder %v163, 0
    %vm228 = vcmp.eq.s32.totalorder %v164, 0
    %vm229 = vcmp.eq.s32.totalorder %v165, 0
    %vm230 = vcmp.eq.s32.totalorder %v166, 0
    %vm231 = vcmp.eq.s32.totalorder %v167, 0
    %vm232 = vcmp.eq.s32.totalorder %v168, 0
    %vm233 = vcmp.eq.s32.totalorder %v169, 0
    %vm234 = vcmp.eq.s32.totalorder %v170, 0
    %vm235 = vcmp.eq.s32.totalorder %v171, 0
    %vm236 = vcmp.eq.s32.totalorder %v172, 0
    %vm237 = vcmp.eq.s32.totalorder %v173, 0
    %vm238 = vcmp.eq.s32.totalorder %v174, 0
    %vm239 = vcmp.eq.s32.totalorder %v175, 0
    %vm240 = vcmp.eq.s32.totalorder %v176, 0
    %vm241 = vcmp.eq.s32.totalorder %v177, 0
    %vm242 = vcmp.eq.s32.totalorder %v178, 0
    %vm243 = vcmp.eq.s32.totalorder %v179, 0
    %vm244 = vcmp.eq.s32.totalorder %v180, 0
    %vm245 = vcmp.eq.s32.totalorder %v181, 0
    %vm246 = vcmp.eq.s32.totalorder %v182, 0
    %vm247 = vcmp.eq.s32.totalorder %v183, 0
    %vm248 = vcmp.eq.s32.totalorder %v184, 0
    %v249 = vcvt.s32.f32 %v57
    %v250 = vcvt.s32.f32 %v58
    %v251 = vcvt.s32.f32 %v59
    %v252 = vcvt.s32.f32 %v60
    %v253 = vcvt.s32.f32 %v61
    %v254 = vcvt.s32.f32 %v62
    %v255 = vcvt.s32.f32 %v63
    %v256 = vcvt.s32.f32 %v64
    %v257 = vcvt.s32.f32 %v65
    %v258 = vcvt.s32.f32 %v66
    %v259 = vcvt.s32.f32 %v67
    %v260 = vcvt.s32.f32 %v68
    %v261 = vcvt.s32.f32 %v69
    %v262 = vcvt.s32.f32 %v70
    %v263 = vcvt.s32.f32 %v71
    %v264 = vcvt.s32.f32 %v72
    %v265 = vcvt.s32.f32 %v73
    %v266 = vcvt.s32.f32 %v74
    %v267 = vcvt.s32.f32 %v75
    %v268 = vcvt.s32.f32 %v76
    %v269 = vcvt.s32.f32 %v77
    %v270 = vcvt.s32.f32 %v78
    %v271 = vcvt.s32.f32 %v79
    %v272 = vcvt.s32.f32 %v80
    %v273 = vcvt.s32.f32 %v81
    %v274 = vcvt.s32.f32 %v82
    %v275 = vcvt.s32.f32 %v83
    %v276 = vcvt.s32.f32 %v84
    %v277 = vcvt.s32.f32 %v85
    %v278 = vcvt.s32.f32 %v86
    %v279 = vcvt.s32.f32 %v87
    %v280 = vcvt.s32.f32 %v88
    %v281 = vcvt.s32.f32 %v89
    %v282 = vcvt.s32.f32 %v90
    %v283 = vcvt.s32.f32 %v91
    %v284 = vcvt.s32.f32 %v92
    %v285 = vcvt.s32.f32 %v93
    %v286 = vcvt.s32.f32 %v94
    %v287 = vcvt.s32.f32 %v95
    %v288 = vcvt.s32.f32 %v96
    %v289 = vcvt.s32.f32 %v97
    %v290 = vcvt.s32.f32 %v98
    %v291 = vcvt.s32.f32 %v99
    %v292 = vcvt.s32.f32 %v100
    %v293 = vcvt.s32.f32 %v101
    %v294 = vcvt.s32.f32 %v102
    %v295 = vcvt.s32.f32 %v103
    %v296 = vcvt.s32.f32 %v104
    %v297 = vcvt.s32.f32 %v105
    %v298 = vcvt.s32.f32 %v106
    %v299 = vcvt.s32.f32 %v107
    %v300 = vcvt.s32.f32 %v108
    %v301 = vcvt.s32.f32 %v109
    %v302 = vcvt.s32.f32 %v110
    %v303 = vcvt.s32.f32 %v111
    %v304 = vcvt.s32.f32 %v112
    %v305 = vcvt.s32.f32 %v113
    %v306 = vcvt.s32.f32 %v114
    %v307 = vcvt.s32.f32 %v115
    %v308 = vcvt.s32.f32 %v116
    %v309 = vcvt.s32.f32 %v117
    %v310 = vcvt.s32.f32 %v118
    %v311 = vcvt.s32.f32 %v119
    %v312 = vcvt.s32.f32 %v120
    %313 = vrot.lane.b32.xlu0 %v249, 1
    %v314 = vpop.permute.xlu0 %313
    %315 = vrot.lane.b32.xlu0 %v250, 1
    %v316 = vpop.permute.xlu0 %315
    %317 = vrot.lane.b32.xlu0 %v251, 1
    %v318 = vpop.permute.xlu0 %317
    %319 = vrot.lane.b32.xlu0 %v252, 1
    %v320 = vpop.permute.xlu0 %319
    %321 = vrot.lane.b32.xlu0 %v253, 1
    %v322 = vpop.permute.xlu0 %321
    %323 = vrot.lane.b32.xlu0 %v254, 1
    %v324 = vpop.permute.xlu0 %323
    %325 = vrot.lane.b32.xlu0 %v255, 1
    %v326 = vpop.permute.xlu0 %325
    %327 = vrot.lane.b32.xlu0 %v256, 1
    %v328 = vpop.permute.xlu0 %327
    %329 = vrot.lane.b32.xlu0 %v257, 1
    %v330 = vpop.permute.xlu0 %329
    %331 = vrot.lane.b32.xlu0 %v258, 1
    %v332 = vpop.permute.xlu0 %331
    %333 = vrot.lane.b32.xlu0 %v259, 1
    %v334 = vpop.permute.xlu0 %333
    %335 = vrot.lane.b32.xlu0 %v260, 1
    %v336 = vpop.permute.xlu0 %335
    %337 = vrot.lane.b32.xlu0 %v261, 1
    %v338 = vpop.permute.xlu0 %337
    %339 = vrot.lane.b32.xlu0 %v262, 1
    %v340 = vpop.permute.xlu0 %339
    %341 = vrot.lane.b32.xlu0 %v263, 1
    %v342 = vpop.permute.xlu0 %341
    %343 = vrot.lane.b32.xlu0 %v264, 1
    %v344 = vpop.permute.xlu0 %343
    %345 = vrot.lane.b32.xlu0 %v265, 1
    %v346 = vpop.permute.xlu0 %345
    %347 = vrot.lane.b32.xlu0 %v266, 1
    %v348 = vpop.permute.xlu0 %347
    %349 = vrot.lane.b32.xlu0 %v267, 1
    %v350 = vpop.permute.xlu0 %349
    %351 = vrot.lane.b32.xlu0 %v268, 1
    %v352 = vpop.permute.xlu0 %351
    %353 = vrot.lane.b32.xlu0 %v269, 1
    %v354 = vpop.permute.xlu0 %353
    %355 = vrot.lane.b32.xlu0 %v270, 1
    %v356 = vpop.permute.xlu0 %355
    %357 = vrot.lane.b32.xlu0 %v271, 1
    %v358 = vpop.permute.xlu0 %357
    %359 = vrot.lane.b32.xlu0 %v272, 1
    %v360 = vpop.permute.xlu0 %359
    %361 = vrot.lane.b32.xlu0 %v273, 1
    %v362 = vpop.permute.xlu0 %361
    %363 = vrot.lane.b32.xlu0 %v274, 1
    %v364 = vpop.permute.xlu0 %363
    %365 = vrot.lane.b32.xlu0 %v275, 1
    %v366 = vpop.permute.xlu0 %365
    %367 = vrot.lane.b32.xlu0 %v276, 1
    %v368 = vpop.permute.xlu0 %367
    %369 = vrot.lane.b32.xlu0 %v277, 1
    %v370 = vpop.permute.xlu0 %369
    %371 = vrot.lane.b32.xlu0 %v278, 1
    %v372 = vpop.permute.xlu0 %371
    %373 = vrot.lane.b32.xlu0 %v279, 1
    %v374 = vpop.permute.xlu0 %373
    %375 = vrot.lane.b32.xlu0 %v280, 1
    %v376 = vpop.permute.xlu0 %375
    %377 = vrot.lane.b32.xlu0 %v281, 1
    %v378 = vpop.permute.xlu0 %377
    %379 = vrot.lane.b32.xlu0 %v282, 1
    %v380 = vpop.permute.xlu0 %379
    %381 = vrot.lane.b32.xlu0 %v283, 1
    %v382 = vpop.permute.xlu0 %381
    %383 = vrot.lane.b32.xlu0 %v284, 1
    %v384 = vpop.permute.xlu0 %383
    %385 = vrot.lane.b32.xlu0 %v285, 1
    %v386 = vpop.permute.xlu0 %385
    %387 = vrot.lane.b32.xlu0 %v286, 1
    %v388 = vpop.permute.xlu0 %387
    %389 = vrot.lane.b32.xlu0 %v287, 1
    %v390 = vpop.permute.xlu0 %389
    %391 = vrot.lane.b32.xlu0 %v288, 1
    %v392 = vpop.permute.xlu0 %391
    %393 = vrot.lane.b32.xlu0 %v289, 1
    %v394 = vpop.permute.xlu0 %393
    %395 = vrot.lane.b32.xlu0 %v290, 1
    %v396 = vpop.permute.xlu0 %395
    %397 = vrot.lane.b32.xlu0 %v291, 1
    %v398 = vpop.permute.xlu0 %397
    %399 = vrot.lane.b32.xlu0 %v292, 1
    %v400 = vpop.permute.xlu0 %399
    %401 = vrot.lane.b32.xlu0 %v293, 1
    %v402 = vpop.permute.xlu0 %401
    %403 = vrot.lane.b32.xlu0 %v294, 1
    %v404 = vpop.permute.xlu0 %403
    %405 = vrot.lane.b32.xlu0 %v295, 1
    %v406 = vpop.permute.xlu0 %405
    %407 = vrot.lane.b32.xlu0 %v296, 1
    %v408 = vpop.permute.xlu0 %407
    %409 = vrot.lane.b32.xlu0 %v297, 1
    %v410 = vpop.permute.xlu0 %409
    %411 = vrot.lane.b32.xlu0 %v298, 1
    %v412 = vpop.permute.xlu0 %411
    %413 = vrot.lane.b32.xlu0 %v299, 1
    %v414 = vpop.permute.xlu0 %413
    %415 = vrot.lane.b32.xlu0 %v300, 1
    %v416 = vpop.permute.xlu0 %415
    %417 = vrot.lane.b32.xlu0 %v301, 1
    %v418 = vpop.permute.xlu0 %417
    %419 = vrot.lane.b32.xlu0 %v302, 1
    %v420 = vpop.permute.xlu0 %419
    %421 = vrot.lane.b32.xlu0 %v303, 1
    %v422 = vpop.permute.xlu0 %421
    %423 = vrot.lane.b32.xlu0 %v304, 1
    %v424 = vpop.permute.xlu0 %423
    %425 = vrot.lane.b32.xlu0 %v305, 1
    %v426 = vpop.permute.xlu0 %425
    %427 = vrot.lane.b32.xlu0 %v306, 1
    %v428 = vpop.permute.xlu0 %427
    %429 = vrot.lane.b32.xlu0 %v307, 1
    %v430 = vpop.permute.xlu0 %429
    %431 = vrot.lane.b32.xlu0 %v308, 1
    %v432 = vpop.permute.xlu0 %431
    %433 = vrot.lane.b32.xlu0 %v309, 1
    %v434 = vpop.permute.xlu0 %433
    %435 = vrot.lane.b32.xlu0 %v310, 1
    %v436 = vpop.permute.xlu0 %435
    %437 = vrot.lane.b32.xlu0 %v311, 1
    %v438 = vpop.permute.xlu0 %437
    %439 = vrot.lane.b32.xlu0 %v312, 1
    %v440 = vpop.permute.xlu0 %439
    %vm441 = vcmp.lt.s32.totalorder %v57, 1
    %v442 = vsel %vm441, %v438, %v440
    %v443 = vsel %vm441, %v436, %v438
    %v444 = vsel %vm441, %v434, %v436
    %v445 = vsel %vm441, %v432, %v434
    %v446 = vsel %vm441, %v430, %v432
    %v447 = vsel %vm441, %v428, %v430
    %v448 = vsel %vm441, %v426, %v428
    %v449 = vsel %vm441, %v424, %v426
    %v450 = vsel %vm441, %v422, %v424
    %v451 = vsel %vm441, %v420, %v422
    %v452 = vsel %vm441, %v418, %v420
    %v453 = vsel %vm441, %v416, %v418
    %v454 = vsel %vm441, %v414, %v416
    %v455 = vsel %vm441, %v412, %v414
    %v456 = vsel %vm441, %v410, %v412
    %v457 = vsel %vm441, %v408, %v410
    %v458 = vsel %vm441, %v406, %v408
    %v459 = vsel %vm441, %v404, %v406
    %v460 = vsel %vm441, %v402, %v404
    %v461 = vsel %vm441, %v400, %v402
    %v462 = vsel %vm441, %v398, %v400
    %v463 = vsel %vm441, %v396, %v398
    %v464 = vsel %vm441, %v394, %v396
    %v465 = vsel %vm441, %v392, %v394
    %v466 = vsel %vm441, %v390, %v392
    %v467 = vsel %vm441, %v388, %v390
    %v468 = vsel %vm441, %v386, %v388
    %v469 = vsel %vm441, %v384, %v386
    %v470 = vsel %vm441, %v382, %v384
    %v471 = vsel %vm441, %v380, %v382
    %v472 = vsel %vm441, %v378, %v380
    %v473 = vsel %vm441, %v376, %v378
    %v474 = vsel %vm441, %v374, %v376
    %v475 = vsel %vm441, %v372, %v374
    %v476 = vsel %vm441, %v370, %v372
    %v477 = vsel %vm441, %v368, %v370
    %v478 = vsel %vm441, %v366, %v368
    %v479 = vsel %vm441, %v364, %v366
    %v480 = vsel %vm441, %v362, %v364
    %v481 = vsel %vm441, %v360, %v362
    %v482 = vsel %vm441, %v358, %v360
    %v483 = vsel %vm441, %v356, %v358
    %v484 = vsel %vm441, %v354, %v356
    %v485 = vsel %vm441, %v352, %v354
    %v486 = vsel %vm441, %v350, %v352
    %v487 = vsel %vm441, %v348, %v350
    %v488 = vsel %vm441, %v346, %v348
    %v489 = vsel %vm441, %v344, %v346
    %v490 = vsel %vm441, %v342, %v344
    %v491 = vsel %vm441, %v340, %v342
    %v492 = vsel %vm441, %v338, %v340
    %v493 = vsel %vm441, %v336, %v338
    %v494 = vsel %vm441, %v334, %v336
    %v495 = vsel %vm441, %v332, %v334
    %v496 = vsel %vm441, %v330, %v332
    %v497 = vsel %vm441, %v328, %v330
    %v498 = vsel %vm441, %v326, %v328
    %v499 = vsel %vm441, %v324, %v326
    %v500 = vsel %vm441, %v322, %v324
    %v501 = vsel %vm441, %v320, %v322
    %v502 = vsel %vm441, %v318, %v320
    %v503 = vsel %vm441, %v316, %v318
    %v504 = vsel %vm441, %v314, %v316
    %v505 = vsel %vm441, %v440, %v314
    %vm506 = vcmp.eq.s32.totalorder %v57, 0
    %vm507 = vcmp.eq.s32.totalorder %v58, 0
    %vm508 = vcmp.eq.s32.totalorder %v59, 0
    %vm509 = vcmp.eq.s32.totalorder %v60, 0
    %vm510 = vcmp.eq.s32.totalorder %v61, 0
    %vm511 = vcmp.eq.s32.totalorder %v62, 0
    %vm512 = vcmp.eq.s32.totalorder %v63, 0
    %vm513 = vcmp.eq.s32.totalorder %v64, 0
    %vm514 = vcmp.eq.s32.totalorder %v65, 0
    %vm515 = vcmp.eq.s32.totalorder %v66, 0
    %vm516 = vcmp.eq.s32.totalorder %v67, 0
    %vm517 = vcmp.eq.s32.totalorder %v68, 0
    %vm518 = vcmp.eq.s32.totalorder %v69, 0
    %vm519 = vcmp.eq.s32.totalorder %v70, 0
    %vm520 = vcmp.eq.s32.totalorder %v71, 0
    %vm521 = vcmp.eq.s32.totalorder %v72, 0
    %vm522 = vcmp.eq.s32.totalorder %v73, 0
    %vm523 = vcmp.eq.s32.totalorder %v74, 0
    %vm524 = vcmp.eq.s32.totalorder %v75, 0
    %vm525 = vcmp.eq.s32.totalorder %v76, 0
    %vm526 = vcmp.eq.s32.totalorder %v77, 0
    %vm527 = vcmp.eq.s32.totalorder %v78, 0
    %vm528 = vcmp.eq.s32.totalorder %v79, 0
    %vm529 = vcmp.eq.s32.totalorder %v80, 0
    %vm530 = vcmp.eq.s32.totalorder %v81, 0
    %vm531 = vcmp.eq.s32.totalorder %v82, 0
    %vm532 = vcmp.eq.s32.totalorder %v83, 0
    %vm533 = vcmp.eq.s32.totalorder %v84, 0
    %vm534 = vcmp.eq.s32.totalorder %v85, 0
    %vm535 = vcmp.eq.s32.totalorder %v86, 0
    %vm536 = vcmp.eq.s32.totalorder %v87, 0
    %vm537 = vcmp.eq.s32.totalorder %v88, 0
    %vm538 = vcmp.eq.s32.totalorder %v89, 0
    %vm539 = vcmp.eq.s32.totalorder %v90, 0
    %vm540 = vcmp.eq.s32.totalorder %v91, 0
    %vm541 = vcmp.eq.s32.totalorder %v92, 0
    %vm542 = vcmp.eq.s32.totalorder %v93, 0
    %vm543 = vcmp.eq.s32.totalorder %v94, 0
    %vm544 = vcmp.eq.s32.totalorder %v95, 0
    %vm545 = vcmp.eq.s32.totalorder %v96, 0
    %vm546 = vcmp.eq.s32.totalorder %v97, 0
    %vm547 = vcmp.eq.s32.totalorder %v98, 0
    %vm548 = vcmp.eq.s32.totalorder %v99, 0
    %vm549 = vcmp.eq.s32.totalorder %v100, 0
    %vm550 = vcmp.eq.s32.totalorder %v101, 0
    %vm551 = vcmp.eq.s32.totalorder %v102, 0
    %vm552 = vcmp.eq.s32.totalorder %v103, 0
    %vm553 = vcmp.eq.s32.totalorder %v104, 0
    %vm554 = vcmp.eq.s32.totalorder %v105, 0
    %vm555 = vcmp.eq.s32.totalorder %v106, 0
    %vm556 = vcmp.eq.s32.totalorder %v107, 0
    %vm557 = vcmp.eq.s32.totalorder %v108, 0
    %vm558 = vcmp.eq.s32.totalorder %v109, 0
    %vm559 = vcmp.eq.s32.totalorder %v110, 0
    %vm560 = vcmp.eq.s32.totalorder %v111, 0
    %vm561 = vcmp.eq.s32.totalorder %v112, 0
    %vm562 = vcmp.eq.s32.totalorder %v113, 0
    %vm563 = vcmp.eq.s32.totalorder %v114, 0
    %vm564 = vcmp.eq.s32.totalorder %v115, 0
    %vm565 = vcmp.eq.s32.totalorder %v116, 0
    %vm566 = vcmp.eq.s32.totalorder %v117, 0
    %vm567 = vcmp.eq.s32.totalorder %v118, 0
    %vm568 = vcmp.eq.s32.totalorder %v119, 0
    %vm569 = vcmp.eq.s32.totalorder %v120, 0
    %v570 = vsub.f32 %v249, 1.0
    %v571 = vsub.f32 %v250, 1.0
    %v572 = vsub.f32 %v251, 1.0
    %v573 = vsub.f32 %v252, 1.0
    %v574 = vsub.f32 %v253, 1.0
    %v575 = vsub.f32 %v254, 1.0
    %v576 = vsub.f32 %v255, 1.0
    %v577 = vsub.f32 %v256, 1.0
    %v578 = vsub.f32 %v257, 1.0
    %v579 = vsub.f32 %v258, 1.0
    %v580 = vsub.f32 %v259, 1.0
    %v581 = vsub.f32 %v260, 1.0
    %v582 = vsub.f32 %v261, 1.0
    %v583 = vsub.f32 %v262, 1.0
    %v584 = vsub.f32 %v263, 1.0
    %v585 = vsub.f32 %v264, 1.0
    %v586 = vsub.f32 %v265, 1.0
    %v587 = vsub.f32 %v266, 1.0
    %v588 = vsub.f32 %v267, 1.0
    %v589 = vsub.f32 %v268, 1.0
    %v590 = vsub.f32 %v269, 1.0
    %v591 = vsub.f32 %v270, 1.0
    %v592 = vsub.f32 %v271, 1.0
    %v593 = vsub.f32 %v272, 1.0
    %v594 = vsub.f32 %v273, 1.0
    %v595 = vsub.f32 %v274, 1.0
    %v596 = vsub.f32 %v275, 1.0
    %v597 = vsub.f32 %v276, 1.0
    %v598 = vsub.f32 %v277, 1.0
    %v599 = vsub.f32 %v278, 1.0
    %v600 = vsub.f32 %v279, 1.0
    %v601 = vsub.f32 %v280, 1.0
    %v602 = vsub.f32 %v281, 1.0
    %v603 = vsub.f32 %v282, 1.0
    %v604 = vsub.f32 %v283, 1.0
    %v605 = vsub.f32 %v284, 1.0
    %v606 = vsub.f32 %v285, 1.0
    %v607 = vsub.f32 %v286, 1.0
    %v608 = vsub.f32 %v287, 1.0
    %v609 = vsub.f32 %v288, 1.0
    %v610 = vsub.f32 %v289, 1.0
    %v611 = vsub.f32 %v290, 1.0
    %v612 = vsub.f32 %v291, 1.0
    %v613 = vsub.f32 %v292, 1.0
    %v614 = vsub.f32 %v293, 1.0
    %v615 = vsub.f32 %v294, 1.0
    %v616 = vsub.f32 %v295, 1.0
    %v617 = vsub.f32 %v296, 1.0
    %v618 = vsub.f32 %v297, 1.0
    %v619 = vsub.f32 %v298, 1.0
    %v620 = vsub.f32 %v299, 1.0
    %v621 = vsub.f32 %v300, 1.0
    %v622 = vsub.f32 %v301, 1.0
    %v623 = vsub.f32 %v302, 1.0
    %v624 = vsub.f32 %v303, 1.0
    %v625 = vsub.f32 %v304, 1.0
    %v626 = vsub.f32 %v305, 1.0
    %v627 = vsub.f32 %v306, 1.0
    %v628 = vsub.f32 %v307, 1.0
    %v629 = vsub.f32 %v308, 1.0
    %v630 = vsub.f32 %v309, 1.0
    %v631 = vsub.f32 %v310, 1.0
    %v632 = vsub.f32 %v311, 1.0
    %v633 = vsub.f32 %v312, 1.0
    %v634 = vsel %vm506, 8191.0, %v570
    %v635 = vsel %vm507, 8191.0, %v571
    %v636 = vsel %vm508, 8191.0, %v572
    %v637 = vsel %vm509, 8191.0, %v573
    %v638 = vsel %vm510, 8191.0, %v574
    %v639 = vsel %vm511, 8191.0, %v575
    %v640 = vsel %vm512, 8191.0, %v576
    %v641 = vsel %vm513, 8191.0, %v577
    %v642 = vsel %vm514, 8191.0, %v578
    %v643 = vsel %vm515, 8191.0, %v579
    %v644 = vsel %vm516, 8191.0, %v580
    %v645 = vsel %vm517, 8191.0, %v581
    %v646 = vsel %vm518, 8191.0, %v582
    %v647 = vsel %vm519, 8191.0, %v583
    %v648 = vsel %vm520, 8191.0, %v584
    %v649 = vsel %vm521, 8191.0, %v585
    %v650 = vsel %vm522, 8191.0, %v586
    %v651 = vsel %vm523, 8191.0, %v587
    %v652 = vsel %vm524, 8191.0, %v588
    %v653 = vsel %vm525, 8191.0, %v589
    %v654 = vsel %vm526, 8191.0, %v590
    %v655 = vsel %vm527, 8191.0, %v591
    %v656 = vsel %vm528, 8191.0, %v592
    %v657 = vsel %vm529, 8191.0, %v593
    %v658 = vsel %vm530, 8191.0, %v594
    %v659 = vsel %vm531, 8191.0, %v595
    %v660 = vsel %vm532, 8191.0, %v596
    %v661 = vsel %vm533, 8191.0, %v597
    %v662 = vsel %vm534, 8191.0, %v598
    %v663 = vsel %vm535, 8191.0, %v599
    %v664 = vsel %vm536, 8191.0, %v600
    %v665 = vsel %vm537, 8191.0, %v601
    %v666 = vsel %vm538, 8191.0, %v602
    %v667 = vsel %vm539, 8191.0, %v603
    %v668 = vsel %vm540, 8191.0, %v604
    %v669 = vsel %vm541, 8191.0, %v605
    %v670 = vsel %vm542, 8191.0, %v606
    %v671 = vsel %vm543, 8191.0, %v607
    %v672 = vsel %vm544, 8191.0, %v608
    %v673 = vsel %vm545, 8191.0, %v609
    %v674 = vsel %vm546, 8191.0, %v610
    %v675 = vsel %vm547, 8191.0, %v611
    %v676 = vsel %vm548, 8191.0, %v612
    %v677 = vsel %vm549, 8191.0, %v613
    %v678 = vsel %vm550, 8191.0, %v614
    %v679 = vsel %vm551, 8191.0, %v615
    %v680 = vsel %vm552, 8191.0, %v616
    %v681 = vsel %vm553, 8191.0, %v617
    %v682 = vsel %vm554, 8191.0, %v618
    %v683 = vsel %vm555, 8191.0, %v619
    %v684 = vsel %vm556, 8191.0, %v620
    %v685 = vsel %vm557, 8191.0, %v621
    %v686 = vsel %vm558, 8191.0, %v622
    %v687 = vsel %vm559, 8191.0, %v623
    %v688 = vsel %vm560, 8191.0, %v624
    %v689 = vsel %vm561, 8191.0, %v625
    %v690 = vsel %vm562, 8191.0, %v626
    %v691 = vsel %vm563, 8191.0, %v627
    %v692 = vsel %vm564, 8191.0, %v628
    %v693 = vsel %vm565, 8191.0, %v629
    %v694 = vsel %vm566, 8191.0, %v630
    %v695 = vsel %vm567, 8191.0, %v631
    %v696 = vsel %vm568, 8191.0, %v632
    %v697 = vsel %vm569, 8191.0, %v633
    %vm698 = vcmp.eq.f32.partialorder %v505, %v634
    %vm699 = vcmp.eq.f32.partialorder %v504, %v635
    %vm700 = vcmp.eq.f32.partialorder %v503, %v636
    %vm701 = vcmp.eq.f32.partialorder %v502, %v637
    %vm702 = vcmp.eq.f32.partialorder %v501, %v638
    %vm703 = vcmp.eq.f32.partialorder %v500, %v639
    %vm704 = vcmp.eq.f32.partialorder %v499, %v640
    %vm705 = vcmp.eq.f32.partialorder %v498, %v641
    %vm706 = vcmp.eq.f32.partialorder %v497, %v642
    %vm707 = vcmp.eq.f32.partialorder %v496, %v643
    %vm708 = vcmp.eq.f32.partialorder %v495, %v644
    %vm709 = vcmp.eq.f32.partialorder %v494, %v645
    %vm710 = vcmp.eq.f32.partialorder %v493, %v646
    %vm711 = vcmp.eq.f32.partialorder %v492, %v647
    %vm712 = vcmp.eq.f32.partialorder %v491, %v648
    %vm713 = vcmp.eq.f32.partialorder %v490, %v649
    %vm714 = vcmp.eq.f32.partialorder %v489, %v650
    %vm715 = vcmp.eq.f32.partialorder %v488, %v651
    %vm716 = vcmp.eq.f32.partialorder %v487, %v652
    %vm717 = vcmp.eq.f32.partialorder %v486, %v653
    %vm718 = vcmp.eq.f32.partialorder %v485, %v654
    %vm719 = vcmp.eq.f32.partialorder %v484, %v655
    %vm720 = vcmp.eq.f32.partialorder %v483, %v656
    %vm721 = vcmp.eq.f32.partialorder %v482, %v657
    %vm722 = vcmp.eq.f32.partialorder %v481, %v658
    %vm723 = vcmp.eq.f32.partialorder %v480, %v659
    %vm724 = vcmp.eq.f32.partialorder %v479, %v660
    %vm725 = vcmp.eq.f32.partialorder %v478, %v661
    %vm726 = vcmp.eq.f32.partialorder %v477, %v662
    %vm727 = vcmp.eq.f32.partialorder %v476, %v663
    %vm728 = vcmp.eq.f32.partialorder %v475, %v664
    %vm729 = vcmp.eq.f32.partialorder %v474, %v665
    %vm730 = vcmp.eq.f32.partialorder %v473, %v666
    %vm731 = vcmp.eq.f32.partialorder %v472, %v667
    %vm732 = vcmp.eq.f32.partialorder %v471, %v668
    %vm733 = vcmp.eq.f32.partialorder %v470, %v669
    %vm734 = vcmp.eq.f32.partialorder %v469, %v670
    %vm735 = vcmp.eq.f32.partialorder %v468, %v671
    %vm736 = vcmp.eq.f32.partialorder %v467, %v672
    %vm737 = vcmp.eq.f32.partialorder %v466, %v673
    %vm738 = vcmp.eq.f32.partialorder %v465, %v674
    %vm739 = vcmp.eq.f32.partialorder %v464, %v675
    %vm740 = vcmp.eq.f32.partialorder %v463, %v676
    %vm741 = vcmp.eq.f32.partialorder %v462, %v677
    %vm742 = vcmp.eq.f32.partialorder %v461, %v678
    %vm743 = vcmp.eq.f32.partialorder %v460, %v679
    %vm744 = vcmp.eq.f32.partialorder %v459, %v680
    %vm745 = vcmp.eq.f32.partialorder %v458, %v681
    %vm746 = vcmp.eq.f32.partialorder %v457, %v682
    %vm747 = vcmp.eq.f32.partialorder %v456, %v683
    %vm748 = vcmp.eq.f32.partialorder %v455, %v684
    %vm749 = vcmp.eq.f32.partialorder %v454, %v685
    %vm750 = vcmp.eq.f32.partialorder %v453, %v686
    %vm751 = vcmp.eq.f32.partialorder %v452, %v687
    %vm752 = vcmp.eq.f32.partialorder %v451, %v688
    %vm753 = vcmp.eq.f32.partialorder %v450, %v689
    %vm754 = vcmp.eq.f32.partialorder %v449, %v690
    %vm755 = vcmp.eq.f32.partialorder %v448, %v691
    %vm756 = vcmp.eq.f32.partialorder %v447, %v692
    %vm757 = vcmp.eq.f32.partialorder %v446, %v693
    %vm758 = vcmp.eq.f32.partialorder %v445, %v694
    %vm759 = vcmp.eq.f32.partialorder %v444, %v695
    %vm760 = vcmp.eq.f32.partialorder %v443, %v696
    %vm761 = vcmp.eq.f32.partialorder %v442, %v697
    %v770 = vperm.slane %v48, 0
    %v771 = vperm.slane %v48, 1
    %v772 = vperm.slane %v48, 2
    %v773 = vperm.slane %v48, 3
    %v774 = vperm.slane %v48, 4
    %v775 = vperm.slane %v48, 5
    %v776 = vperm.slane %v48, 6
    %v777 = vperm.slane %v48, 7
    %v778 = vperm.slane %v49, 0
    %v779 = vperm.slane %v49, 1
    %v780 = vperm.slane %v49, 2
    %v781 = vperm.slane %v49, 3
    %v782 = vperm.slane %v49, 4
    %v783 = vperm.slane %v49, 5
    %v784 = vperm.slane %v49, 6
    %v785 = vperm.slane %v49, 7
    %v786 = vperm.slane %v50, 0
    %v787 = vperm.slane %v50, 1
    %v788 = vperm.slane %v50, 2
    %v789 = vperm.slane %v50, 3
    %v790 = vperm.slane %v50, 4
    %v791 = vperm.slane %v50, 5
    %v792 = vperm.slane %v50, 6
    %v793 = vperm.slane %v50, 7
    %v794 = vperm.slane %v51, 0
    %v795 = vperm.slane %v51, 1
    %v796 = vperm.slane %v51, 2
    %v797 = vperm.slane %v51, 3
    %v798 = vperm.slane %v51, 4
    %v799 = vperm.slane %v51, 5
    %v800 = vperm.slane %v51, 6
    %v801 = vperm.slane %v51, 7
    %v802 = vperm.slane %v52, 0
    %v803 = vperm.slane %v52, 1
    %v804 = vperm.slane %v52, 2
    %v805 = vperm.slane %v52, 3
    %v806 = vperm.slane %v52, 4
    %v807 = vperm.slane %v52, 5
    %v808 = vperm.slane %v52, 6
    %v809 = vperm.slane %v52, 7
    %v810 = vperm.slane %v53, 0
    %v811 = vperm.slane %v53, 1
    %v812 = vperm.slane %v53, 2
    %v813 = vperm.slane %v53, 3
    %v814 = vperm.slane %v53, 4
    %v815 = vperm.slane %v53, 5
    %v816 = vperm.slane %v53, 6
    %v817 = vperm.slane %v53, 7
    %v818 = vperm.slane %v54, 0
    %v819 = vperm.slane %v54, 1
    %v820 = vperm.slane %v54, 2
    %v821 = vperm.slane %v54, 3
    %v822 = vperm.slane %v54, 4
    %v823 = vperm.slane %v54, 5
    %v824 = vperm.slane %v54, 6
    %v825 = vperm.slane %v54, 7
    %v826 = vperm.slane %v55, 0
    %v827 = vperm.slane %v55, 1
    %v828 = vperm.slane %v55, 2
    %v829 = vperm.slane %v55, 3
    %v830 = vperm.slane %v55, 4
    %v831 = vperm.slane %v55, 5
    %v832 = vperm.slane %v55, 6
    %v833 = vperm.slane %v55, 7
    %898 = vrot.lane.b32.xlu0 %v770, 1
    %v899 = vpop.permute.xlu0 %898
    %900 = vrot.lane.b32.xlu0 %v771, 1
    %v901 = vpop.permute.xlu0 %900
    %902 = vrot.lane.b32.xlu0 %v772, 1
    %v903 = vpop.permute.xlu0 %902
    %904 = vrot.lane.b32.xlu0 %v773, 1
    %v905 = vpop.permute.xlu0 %904
    %906 = vrot.lane.b32.xlu0 %v774, 1
    %v907 = vpop.permute.xlu0 %906
    %908 = vrot.lane.b32.xlu0 %v775, 1
    %v909 = vpop.permute.xlu0 %908
    %910 = vrot.lane.b32.xlu0 %v776, 1
    %v911 = vpop.permute.xlu0 %910
    %912 = vrot.lane.b32.xlu0 %v777, 1
    %v913 = vpop.permute.xlu0 %912
    %914 = vrot.lane.b32.xlu0 %v778, 1
    %v915 = vpop.permute.xlu0 %914
    %916 = vrot.lane.b32.xlu0 %v779, 1
    %v917 = vpop.permute.xlu0 %916
    %918 = vrot.lane.b32.xlu0 %v780, 1
    %v919 = vpop.permute.xlu0 %918
    %920 = vrot.lane.b32.xlu0 %v781, 1
    %v921 = vpop.permute.xlu0 %920
    %922 = vrot.lane.b32.xlu0 %v782, 1
    %v923 = vpop.permute.xlu0 %922
    %924 = vrot.lane.b32.xlu0 %v783, 1
    %v925 = vpop.permute.xlu0 %924
    %926 = vrot.lane.b32.xlu0 %v784, 1
    %v927 = vpop.permute.xlu0 %926
    %928 = vrot.lane.b32.xlu0 %v785, 1
    %v929 = vpop.permute.xlu0 %928
    %930 = vrot.lane.b32.xlu0 %v786, 1
    %v931 = vpop.permute.xlu0 %930
    %932 = vrot.lane.b32.xlu0 %v787, 1
    %v933 = vpop.permute.xlu0 %932
    %934 = vrot.lane.b32.xlu0 %v788, 1
    %v935 = vpop.permute.xlu0 %934
    %936 = vrot.lane.b32.xlu0 %v789, 1
    %v937 = vpop.permute.xlu0 %936
    %938 = vrot.lane.b32.xlu0 %v790, 1
    %v939 = vpop.permute.xlu0 %938
    %940 = vrot.lane.b32.xlu0 %v791, 1
    %v941 = vpop.permute.xlu0 %940
    %942 = vrot.lane.b32.xlu0 %v792, 1
    %v943 = vpop.permute.xlu0 %942
    %944 = vrot.lane.b32.xlu0 %v793, 1
    %v945 = vpop.permute.xlu0 %944
    %946 = vrot.lane.b32.xlu0 %v794, 1
    %v947 = vpop.permute.xlu0 %946
    %948 = vrot.lane.b32.xlu0 %v795, 1
    %v949 = vpop.permute.xlu0 %948
    %950 = vrot.lane.b32.xlu0 %v796, 1
    %v951 = vpop.permute.xlu0 %950
    %952 = vrot.lane.b32.xlu0 %v797, 1
    %v953 = vpop.permute.xlu0 %952
    %954 = vrot.lane.b32.xlu0 %v798, 1
    %v955 = vpop.permute.xlu0 %954
    %956 = vrot.lane.b32.xlu0 %v799, 1
    %v957 = vpop.permute.xlu0 %956
    %958 = vrot.lane.b32.xlu0 %v800, 1
    %v959 = vpop.permute.xlu0 %958
    %960 = vrot.lane.b32.xlu0 %v801, 1
    %v961 = vpop.permute.xlu0 %960
    %962 = vrot.lane.b32.xlu0 %v802, 1
    %v963 = vpop.permute.xlu0 %962
    %964 = vrot.lane.b32.xlu0 %v803, 1
    %v965 = vpop.permute.xlu0 %964
    %966 = vrot.lane.b32.xlu0 %v804, 1
    %v967 = vpop.permute.xlu0 %966
    %968 = vrot.lane.b32.xlu0 %v805, 1
    %v969 = vpop.permute.xlu0 %968
    %970 = vrot.lane.b32.xlu0 %v806, 1
    %v971 = vpop.permute.xlu0 %970
    %972 = vrot.lane.b32.xlu0 %v807, 1
    %v973 = vpop.permute.xlu0 %972
    %974 = vrot.lane.b32.xlu0 %v808, 1
    %v975 = vpop.permute.xlu0 %974
    %976 = vrot.lane.b32.xlu0 %v809, 1
    %v977 = vpop.permute.xlu0 %976
    %978 = vrot.lane.b32.xlu0 %v810, 1
    %v979 = vpop.permute.xlu0 %978
    %980 = vrot.lane.b32.xlu0 %v811, 1
    %v981 = vpop.permute.xlu0 %980
    %982 = vrot.lane.b32.xlu0 %v812, 1
    %v983 = vpop.permute.xlu0 %982
    %984 = vrot.lane.b32.xlu0 %v813, 1
    %v985 = vpop.permute.xlu0 %984
    %986 = vrot.lane.b32.xlu0 %v814, 1
    %v987 = vpop.permute.xlu0 %986
    %988 = vrot.lane.b32.xlu0 %v815, 1
    %v989 = vpop.permute.xlu0 %988
    %990 = vrot.lane.b32.xlu0 %v816, 1
    %v991 = vpop.permute.xlu0 %990
    %992 = vrot.lane.b32.xlu0 %v817, 1
    %v993 = vpop.permute.xlu0 %992
    %994 = vrot.lane.b32.xlu0 %v818, 1
    %v995 = vpop.permute.xlu0 %994
    %996 = vrot.lane.b32.xlu0 %v819, 1
    %v997 = vpop.permute.xlu0 %996
    %998 = vrot.lane.b32.xlu0 %v820, 1
    %v999 = vpop.permute.xlu0 %998
    %1000 = vrot.lane.b32.xlu0 %v821, 1
    %v1001 = vpop.permute.xlu0 %1000
    %1002 = vrot.lane.b32.xlu0 %v822, 1
    %v1003 = vpop.permute.xlu0 %1002
    %1004 = vrot.lane.b32.xlu0 %v823, 1
    %v1005 = vpop.permute.xlu0 %1004
    %1006 = vrot.lane.b32.xlu0 %v824, 1
    %v1007 = vpop.permute.xlu0 %1006
    %1008 = vrot.lane.b32.xlu0 %v825, 1
    %v1009 = vpop.permute.xlu0 %1008
    %1010 = vrot.lane.b32.xlu0 %v826, 1
    %v1011 = vpop.permute.xlu0 %1010
    %1012 = vrot.lane.b32.xlu0 %v827, 1
    %v1013 = vpop.permute.xlu0 %1012
    %1014 = vrot.lane.b32.xlu0 %v828, 1
    %v1015 = vpop.permute.xlu0 %1014
    %1016 = vrot.lane.b32.xlu0 %v829, 1
    %v1017 = vpop.permute.xlu0 %1016
    %1018 = vrot.lane.b32.xlu0 %v830, 1
    %v1019 = vpop.permute.xlu0 %1018
    %1020 = vrot.lane.b32.xlu0 %v831, 1
    %v1021 = vpop.permute.xlu0 %1020
    %1022 = vrot.lane.b32.xlu0 %v832, 1
    %v1023 = vpop.permute.xlu0 %1022
    %1024 = vrot.lane.b32.xlu0 %v833, 1
    %v1025 = vpop.permute.xlu0 %1024
    %v1026 = vsel %vm441, %v1023, %v1025
    %v1027 = vsel %vm441, %v1021, %v1023
    %v1028 = vsel %vm441, %v1019, %v1021
    %v1029 = vsel %vm441, %v1017, %v1019
    %v1030 = vsel %vm441, %v1015, %v1017
    %v1031 = vsel %vm441, %v1013, %v1015
    %v1032 = vsel %vm441, %v1011, %v1013
    %v1033 = vsel %vm441, %v1009, %v1011
    %v1034 = vsel %vm441, %v1007, %v1009
    %v1035 = vsel %vm441, %v1005, %v1007
    %v1036 = vsel %vm441, %v1003, %v1005
    %v1037 = vsel %vm441, %v1001, %v1003
    %v1038 = vsel %vm441, %v999, %v1001
    %v1039 = vsel %vm441, %v997, %v999
    %v1040 = vsel %vm441, %v995, %v997
    %v1041 = vsel %vm441, %v993, %v995
    %v1042 = vsel %vm441, %v991, %v993
    %v1043 = vsel %vm441, %v989, %v991
    %v1044 = vsel %vm441, %v987, %v989
    %v1045 = vsel %vm441, %v985, %v987
    %v1046 = vsel %vm441, %v983, %v985
    %v1047 = vsel %vm441, %v981, %v983
    %v1048 = vsel %vm441, %v979, %v981
    %v1049 = vsel %vm441, %v977, %v979
    %v1050 = vsel %vm441, %v975, %v977
    %v1051 = vsel %vm441, %v973, %v975
    %v1052 = vsel %vm441, %v971, %v973
    %v1053 = vsel %vm441, %v969, %v971
    %v1054 = vsel %vm441, %v967, %v969
    %v1055 = vsel %vm441, %v965, %v967
    %v1056 = vsel %vm441, %v963, %v965
    %v1057 = vsel %vm441, %v961, %v963
    %v1058 = vsel %vm441, %v959, %v961
    %v1059 = vsel %vm441, %v957, %v959
    %v1060 = vsel %vm441, %v955, %v957
    %v1061 = vsel %vm441, %v953, %v955
    %v1062 = vsel %vm441, %v951, %v953
    %v1063 = vsel %vm441, %v949, %v951
    %v1064 = vsel %vm441, %v947, %v949
    %v1065 = vsel %vm441, %v945, %v947
    %v1066 = vsel %vm441, %v943, %v945
    %v1067 = vsel %vm441, %v941, %v943
    %v1068 = vsel %vm441, %v939, %v941
    %v1069 = vsel %vm441, %v937, %v939
    %v1070 = vsel %vm441, %v935, %v937
    %v1071 = vsel %vm441, %v933, %v935
    %v1072 = vsel %vm441, %v931, %v933
    %v1073 = vsel %vm441, %v929, %v931
    %v1074 = vsel %vm441, %v927, %v929
    %v1075 = vsel %vm441, %v925, %v927
    %v1076 = vsel %vm441, %v923, %v925
    %v1077 = vsel %vm441, %v921, %v923
    %v1078 = vsel %vm441, %v919, %v921
    %v1079 = vsel %vm441, %v917, %v919
    %v1080 = vsel %vm441, %v915, %v917
    %v1081 = vsel %vm441, %v913, %v915
    %v1082 = vsel %vm441, %v911, %v913
    %v1083 = vsel %vm441, %v909, %v911
    %v1084 = vsel %vm441, %v907, %v909
    %v1085 = vsel %vm441, %v905, %v907
    %v1086 = vsel %vm441, %v903, %v905
    %v1087 = vsel %vm441, %v901, %v903
    %v1088 = vsel %vm441, %v899, %v901
    %v1089 = vsel %vm441, %v1025, %v899
    %1090 = vrot.lane.b32.xlu0 %v770, 127
    %v1091 = vpop.permute.xlu0 %1090
    %1092 = vrot.lane.b32.xlu0 %v771, 127
    %v1093 = vpop.permute.xlu0 %1092
    %1094 = vrot.lane.b32.xlu0 %v772, 127
    %v1095 = vpop.permute.xlu0 %1094
    %1096 = vrot.lane.b32.xlu0 %v773, 127
    %v1097 = vpop.permute.xlu0 %1096
    %1098 = vrot.lane.b32.xlu0 %v774, 127
    %v1099 = vpop.permute.xlu0 %1098
    %1100 = vrot.lane.b32.xlu0 %v775, 127
    %v1101 = vpop.permute.xlu0 %1100
    %1102 = vrot.lane.b32.xlu0 %v776, 127
    %v1103 = vpop.permute.xlu0 %1102
    %1104 = vrot.lane.b32.xlu0 %v777, 127
    %v1105 = vpop.permute.xlu0 %1104
    %1106 = vrot.lane.b32.xlu0 %v778, 127
    %v1107 = vpop.permute.xlu0 %1106
    %1108 = vrot.lane.b32.xlu0 %v779, 127
    %v1109 = vpop.permute.xlu0 %1108
    %1110 = vrot.lane.b32.xlu0 %v780, 127
    %v1111 = vpop.permute.xlu0 %1110
    %1112 = vrot.lane.b32.xlu0 %v781, 127
    %v1113 = vpop.permute.xlu0 %1112
    %1114 = vrot.lane.b32.xlu0 %v782, 127
    %v1115 = vpop.permute.xlu0 %1114
    %1116 = vrot.lane.b32.xlu0 %v783, 127
    %v1117 = vpop.permute.xlu0 %1116
    %1118 = vrot.lane.b32.xlu0 %v784, 127
    %v1119 = vpop.permute.xlu0 %1118
    %1120 = vrot.lane.b32.xlu0 %v785, 127
    %v1121 = vpop.permute.xlu0 %1120
    %1122 = vrot.lane.b32.xlu0 %v786, 127
    %v1123 = vpop.permute.xlu0 %1122
    %1124 = vrot.lane.b32.xlu0 %v787, 127
    %v1125 = vpop.permute.xlu0 %1124
    %1126 = vrot.lane.b32.xlu0 %v788, 127
    %v1127 = vpop.permute.xlu0 %1126
    %1128 = vrot.lane.b32.xlu0 %v789, 127
    %v1129 = vpop.permute.xlu0 %1128
    %1130 = vrot.lane.b32.xlu0 %v790, 127
    %v1131 = vpop.permute.xlu0 %1130
    %1132 = vrot.lane.b32.xlu0 %v791, 127
    %v1133 = vpop.permute.xlu0 %1132
    %1134 = vrot.lane.b32.xlu0 %v792, 127
    %v1135 = vpop.permute.xlu0 %1134
    %1136 = vrot.lane.b32.xlu0 %v793, 127
    %v1137 = vpop.permute.xlu0 %1136
    %1138 = vrot.lane.b32.xlu0 %v794, 127
    %v1139 = vpop.permute.xlu0 %1138
    %1140 = vrot.lane.b32.xlu0 %v795, 127
    %v1141 = vpop.permute.xlu0 %1140
    %1142 = vrot.lane.b32.xlu0 %v796, 127
    %v1143 = vpop.permute.xlu0 %1142
    %1144 = vrot.lane.b32.xlu0 %v797, 127
    %v1145 = vpop.permute.xlu0 %1144
    %1146 = vrot.lane.b32.xlu0 %v798, 127
    %v1147 = vpop.permute.xlu0 %1146
    %1148 = vrot.lane.b32.xlu0 %v799, 127
    %v1149 = vpop.permute.xlu0 %1148
    %1150 = vrot.lane.b32.xlu0 %v800, 127
    %v1151 = vpop.permute.xlu0 %1150
    %1152 = vrot.lane.b32.xlu0 %v801, 127
    %v1153 = vpop.permute.xlu0 %1152
    %1154 = vrot.lane.b32.xlu0 %v802, 127
    %v1155 = vpop.permute.xlu0 %1154
    %1156 = vrot.lane.b32.xlu0 %v803, 127
    %v1157 = vpop.permute.xlu0 %1156
    %1158 = vrot.lane.b32.xlu0 %v804, 127
    %v1159 = vpop.permute.xlu0 %1158
    %1160 = vrot.lane.b32.xlu0 %v805, 127
    %v1161 = vpop.permute.xlu0 %1160
    %1162 = vrot.lane.b32.xlu0 %v806, 127
    %v1163 = vpop.permute.xlu0 %1162
    %1164 = vrot.lane.b32.xlu0 %v807, 127
    %v1165 = vpop.permute.xlu0 %1164
    %1166 = vrot.lane.b32.xlu0 %v808, 127
    %v1167 = vpop.permute.xlu0 %1166
    %1168 = vrot.lane.b32.xlu0 %v809, 127
    %v1169 = vpop.permute.xlu0 %1168
    %1170 = vrot.lane.b32.xlu0 %v810, 127
    %v1171 = vpop.permute.xlu0 %1170
    %1172 = vrot.lane.b32.xlu0 %v811, 127
    %v1173 = vpop.permute.xlu0 %1172
    %1174 = vrot.lane.b32.xlu0 %v812, 127
    %v1175 = vpop.permute.xlu0 %1174
    %1176 = vrot.lane.b32.xlu0 %v813, 127
    %v1177 = vpop.permute.xlu0 %1176
    %1178 = vrot.lane.b32.xlu0 %v814, 127
    %v1179 = vpop.permute.xlu0 %1178
    %1180 = vrot.lane.b32.xlu0 %v815, 127
    %v1181 = vpop.permute.xlu0 %1180
    %1182 = vrot.lane.b32.xlu0 %v816, 127
    %v1183 = vpop.permute.xlu0 %1182
    %1184 = vrot.lane.b32.xlu0 %v817, 127
    %v1185 = vpop.permute.xlu0 %1184
    %1186 = vrot.lane.b32.xlu0 %v818, 127
    %v1187 = vpop.permute.xlu0 %1186
    %1188 = vrot.lane.b32.xlu0 %v819, 127
    %v1189 = vpop.permute.xlu0 %1188
    %1190 = vrot.lane.b32.xlu0 %v820, 127
    %v1191 = vpop.permute.xlu0 %1190
    %1192 = vrot.lane.b32.xlu0 %v821, 127
    %v1193 = vpop.permute.xlu0 %1192
    %1194 = vrot.lane.b32.xlu0 %v822, 127
    %v1195 = vpop.permute.xlu0 %1194
    %1196 = vrot.lane.b32.xlu0 %v823, 127
    %v1197 = vpop.permute.xlu0 %1196
    %1198 = vrot.lane.b32.xlu0 %v824, 127
    %v1199 = vpop.permute.xlu0 %1198
    %1200 = vrot.lane.b32.xlu0 %v825, 127
    %v1201 = vpop.permute.xlu0 %1200
    %1202 = vrot.lane.b32.xlu0 %v826, 127
    %v1203 = vpop.permute.xlu0 %1202
    %1204 = vrot.lane.b32.xlu0 %v827, 127
    %v1205 = vpop.permute.xlu0 %1204
    %1206 = vrot.lane.b32.xlu0 %v828, 127
    %v1207 = vpop.permute.xlu0 %1206
    %1208 = vrot.lane.b32.xlu0 %v829, 127
    %v1209 = vpop.permute.xlu0 %1208
    %1210 = vrot.lane.b32.xlu0 %v830, 127
    %v1211 = vpop.permute.xlu0 %1210
    %1212 = vrot.lane.b32.xlu0 %v831, 127
    %v1213 = vpop.permute.xlu0 %1212
    %1214 = vrot.lane.b32.xlu0 %v832, 127
    %v1215 = vpop.permute.xlu0 %1214
    %1216 = vrot.lane.b32.xlu0 %v833, 127
    %v1217 = vpop.permute.xlu0 %1216
    %vm1218 = vcmp.lt.s32.totalorder %v57, 127
    %v1219 = vsel %vm1218, %v1215, %v1217
    %v1220 = vsel %vm1218, %v1213, %v1215
    %v1221 = vsel %vm1218, %v1211, %v1213
    %v1222 = vsel %vm1218, %v1209, %v1211
    %v1223 = vsel %vm1218, %v1207, %v1209
    %v1224 = vsel %vm1218, %v1205, %v1207
    %v1225 = vsel %vm1218, %v1203, %v1205
    %v1226 = vsel %vm1218, %v1201, %v1203
    %v1227 = vsel %vm1218, %v1199, %v1201
    %v1228 = vsel %vm1218, %v1197, %v1199
    %v1229 = vsel %vm1218, %v1195, %v1197
    %v1230 = vsel %vm1218, %v1193, %v1195
    %v1231 = vsel %vm1218, %v1191, %v1193
    %v1232 = vsel %vm1218, %v1189, %v1191
    %v1233 = vsel %vm1218, %v1187, %v1189
    %v1234 = vsel %vm1218, %v1185, %v1187
    %v1235 = vsel %vm1218, %v1183, %v1185
    %v1236 = vsel %vm1218, %v1181, %v1183
    %v1237 = vsel %vm1218, %v1179, %v1181
    %v1238 = vsel %vm1218, %v1177, %v1179
    %v1239 = vsel %vm1218, %v1175, %v1177
    %v1240 = vsel %vm1218, %v1173, %v1175
    %v1241 = vsel %vm1218, %v1171, %v1173
    %v1242 = vsel %vm1218, %v1169, %v1171
    %v1243 = vsel %vm1218, %v1167, %v1169
    %v1244 = vsel %vm1218, %v1165, %v1167
    %v1245 = vsel %vm1218, %v1163, %v1165
    %v1246 = vsel %vm1218, %v1161, %v1163
    %v1247 = vsel %vm1218, %v1159, %v1161
    %v1248 = vsel %vm1218, %v1157, %v1159
    %v1249 = vsel %vm1218, %v1155, %v1157
    %v1250 = vsel %vm1218, %v1153, %v1155
    %v1251 = vsel %vm1218, %v1151, %v1153
    %v1252 = vsel %vm1218, %v1149, %v1151
    %v1253 = vsel %vm1218, %v1147, %v1149
    %v1254 = vsel %vm1218, %v1145, %v1147
    %v1255 = vsel %vm1218, %v1143, %v1145
    %v1256 = vsel %vm1218, %v1141, %v1143
    %v1257 = vsel %vm1218, %v1139, %v1141
    %v1258 = vsel %vm1218, %v1137, %v1139
    %v1259 = vsel %vm1218, %v1135, %v1137
    %v1260 = vsel %vm1218, %v1133, %v1135
    %v1261 = vsel %vm1218, %v1131, %v1133
    %v1262 = vsel %vm1218, %v1129, %v1131
    %v1263 = vsel %vm1218, %v1127, %v1129
    %v1264 = vsel %vm1218, %v1125, %v1127
    %v1265 = vsel %vm1218, %v1123, %v1125
    %v1266 = vsel %vm1218, %v1121, %v1123
    %v1267 = vsel %vm1218, %v1119, %v1121
    %v1268 = vsel %vm1218, %v1117, %v1119
    %v1269 = vsel %vm1218, %v1115, %v1117
    %v1270 = vsel %vm1218, %v1113, %v1115
    %v1271 = vsel %vm1218, %v1111, %v1113
    %v1272 = vsel %vm1218, %v1109, %v1111
    %v1273 = vsel %vm1218, %v1107, %v1109
    %v1274 = vsel %vm1218, %v1105, %v1107
    %v1275 = vsel %vm1218, %v1103, %v1105
    %v1276 = vsel %vm1218, %v1101, %v1103
    %v1277 = vsel %vm1218, %v1099, %v1101
    %v1278 = vsel %vm1218, %v1097, %v1099
    %v1279 = vsel %vm1218, %v1095, %v1097
    %v1280 = vsel %vm1218, %v1093, %v1095
    %v1281 = vsel %vm1218, %v1091, %v1093
    %v1282 = vsel %vm1218, %v1217, %v1091
    %v1283 = vsel %vm698, %v1089, %v1281
    %v1284 = vsel %vm699, %v1088, %v1280
    %v1285 = vsel %vm700, %v1087, %v1279
    %v1286 = vsel %vm701, %v1086, %v1278
    %v1287 = vsel %vm702, %v1085, %v1277
    %v1288 = vsel %vm703, %v1084, %v1276
    %v1289 = vsel %vm704, %v1083, %v1275
    %v1290 = vsel %vm705, %v1082, %v1274
    %v1291 = vsel %vm706, %v1081, %v1273
    %v1292 = vsel %vm707, %v1080, %v1272
    %v1293 = vsel %vm708, %v1079, %v1271
    %v1294 = vsel %vm709, %v1078, %v1270
    %v1295 = vsel %vm710, %v1077, %v1269
    %v1296 = vsel %vm711, %v1076, %v1268
    %v1297 = vsel %vm712, %v1075, %v1267
    %v1298 = vsel %vm713, %v1074, %v1266
    %v1299 = vsel %vm714, %v1073, %v1265
    %v1300 = vsel %vm715, %v1072, %v1264
    %v1301 = vsel %vm716, %v1071, %v1263
    %v1302 = vsel %vm717, %v1070, %v1262
    %v1303 = vsel %vm718, %v1069, %v1261
    %v1304 = vsel %vm719, %v1068, %v1260
    %v1305 = vsel %vm720, %v1067, %v1259
    %v1306 = vsel %vm721, %v1066, %v1258
    %v1307 = vsel %vm722, %v1065, %v1257
    %v1308 = vsel %vm723, %v1064, %v1256
    %v1309 = vsel %vm724, %v1063, %v1255
    %v1310 = vsel %vm725, %v1062, %v1254
    %v1311 = vsel %vm726, %v1061, %v1253
    %v1312 = vsel %vm727, %v1060, %v1252
    %v1313 = vsel %vm728, %v1059, %v1251
    %v1314 = vsel %vm729, %v1058, %v1250
    %v1315 = vsel %vm730, %v1057, %v1249
    %v1316 = vsel %vm731, %v1056, %v1248
    %v1317 = vsel %vm732, %v1055, %v1247
    %v1318 = vsel %vm733, %v1054, %v1246
    %v1319 = vsel %vm734, %v1053, %v1245
    %v1320 = vsel %vm735, %v1052, %v1244
    %v1321 = vsel %vm736, %v1051, %v1243
    %v1322 = vsel %vm737, %v1050, %v1242
    %v1323 = vsel %vm738, %v1049, %v1241
    %v1324 = vsel %vm739, %v1048, %v1240
    %v1325 = vsel %vm740, %v1047, %v1239
    %v1326 = vsel %vm741, %v1046, %v1238
    %v1327 = vsel %vm742, %v1045, %v1237
    %v1328 = vsel %vm743, %v1044, %v1236
    %v1329 = vsel %vm744, %v1043, %v1235
    %v1330 = vsel %vm745, %v1042, %v1234
    %v1331 = vsel %vm746, %v1041, %v1233
    %v1332 = vsel %vm747, %v1040, %v1232
    %v1333 = vsel %vm748, %v1039, %v1231
    %v1334 = vsel %vm749, %v1038, %v1230
    %v1335 = vsel %vm750, %v1037, %v1229
    %v1336 = vsel %vm751, %v1036, %v1228
    %v1337 = vsel %vm752, %v1035, %v1227
    %v1338 = vsel %vm753, %v1034, %v1226
    %v1339 = vsel %vm754, %v1033, %v1225
    %v1340 = vsel %vm755, %v1032, %v1224
    %v1341 = vsel %vm756, %v1031, %v1223
    %v1342 = vsel %vm757, %v1030, %v1222
    %v1343 = vsel %vm758, %v1029, %v1221
    %v1344 = vsel %vm759, %v1028, %v1220
    %v1345 = vsel %vm760, %v1027, %v1219
    %v1346 = vsel %vm761, %v1026, %v1282
    %v1347 = vsel %vm698, %v1281, %v1089
    %v1348 = vsel %vm699, %v1280, %v1088
    %v1349 = vsel %vm700, %v1279, %v1087
    %v1350 = vsel %vm701, %v1278, %v1086
    %v1351 = vsel %vm702, %v1277, %v1085
    %v1352 = vsel %vm703, %v1276, %v1084
    %v1353 = vsel %vm704, %v1275, %v1083
    %v1354 = vsel %vm705, %v1274, %v1082
    %v1355 = vsel %vm706, %v1273, %v1081
    %v1356 = vsel %vm707, %v1272, %v1080
    %v1357 = vsel %vm708, %v1271, %v1079
    %v1358 = vsel %vm709, %v1270, %v1078
    %v1359 = vsel %vm710, %v1269, %v1077
    %v1360 = vsel %vm711, %v1268, %v1076
    %v1361 = vsel %vm712, %v1267, %v1075
    %v1362 = vsel %vm713, %v1266, %v1074
    %v1363 = vsel %vm714, %v1265, %v1073
    %v1364 = vsel %vm715, %v1264, %v1072
    %v1365 = vsel %vm716, %v1263, %v1071
    %v1366 = vsel %vm717, %v1262, %v1070
    %v1367 = vsel %vm718, %v1261, %v1069
    %v1368 = vsel %vm719, %v1260, %v1068
    %v1369 = vsel %vm720, %v1259, %v1067
    %v1370 = vsel %vm721, %v1258, %v1066
    %v1371 = vsel %vm722, %v1257, %v1065
    %v1372 = vsel %vm723, %v1256, %v1064
    %v1373 = vsel %vm724, %v1255, %v1063
    %v1374 = vsel %vm725, %v1254, %v1062
    %v1375 = vsel %vm726, %v1253, %v1061
    %v1376 = vsel %vm727, %v1252, %v1060
    %v1377 = vsel %vm728, %v1251, %v1059
    %v1378 = vsel %vm729, %v1250, %v1058
    %v1379 = vsel %vm730, %v1249, %v1057
    %v1380 = vsel %vm731, %v1248, %v1056
    %v1381 = vsel %vm732, %v1247, %v1055
    %v1382 = vsel %vm733, %v1246, %v1054
    %v1383 = vsel %vm734, %v1245, %v1053
    %v1384 = vsel %vm735, %v1244, %v1052
    %v1385 = vsel %vm736, %v1243, %v1051
    %v1386 = vsel %vm737, %v1242, %v1050
    %v1387 = vsel %vm738, %v1241, %v1049
    %v1388 = vsel %vm739, %v1240, %v1048
    %v1389 = vsel %vm740, %v1239, %v1047
    %v1390 = vsel %vm741, %v1238, %v1046
    %v1391 = vsel %vm742, %v1237, %v1045
    %v1392 = vsel %vm743, %v1236, %v1044
    %v1393 = vsel %vm744, %v1235, %v1043
    %v1394 = vsel %vm745, %v1234, %v1042
    %v1395 = vsel %vm746, %v1233, %v1041
    %v1396 = vsel %vm747, %v1232, %v1040
    %v1397 = vsel %vm748, %v1231, %v1039
    %v1398 = vsel %vm749, %v1230, %v1038
    %v1399 = vsel %vm750, %v1229, %v1037
    %v1400 = vsel %vm751, %v1228, %v1036
    %v1401 = vsel %vm752, %v1227, %v1035
    %v1402 = vsel %vm753, %v1226, %v1034
    %v1403 = vsel %vm754, %v1225, %v1033
    %v1404 = vsel %vm755, %v1224, %v1032
    %v1405 = vsel %vm756, %v1223, %v1031
    %v1406 = vsel %vm757, %v1222, %v1030
    %v1407 = vsel %vm758, %v1221, %v1029
    %v1408 = vsel %vm759, %v1220, %v1028
    %v1409 = vsel %vm760, %v1219, %v1027
    %v1410 = vsel %vm761, %v1282, %v1026
    %v1419 = vperm.slane %v40, 0
    %v1420 = vperm.slane %v40, 1
    %v1421 = vperm.slane %v40, 2
    %v1422 = vperm.slane %v40, 3
    %v1423 = vperm.slane %v40, 4
    %v1424 = vperm.slane %v40, 5
    %v1425 = vperm.slane %v40, 6
    %v1426 = vperm.slane %v40, 7
    %v1427 = vperm.slane %v41, 0
    %v1428 = vperm.slane %v41, 1
    %v1429 = vperm.slane %v41, 2
    %v1430 = vperm.slane %v41, 3
    %v1431 = vperm.slane %v41, 4
    %v1432 = vperm.slane %v41, 5
    %v1433 = vperm.slane %v41, 6
    %v1434 = vperm.slane %v41, 7
    %v1435 = vperm.slane %v42, 0
    %v1436 = vperm.slane %v42, 1
    %v1437 = vperm.slane %v42, 2
    %v1438 = vperm.slane %v42, 3
    %v1439 = vperm.slane %v42, 4
    %v1440 = vperm.slane %v42, 5
    %v1441 = vperm.slane %v42, 6
    %v1442 = vperm.slane %v42, 7
    %v1443 = vperm.slane %v43, 0
    %v1444 = vperm.slane %v43, 1
    %v1445 = vperm.slane %v43, 2
    %v1446 = vperm.slane %v43, 3
    %v1447 = vperm.slane %v43, 4
    %v1448 = vperm.slane %v43, 5
    %v1449 = vperm.slane %v43, 6
    %v1450 = vperm.slane %v43, 7
    %v1451 = vperm.slane %v44, 0
    %v1452 = vperm.slane %v44, 1
    %v1453 = vperm.slane %v44, 2
    %v1454 = vperm.slane %v44, 3
    %v1455 = vperm.slane %v44, 4
    %v1456 = vperm.slane %v44, 5
    %v1457 = vperm.slane %v44, 6
    %v1458 = vperm.slane %v44, 7
    %v1459 = vperm.slane %v45, 0
    %v1460 = vperm.slane %v45, 1
    %v1461 = vperm.slane %v45, 2
    %v1462 = vperm.slane %v45, 3
    %v1463 = vperm.slane %v45, 4
    %v1464 = vperm.slane %v45, 5
    %v1465 = vperm.slane %v45, 6
    %v1466 = vperm.slane %v45, 7
    %v1467 = vperm.slane %v46, 0
    %v1468 = vperm.slane %v46, 1
    %v1469 = vperm.slane %v46, 2
    %v1470 = vperm.slane %v46, 3
    %v1471 = vperm.slane %v46, 4
    %v1472 = vperm.slane %v46, 5
    %v1473 = vperm.slane %v46, 6
    %v1474 = vperm.slane %v46, 7
    %v1475 = vperm.slane %v47, 0
    %v1476 = vperm.slane %v47, 1
    %v1477 = vperm.slane %v47, 2
    %v1478 = vperm.slane %v47, 3
    %v1479 = vperm.slane %v47, 4
    %v1480 = vperm.slane %v47, 5
    %v1481 = vperm.slane %v47, 6
    %v1482 = vperm.slane %v47, 7
    %1547 = vrot.lane.b32.xlu0 %v1419, 1
    %v1548 = vpop.permute.xlu0 %1547
    %1549 = vrot.lane.b32.xlu0 %v1420, 1
    %v1550 = vpop.permute.xlu0 %1549
    %1551 = vrot.lane.b32.xlu0 %v1421, 1
    %v1552 = vpop.permute.xlu0 %1551
    %1553 = vrot.lane.b32.xlu0 %v1422, 1
    %v1554 = vpop.permute.xlu0 %1553
    %1555 = vrot.lane.b32.xlu0 %v1423, 1
    %v1556 = vpop.permute.xlu0 %1555
    %1557 = vrot.lane.b32.xlu0 %v1424, 1
    %v1558 = vpop.permute.xlu0 %1557
    %1559 = vrot.lane.b32.xlu0 %v1425, 1
    %v1560 = vpop.permute.xlu0 %1559
    %1561 = vrot.lane.b32.xlu0 %v1426, 1
    %v1562 = vpop.permute.xlu0 %1561
    %1563 = vrot.lane.b32.xlu0 %v1427, 1
    %v1564 = vpop.permute.xlu0 %1563
    %1565 = vrot.lane.b32.xlu0 %v1428, 1
    %v1566 = vpop.permute.xlu0 %1565
    %1567 = vrot.lane.b32.xlu0 %v1429, 1
    %v1568 = vpop.permute.xlu0 %1567
    %1569 = vrot.lane.b32.xlu0 %v1430, 1
    %v1570 = vpop.permute.xlu0 %1569
    %1571 = vrot.lane.b32.xlu0 %v1431, 1
    %v1572 = vpop.permute.xlu0 %1571
    %1573 = vrot.lane.b32.xlu0 %v1432, 1
    %v1574 = vpop.permute.xlu0 %1573
    %1575 = vrot.lane.b32.xlu0 %v1433, 1
    %v1576 = vpop.permute.xlu0 %1575
    %1577 = vrot.lane.b32.xlu0 %v1434, 1
    %v1578 = vpop.permute.xlu0 %1577
    %1579 = vrot.lane.b32.xlu0 %v1435, 1
    %v1580 = vpop.permute.xlu0 %1579
    %1581 = vrot.lane.b32.xlu0 %v1436, 1
    %v1582 = vpop.permute.xlu0 %1581
    %1583 = vrot.lane.b32.xlu0 %v1437, 1
    %v1584 = vpop.permute.xlu0 %1583
    %1585 = vrot.lane.b32.xlu0 %v1438, 1
    %v1586 = vpop.permute.xlu0 %1585
    %1587 = vrot.lane.b32.xlu0 %v1439, 1
    %v1588 = vpop.permute.xlu0 %1587
    %1589 = vrot.lane.b32.xlu0 %v1440, 1
    %v1590 = vpop.permute.xlu0 %1589
    %1591 = vrot.lane.b32.xlu0 %v1441, 1
    %v1592 = vpop.permute.xlu0 %1591
    %1593 = vrot.lane.b32.xlu0 %v1442, 1
    %v1594 = vpop.permute.xlu0 %1593
    %1595 = vrot.lane.b32.xlu0 %v1443, 1
    %v1596 = vpop.permute.xlu0 %1595
    %1597 = vrot.lane.b32.xlu0 %v1444, 1
    %v1598 = vpop.permute.xlu0 %1597
    %1599 = vrot.lane.b32.xlu0 %v1445, 1
    %v1600 = vpop.permute.xlu0 %1599
    %1601 = vrot.lane.b32.xlu0 %v1446, 1
    %v1602 = vpop.permute.xlu0 %1601
    %1603 = vrot.lane.b32.xlu0 %v1447, 1
    %v1604 = vpop.permute.xlu0 %1603
    %1605 = vrot.lane.b32.xlu0 %v1448, 1
    %v1606 = vpop.permute.xlu0 %1605
    %1607 = vrot.lane.b32.xlu0 %v1449, 1
    %v1608 = vpop.permute.xlu0 %1607
    %1609 = vrot.lane.b32.xlu0 %v1450, 1
    %v1610 = vpop.permute.xlu0 %1609
    %1611 = vrot.lane.b32.xlu0 %v1451, 1
    %v1612 = vpop.permute.xlu0 %1611
    %1613 = vrot.lane.b32.xlu0 %v1452, 1
    %v1614 = vpop.permute.xlu0 %1613
    %1615 = vrot.lane.b32.xlu0 %v1453, 1
    %v1616 = vpop.permute.xlu0 %1615
    %1617 = vrot.lane.b32.xlu0 %v1454, 1
    %v1618 = vpop.permute.xlu0 %1617
    %1619 = vrot.lane.b32.xlu0 %v1455, 1
    %v1620 = vpop.permute.xlu0 %1619
    %1621 = vrot.lane.b32.xlu0 %v1456, 1
    %v1622 = vpop.permute.xlu0 %1621
    %1623 = vrot.lane.b32.xlu0 %v1457, 1
    %v1624 = vpop.permute.xlu0 %1623
    %1625 = vrot.lane.b32.xlu0 %v1458, 1
    %v1626 = vpop.permute.xlu0 %1625
    %1627 = vrot.lane.b32.xlu0 %v1459, 1
    %v1628 = vpop.permute.xlu0 %1627
    %1629 = vrot.lane.b32.xlu0 %v1460, 1
    %v1630 = vpop.permute.xlu0 %1629
    %1631 = vrot.lane.b32.xlu0 %v1461, 1
    %v1632 = vpop.permute.xlu0 %1631
    %1633 = vrot.lane.b32.xlu0 %v1462, 1
    %v1634 = vpop.permute.xlu0 %1633
    %1635 = vrot.lane.b32.xlu0 %v1463, 1
    %v1636 = vpop.permute.xlu0 %1635
    %1637 = vrot.lane.b32.xlu0 %v1464, 1
    %v1638 = vpop.permute.xlu0 %1637
    %1639 = vrot.lane.b32.xlu0 %v1465, 1
    %v1640 = vpop.permute.xlu0 %1639
    %1641 = vrot.lane.b32.xlu0 %v1466, 1
    %v1642 = vpop.permute.xlu0 %1641
    %1643 = vrot.lane.b32.xlu0 %v1467, 1
    %v1644 = vpop.permute.xlu0 %1643
    %1645 = vrot.lane.b32.xlu0 %v1468, 1
    %v1646 = vpop.permute.xlu0 %1645
    %1647 = vrot.lane.b32.xlu0 %v1469, 1
    %v1648 = vpop.permute.xlu0 %1647
    %1649 = vrot.lane.b32.xlu0 %v1470, 1
    %v1650 = vpop.permute.xlu0 %1649
    %1651 = vrot.lane.b32.xlu0 %v1471, 1
    %v1652 = vpop.permute.xlu0 %1651
    %1653 = vrot.lane.b32.xlu0 %v1472, 1
    %v1654 = vpop.permute.xlu0 %1653
    %1655 = vrot.lane.b32.xlu0 %v1473, 1
    %v1656 = vpop.permute.xlu0 %1655
    %1657 = vrot.lane.b32.xlu0 %v1474, 1
    %v1658 = vpop.permute.xlu0 %1657
    %1659 = vrot.lane.b32.xlu0 %v1475, 1
    %v1660 = vpop.permute.xlu0 %1659
    %1661 = vrot.lane.b32.xlu0 %v1476, 1
    %v1662 = vpop.permute.xlu0 %1661
    %1663 = vrot.lane.b32.xlu0 %v1477, 1
    %v1664 = vpop.permute.xlu0 %1663
    %1665 = vrot.lane.b32.xlu0 %v1478, 1
    %v1666 = vpop.permute.xlu0 %1665
    %1667 = vrot.lane.b32.xlu0 %v1479, 1
    %v1668 = vpop.permute.xlu0 %1667
    %1669 = vrot.lane.b32.xlu0 %v1480, 1
    %v1670 = vpop.permute.xlu0 %1669
    %1671 = vrot.lane.b32.xlu0 %v1481, 1
    %v1672 = vpop.permute.xlu0 %1671
    %1673 = vrot.lane.b32.xlu0 %v1482, 1
    %v1674 = vpop.permute.xlu0 %1673
    %v1675 = vsel %vm441, %v1672, %v1674
    %v1676 = vsel %vm441, %v1670, %v1672
    %v1677 = vsel %vm441, %v1668, %v1670
    %v1678 = vsel %vm441, %v1666, %v1668
    %v1679 = vsel %vm441, %v1664, %v1666
    %v1680 = vsel %vm441, %v1662, %v1664
    %v1681 = vsel %vm441, %v1660, %v1662
    %v1682 = vsel %vm441, %v1658, %v1660
    %v1683 = vsel %vm441, %v1656, %v1658
    %v1684 = vsel %vm441, %v1654, %v1656
    %v1685 = vsel %vm441, %v1652, %v1654
    %v1686 = vsel %vm441, %v1650, %v1652
    %v1687 = vsel %vm441, %v1648, %v1650
    %v1688 = vsel %vm441, %v1646, %v1648
    %v1689 = vsel %vm441, %v1644, %v1646
    %v1690 = vsel %vm441, %v1642, %v1644
    %v1691 = vsel %vm441, %v1640, %v1642
    %v1692 = vsel %vm441, %v1638, %v1640
    %v1693 = vsel %vm441, %v1636, %v1638
    %v1694 = vsel %vm441, %v1634, %v1636
    %v1695 = vsel %vm441, %v1632, %v1634
    %v1696 = vsel %vm441, %v1630, %v1632
    %v1697 = vsel %vm441, %v1628, %v1630
    %v1698 = vsel %vm441, %v1626, %v1628
    %v1699 = vsel %vm441, %v1624, %v1626
    %v1700 = vsel %vm441, %v1622, %v1624
    %v1701 = vsel %vm441, %v1620, %v1622
    %v1702 = vsel %vm441, %v1618, %v1620
    %v1703 = vsel %vm441, %v1616, %v1618
    %v1704 = vsel %vm441, %v1614, %v1616
    %v1705 = vsel %vm441, %v1612, %v1614
    %v1706 = vsel %vm441, %v1610, %v1612
    %v1707 = vsel %vm441, %v1608, %v1610
    %v1708 = vsel %vm441, %v1606, %v1608
    %v1709 = vsel %vm441, %v1604, %v1606
    %v1710 = vsel %vm441, %v1602, %v1604
    %v1711 = vsel %vm441, %v1600, %v1602
    %v1712 = vsel %vm441, %v1598, %v1600
    %v1713 = vsel %vm441, %v1596, %v1598
    %v1714 = vsel %vm441, %v1594, %v1596
    %v1715 = vsel %vm441, %v1592, %v1594
    %v1716 = vsel %vm441, %v1590, %v1592
    %v1717 = vsel %vm441, %v1588, %v1590
    %v1718 = vsel %vm441, %v1586, %v1588
    %v1719 = vsel %vm441, %v1584, %v1586
    %v1720 = vsel %vm441, %v1582, %v1584
    %v1721 = vsel %vm441, %v1580, %v1582
    %v1722 = vsel %vm441, %v1578, %v1580
    %v1723 = vsel %vm441, %v1576, %v1578
    %v1724 = vsel %vm441, %v1574, %v1576
    %v1725 = vsel %vm441, %v1572, %v1574
    %v1726 = vsel %vm441, %v1570, %v1572
    %v1727 = vsel %vm441, %v1568, %v1570
    %v1728 = vsel %vm441, %v1566, %v1568
    %v1729 = vsel %vm441, %v1564, %v1566
    %v1730 = vsel %vm441, %v1562, %v1564
    %v1731 = vsel %vm441, %v1560, %v1562
    %v1732 = vsel %vm441, %v1558, %v1560
    %v1733 = vsel %vm441, %v1556, %v1558
    %v1734 = vsel %vm441, %v1554, %v1556
    %v1735 = vsel %vm441, %v1552, %v1554
    %v1736 = vsel %vm441, %v1550, %v1552
    %v1737 = vsel %vm441, %v1548, %v1550
    %v1738 = vsel %vm441, %v1674, %v1548
    %1739 = vrot.lane.b32.xlu0 %v1419, 127
    %v1740 = vpop.permute.xlu0 %1739
    %1741 = vrot.lane.b32.xlu0 %v1420, 127
    %v1742 = vpop.permute.xlu0 %1741
    %1743 = vrot.lane.b32.xlu0 %v1421, 127
    %v1744 = vpop.permute.xlu0 %1743
    %1745 = vrot.lane.b32.xlu0 %v1422, 127
    %v1746 = vpop.permute.xlu0 %1745
    %1747 = vrot.lane.b32.xlu0 %v1423, 127
    %v1748 = vpop.permute.xlu0 %1747
    %1749 = vrot.lane.b32.xlu0 %v1424, 127
    %v1750 = vpop.permute.xlu0 %1749
    %1751 = vrot.lane.b32.xlu0 %v1425, 127
    %v1752 = vpop.permute.xlu0 %1751
    %1753 = vrot.lane.b32.xlu0 %v1426, 127
    %v1754 = vpop.permute.xlu0 %1753
    %1755 = vrot.lane.b32.xlu0 %v1427, 127
    %v1756 = vpop.permute.xlu0 %1755
    %1757 = vrot.lane.b32.xlu0 %v1428, 127
    %v1758 = vpop.permute.xlu0 %1757
    %1759 = vrot.lane.b32.xlu0 %v1429, 127
    %v1760 = vpop.permute.xlu0 %1759
    %1761 = vrot.lane.b32.xlu0 %v1430, 127
    %v1762 = vpop.permute.xlu0 %1761
    %1763 = vrot.lane.b32.xlu0 %v1431, 127
    %v1764 = vpop.permute.xlu0 %1763
    %1765 = vrot.lane.b32.xlu0 %v1432, 127
    %v1766 = vpop.permute.xlu0 %1765
    %1767 = vrot.lane.b32.xlu0 %v1433, 127
    %v1768 = vpop.permute.xlu0 %1767
    %1769 = vrot.lane.b32.xlu0 %v1434, 127
    %v1770 = vpop.permute.xlu0 %1769
    %1771 = vrot.lane.b32.xlu0 %v1435, 127
    %v1772 = vpop.permute.xlu0 %1771
    %1773 = vrot.lane.b32.xlu0 %v1436, 127
    %v1774 = vpop.permute.xlu0 %1773
    %1775 = vrot.lane.b32.xlu0 %v1437, 127
    %v1776 = vpop.permute.xlu0 %1775
    %1777 = vrot.lane.b32.xlu0 %v1438, 127
    %v1778 = vpop.permute.xlu0 %1777
    %1779 = vrot.lane.b32.xlu0 %v1439, 127
    %v1780 = vpop.permute.xlu0 %1779
    %1781 = vrot.lane.b32.xlu0 %v1440, 127
    %v1782 = vpop.permute.xlu0 %1781
    %1783 = vrot.lane.b32.xlu0 %v1441, 127
    %v1784 = vpop.permute.xlu0 %1783
    %1785 = vrot.lane.b32.xlu0 %v1442, 127
    %v1786 = vpop.permute.xlu0 %1785
    %1787 = vrot.lane.b32.xlu0 %v1443, 127
    %v1788 = vpop.permute.xlu0 %1787
    %1789 = vrot.lane.b32.xlu0 %v1444, 127
    %v1790 = vpop.permute.xlu0 %1789
    %1791 = vrot.lane.b32.xlu0 %v1445, 127
    %v1792 = vpop.permute.xlu0 %1791
    %1793 = vrot.lane.b32.xlu0 %v1446, 127
    %v1794 = vpop.permute.xlu0 %1793
    %1795 = vrot.lane.b32.xlu0 %v1447, 127
    %v1796 = vpop.permute.xlu0 %1795
    %1797 = vrot.lane.b32.xlu0 %v1448, 127
    %v1798 = vpop.permute.xlu0 %1797
    %1799 = vrot.lane.b32.xlu0 %v1449, 127
    %v1800 = vpop.permute.xlu0 %1799
    %1801 = vrot.lane.b32.xlu0 %v1450, 127
    %v1802 = vpop.permute.xlu0 %1801
    %1803 = vrot.lane.b32.xlu0 %v1451, 127
    %v1804 = vpop.permute.xlu0 %1803
    %1805 = vrot.lane.b32.xlu0 %v1452, 127
    %v1806 = vpop.permute.xlu0 %1805
    %1807 = vrot.lane.b32.xlu0 %v1453, 127
    %v1808 = vpop.permute.xlu0 %1807
    %1809 = vrot.lane.b32.xlu0 %v1454, 127
    %v1810 = vpop.permute.xlu0 %1809
    %1811 = vrot.lane.b32.xlu0 %v1455, 127
    %v1812 = vpop.permute.xlu0 %1811
    %1813 = vrot.lane.b32.xlu0 %v1456, 127
    %v1814 = vpop.permute.xlu0 %1813
    %1815 = vrot.lane.b32.xlu0 %v1457, 127
    %v1816 = vpop.permute.xlu0 %1815
    %1817 = vrot.lane.b32.xlu0 %v1458, 127
    %v1818 = vpop.permute.xlu0 %1817
    %1819 = vrot.lane.b32.xlu0 %v1459, 127
    %v1820 = vpop.permute.xlu0 %1819
    %1821 = vrot.lane.b32.xlu0 %v1460, 127
    %v1822 = vpop.permute.xlu0 %1821
    %1823 = vrot.lane.b32.xlu0 %v1461, 127
    %v1824 = vpop.permute.xlu0 %1823
    %1825 = vrot.lane.b32.xlu0 %v1462, 127
    %v1826 = vpop.permute.xlu0 %1825
    %1827 = vrot.lane.b32.xlu0 %v1463, 127
    %v1828 = vpop.permute.xlu0 %1827
    %1829 = vrot.lane.b32.xlu0 %v1464, 127
    %v1830 = vpop.permute.xlu0 %1829
    %1831 = vrot.lane.b32.xlu0 %v1465, 127
    %v1832 = vpop.permute.xlu0 %1831
    %1833 = vrot.lane.b32.xlu0 %v1466, 127
    %v1834 = vpop.permute.xlu0 %1833
    %1835 = vrot.lane.b32.xlu0 %v1467, 127
    %v1836 = vpop.permute.xlu0 %1835
    %1837 = vrot.lane.b32.xlu0 %v1468, 127
    %v1838 = vpop.permute.xlu0 %1837
    %1839 = vrot.lane.b32.xlu0 %v1469, 127
    %v1840 = vpop.permute.xlu0 %1839
    %1841 = vrot.lane.b32.xlu0 %v1470, 127
    %v1842 = vpop.permute.xlu0 %1841
    %1843 = vrot.lane.b32.xlu0 %v1471, 127
    %v1844 = vpop.permute.xlu0 %1843
    %1845 = vrot.lane.b32.xlu0 %v1472, 127
    %v1846 = vpop.permute.xlu0 %1845
    %1847 = vrot.lane.b32.xlu0 %v1473, 127
    %v1848 = vpop.permute.xlu0 %1847
    %1849 = vrot.lane.b32.xlu0 %v1474, 127
    %v1850 = vpop.permute.xlu0 %1849
    %1851 = vrot.lane.b32.xlu0 %v1475, 127
    %v1852 = vpop.permute.xlu0 %1851
    %1853 = vrot.lane.b32.xlu0 %v1476, 127
    %v1854 = vpop.permute.xlu0 %1853
    %1855 = vrot.lane.b32.xlu0 %v1477, 127
    %v1856 = vpop.permute.xlu0 %1855
    %1857 = vrot.lane.b32.xlu0 %v1478, 127
    %v1858 = vpop.permute.xlu0 %1857
    %1859 = vrot.lane.b32.xlu0 %v1479, 127
    %v1860 = vpop.permute.xlu0 %1859
    %1861 = vrot.lane.b32.xlu0 %v1480, 127
    %v1862 = vpop.permute.xlu0 %1861
    %1863 = vrot.lane.b32.xlu0 %v1481, 127
    %v1864 = vpop.permute.xlu0 %1863
    %1865 = vrot.lane.b32.xlu0 %v1482, 127
    %v1866 = vpop.permute.xlu0 %1865
    %v1867 = vsel %vm1218, %v1864, %v1866
    %v1868 = vsel %vm1218, %v1862, %v1864
    %v1869 = vsel %vm1218, %v1860, %v1862
    %v1870 = vsel %vm1218, %v1858, %v1860
    %v1871 = vsel %vm1218, %v1856, %v1858
    %v1872 = vsel %vm1218, %v1854, %v1856
    %v1873 = vsel %vm1218, %v1852, %v1854
    %v1874 = vsel %vm1218, %v1850, %v1852
    %v1875 = vsel %vm1218, %v1848, %v1850
    %v1876 = vsel %vm1218, %v1846, %v1848
    %v1877 = vsel %vm1218, %v1844, %v1846
    %v1878 = vsel %vm1218, %v1842, %v1844
    %v1879 = vsel %vm1218, %v1840, %v1842
    %v1880 = vsel %vm1218, %v1838, %v1840
    %v1881 = vsel %vm1218, %v1836, %v1838
    %v1882 = vsel %vm1218, %v1834, %v1836
    %v1883 = vsel %vm1218, %v1832, %v1834
    %v1884 = vsel %vm1218, %v1830, %v1832
    %v1885 = vsel %vm1218, %v1828, %v1830
    %v1886 = vsel %vm1218, %v1826, %v1828
    %v1887 = vsel %vm1218, %v1824, %v1826
    %v1888 = vsel %vm1218, %v1822, %v1824
    %v1889 = vsel %vm1218, %v1820, %v1822
    %v1890 = vsel %vm1218, %v1818, %v1820
    %v1891 = vsel %vm1218, %v1816, %v1818
    %v1892 = vsel %vm1218, %v1814, %v1816
    %v1893 = vsel %vm1218, %v1812, %v1814
    %v1894 = vsel %vm1218, %v1810, %v1812
    %v1895 = vsel %vm1218, %v1808, %v1810
    %v1896 = vsel %vm1218, %v1806, %v1808
    %v1897 = vsel %vm1218, %v1804, %v1806
    %v1898 = vsel %vm1218, %v1802, %v1804
    %v1899 = vsel %vm1218, %v1800, %v1802
    %v1900 = vsel %vm1218, %v1798, %v1800
    %v1901 = vsel %vm1218, %v1796, %v1798
    %v1902 = vsel %vm1218, %v1794, %v1796
    %v1903 = vsel %vm1218, %v1792, %v1794
    %v1904 = vsel %vm1218, %v1790, %v1792
    %v1905 = vsel %vm1218, %v1788, %v1790
    %v1906 = vsel %vm1218, %v1786, %v1788
    %v1907 = vsel %vm1218, %v1784, %v1786
    %v1908 = vsel %vm1218, %v1782, %v1784
    %v1909 = vsel %vm1218, %v1780, %v1782
    %v1910 = vsel %vm1218, %v1778, %v1780
    %v1911 = vsel %vm1218, %v1776, %v1778
    %v1912 = vsel %vm1218, %v1774, %v1776
    %v1913 = vsel %vm1218, %v1772, %v1774
    %v1914 = vsel %vm1218, %v1770, %v1772
    %v1915 = vsel %vm1218, %v1768, %v1770
    %v1916 = vsel %vm1218, %v1766, %v1768
    %v1917 = vsel %vm1218, %v1764, %v1766
    %v1918 = vsel %vm1218, %v1762, %v1764
    %v1919 = vsel %vm1218, %v1760, %v1762
    %v1920 = vsel %vm1218, %v1758, %v1760
    %v1921 = vsel %vm1218, %v1756, %v1758
    %v1922 = vsel %vm1218, %v1754, %v1756
    %v1923 = vsel %vm1218, %v1752, %v1754
    %v1924 = vsel %vm1218, %v1750, %v1752
    %v1925 = vsel %vm1218, %v1748, %v1750
    %v1926 = vsel %vm1218, %v1746, %v1748
    %v1927 = vsel %vm1218, %v1744, %v1746
    %v1928 = vsel %vm1218, %v1742, %v1744
    %v1929 = vsel %vm1218, %v1740, %v1742
    %v1930 = vsel %vm1218, %v1866, %v1740
    %v1931 = vsel %vm698, %v1738, %v1929
    %v1932 = vsel %vm699, %v1737, %v1928
    %v1933 = vsel %vm700, %v1736, %v1927
    %v1934 = vsel %vm701, %v1735, %v1926
    %v1935 = vsel %vm702, %v1734, %v1925
    %v1936 = vsel %vm703, %v1733, %v1924
    %v1937 = vsel %vm704, %v1732, %v1923
    %v1938 = vsel %vm705, %v1731, %v1922
    %v1939 = vsel %vm706, %v1730, %v1921
    %v1940 = vsel %vm707, %v1729, %v1920
    %v1941 = vsel %vm708, %v1728, %v1919
    %v1942 = vsel %vm709, %v1727, %v1918
    %v1943 = vsel %vm710, %v1726, %v1917
    %v1944 = vsel %vm711, %v1725, %v1916
    %v1945 = vsel %vm712, %v1724, %v1915
    %v1946 = vsel %vm713, %v1723, %v1914
    %v1947 = vsel %vm714, %v1722, %v1913
    %v1948 = vsel %vm715, %v1721, %v1912
    %v1949 = vsel %vm716, %v1720, %v1911
    %v1950 = vsel %vm717, %v1719, %v1910
    %v1951 = vsel %vm718, %v1718, %v1909
    %v1952 = vsel %vm719, %v1717, %v1908
    %v1953 = vsel %vm720, %v1716, %v1907
    %v1954 = vsel %vm721, %v1715, %v1906
    %v1955 = vsel %vm722, %v1714, %v1905
    %v1956 = vsel %vm723, %v1713, %v1904
    %v1957 = vsel %vm724, %v1712, %v1903
    %v1958 = vsel %vm725, %v1711, %v1902
    %v1959 = vsel %vm726, %v1710, %v1901
    %v1960 = vsel %vm727, %v1709, %v1900
    %v1961 = vsel %vm728, %v1708, %v1899
    %v1962 = vsel %vm729, %v1707, %v1898
    %v1963 = vsel %vm730, %v1706, %v1897
    %v1964 = vsel %vm731, %v1705, %v1896
    %v1965 = vsel %vm732, %v1704, %v1895
    %v1966 = vsel %vm733, %v1703, %v1894
    %v1967 = vsel %vm734, %v1702, %v1893
    %v1968 = vsel %vm735, %v1701, %v1892
    %v1969 = vsel %vm736, %v1700, %v1891
    %v1970 = vsel %vm737, %v1699, %v1890
    %v1971 = vsel %vm738, %v1698, %v1889
    %v1972 = vsel %vm739, %v1697, %v1888
    %v1973 = vsel %vm740, %v1696, %v1887
    %v1974 = vsel %vm741, %v1695, %v1886
    %v1975 = vsel %vm742, %v1694, %v1885
    %v1976 = vsel %vm743, %v1693, %v1884
    %v1977 = vsel %vm744, %v1692, %v1883
    %v1978 = vsel %vm745, %v1691, %v1882
    %v1979 = vsel %vm746, %v1690, %v1881
    %v1980 = vsel %vm747, %v1689, %v1880
    %v1981 = vsel %vm748, %v1688, %v1879
    %v1982 = vsel %vm749, %v1687, %v1878
    %v1983 = vsel %vm750, %v1686, %v1877
    %v1984 = vsel %vm751, %v1685, %v1876
    %v1985 = vsel %vm752, %v1684, %v1875
    %v1986 = vsel %vm753, %v1683, %v1874
    %v1987 = vsel %vm754, %v1682, %v1873
    %v1988 = vsel %vm755, %v1681, %v1872
    %v1989 = vsel %vm756, %v1680, %v1871
    %v1990 = vsel %vm757, %v1679, %v1870
    %v1991 = vsel %vm758, %v1678, %v1869
    %v1992 = vsel %vm759, %v1677, %v1868
    %v1993 = vsel %vm760, %v1676, %v1867
    %v1994 = vsel %vm761, %v1675, %v1930
    %v1995 = vsel %vm698, %v1929, %v1738
    %v1996 = vsel %vm699, %v1928, %v1737
    %v1997 = vsel %vm700, %v1927, %v1736
    %v1998 = vsel %vm701, %v1926, %v1735
    %v1999 = vsel %vm702, %v1925, %v1734
    %v2000 = vsel %vm703, %v1924, %v1733
    %v2001 = vsel %vm704, %v1923, %v1732
    %v2002 = vsel %vm705, %v1922, %v1731
    %v2003 = vsel %vm706, %v1921, %v1730
    %v2004 = vsel %vm707, %v1920, %v1729
    %v2005 = vsel %vm708, %v1919, %v1728
    %v2006 = vsel %vm709, %v1918, %v1727
    %v2007 = vsel %vm710, %v1917, %v1726
    %v2008 = vsel %vm711, %v1916, %v1725
    %v2009 = vsel %vm712, %v1915, %v1724
    %v2010 = vsel %vm713, %v1914, %v1723
    %v2011 = vsel %vm714, %v1913, %v1722
    %v2012 = vsel %vm715, %v1912, %v1721
    %v2013 = vsel %vm716, %v1911, %v1720
    %v2014 = vsel %vm717, %v1910, %v1719
    %v2015 = vsel %vm718, %v1909, %v1718
    %v2016 = vsel %vm719, %v1908, %v1717
    %v2017 = vsel %vm720, %v1907, %v1716
    %v2018 = vsel %vm721, %v1906, %v1715
    %v2019 = vsel %vm722, %v1905, %v1714
    %v2020 = vsel %vm723, %v1904, %v1713
    %v2021 = vsel %vm724, %v1903, %v1712
    %v2022 = vsel %vm725, %v1902, %v1711
    %v2023 = vsel %vm726, %v1901, %v1710
    %v2024 = vsel %vm727, %v1900, %v1709
    %v2025 = vsel %vm728, %v1899, %v1708
    %v2026 = vsel %vm729, %v1898, %v1707
    %v2027 = vsel %vm730, %v1897, %v1706
    %v2028 = vsel %vm731, %v1896, %v1705
    %v2029 = vsel %vm732, %v1895, %v1704
    %v2030 = vsel %vm733, %v1894, %v1703
    %v2031 = vsel %vm734, %v1893, %v1702
    %v2032 = vsel %vm735, %v1892, %v1701
    %v2033 = vsel %vm736, %v1891, %v1700
    %v2034 = vsel %vm737, %v1890, %v1699
    %v2035 = vsel %vm738, %v1889, %v1698
    %v2036 = vsel %vm739, %v1888, %v1697
    %v2037 = vsel %vm740, %v1887, %v1696
    %v2038 = vsel %vm741, %v1886, %v1695
    %v2039 = vsel %vm742, %v1885, %v1694
    %v2040 = vsel %vm743, %v1884, %v1693
    %v2041 = vsel %vm744, %v1883, %v1692
    %v2042 = vsel %vm745, %v1882, %v1691
    %v2043 = vsel %vm746, %v1881, %v1690
    %v2044 = vsel %vm747, %v1880, %v1689
    %v2045 = vsel %vm748, %v1879, %v1688
    %v2046 = vsel %vm749, %v1878, %v1687
    %v2047 = vsel %vm750, %v1877, %v1686
    %v2048 = vsel %vm751, %v1876, %v1685
    %v2049 = vsel %vm752, %v1875, %v1684
    %v2050 = vsel %vm753, %v1874, %v1683
    %v2051 = vsel %vm754, %v1873, %v1682
    %v2052 = vsel %vm755, %v1872, %v1681
    %v2053 = vsel %vm756, %v1871, %v1680
    %v2054 = vsel %vm757, %v1870, %v1679
    %v2055 = vsel %vm758, %v1869, %v1678
    %v2056 = vsel %vm759, %v1868, %v1677
    %v2057 = vsel %vm760, %v1867, %v1676
    %v2058 = vsel %vm761, %v1930, %v1675
    %v2059 = vsel %vm185, %v770, %v1283
    %v2060 = vsel %vm186, %v771, %v1284
    %v2061 = vsel %vm187, %v772, %v1285
    %v2062 = vsel %vm188, %v773, %v1286
    %v2063 = vsel %vm189, %v774, %v1287
    %v2064 = vsel %vm190, %v775, %v1288
    %v2065 = vsel %vm191, %v776, %v1289
    %v2066 = vsel %vm192, %v777, %v1290
    %v2067 = vsel %vm193, %v778, %v1291
    %v2068 = vsel %vm194, %v779, %v1292
    %v2069 = vsel %vm195, %v780, %v1293
    %v2070 = vsel %vm196, %v781, %v1294
    %v2071 = vsel %vm197, %v782, %v1295
    %v2072 = vsel %vm198, %v783, %v1296
    %v2073 = vsel %vm199, %v784, %v1297
    %v2074 = vsel %vm200, %v785, %v1298
    %v2075 = vsel %vm201, %v786, %v1299
    %v2076 = vsel %vm202, %v787, %v1300
    %v2077 = vsel %vm203, %v788, %v1301
    %v2078 = vsel %vm204, %v789, %v1302
    %v2079 = vsel %vm205, %v790, %v1303
    %v2080 = vsel %vm206, %v791, %v1304
    %v2081 = vsel %vm207, %v792, %v1305
    %v2082 = vsel %vm208, %v793, %v1306
    %v2083 = vsel %vm209, %v794, %v1307
    %v2084 = vsel %vm210, %v795, %v1308
    %v2085 = vsel %vm211, %v796, %v1309
    %v2086 = vsel %vm212, %v797, %v1310
    %v2087 = vsel %vm213, %v798, %v1311
    %v2088 = vsel %vm214, %v799, %v1312
    %v2089 = vsel %vm215, %v800, %v1313
    %v2090 = vsel %vm216, %v801, %v1314
    %v2091 = vsel %vm217, %v802, %v1315
    %v2092 = vsel %vm218, %v803, %v1316
    %v2093 = vsel %vm219, %v804, %v1317
    %v2094 = vsel %vm220, %v805, %v1318
    %v2095 = vsel %vm221, %v806, %v1319
    %v2096 = vsel %vm222, %v807, %v1320
    %v2097 = vsel %vm223, %v808, %v1321
    %v2098 = vsel %vm224, %v809, %v1322
    %v2099 = vsel %vm225, %v810, %v1323
    %v2100 = vsel %vm226, %v811, %v1324
    %v2101 = vsel %vm227, %v812, %v1325
    %v2102 = vsel %vm228, %v813, %v1326
    %v2103 = vsel %vm229, %v814, %v1327
    %v2104 = vsel %vm230, %v815, %v1328
    %v2105 = vsel %vm231, %v816, %v1329
    %v2106 = vsel %vm232, %v817, %v1330
    %v2107 = vsel %vm233, %v818, %v1331
    %v2108 = vsel %vm234, %v819, %v1332
    %v2109 = vsel %vm235, %v820, %v1333
    %v2110 = vsel %vm236, %v821, %v1334
    %v2111 = vsel %vm237, %v822, %v1335
    %v2112 = vsel %vm238, %v823, %v1336
    %v2113 = vsel %vm239, %v824, %v1337
    %v2114 = vsel %vm240, %v825, %v1338
    %v2115 = vsel %vm241, %v826, %v1339
    %v2116 = vsel %vm242, %v827, %v1340
    %v2117 = vsel %vm243, %v828, %v1341
    %v2118 = vsel %vm244, %v829, %v1342
    %v2119 = vsel %vm245, %v830, %v1343
    %v2120 = vsel %vm246, %v831, %v1344
    %v2121 = vsel %vm247, %v832, %v1345
    %v2122 = vsel %vm248, %v833, %v1346
    %v2123 = vsel %vm185, %v1347, %v770
    %v2124 = vsel %vm186, %v1348, %v771
    %v2125 = vsel %vm187, %v1349, %v772
    %v2126 = vsel %vm188, %v1350, %v773
    %v2127 = vsel %vm189, %v1351, %v774
    %v2128 = vsel %vm190, %v1352, %v775
    %v2129 = vsel %vm191, %v1353, %v776
    %v2130 = vsel %vm192, %v1354, %v777
    %v2131 = vsel %vm193, %v1355, %v778
    %v2132 = vsel %vm194, %v1356, %v779
    %v2133 = vsel %vm195, %v1357, %v780
    %v2134 = vsel %vm196, %v1358, %v781
    %v2135 = vsel %vm197, %v1359, %v782
    %v2136 = vsel %vm198, %v1360, %v783
    %v2137 = vsel %vm199, %v1361, %v784
    %v2138 = vsel %vm200, %v1362, %v785
    %v2139 = vsel %vm201, %v1363, %v786
    %v2140 = vsel %vm202, %v1364, %v787
    %v2141 = vsel %vm203, %v1365, %v788
    %v2142 = vsel %vm204, %v1366, %v789
    %v2143 = vsel %vm205, %v1367, %v790
    %v2144 = vsel %vm206, %v1368, %v791
    %v2145 = vsel %vm207, %v1369, %v792
    %v2146 = vsel %vm208, %v1370, %v793
    %v2147 = vsel %vm209, %v1371, %v794
    %v2148 = vsel %vm210, %v1372, %v795
    %v2149 = vsel %vm211, %v1373, %v796
    %v2150 = vsel %vm212, %v1374, %v797
    %v2151 = vsel %vm213, %v1375, %v798
    %v2152 = vsel %vm214, %v1376, %v799
    %v2153 = vsel %vm215, %v1377, %v800
    %v2154 = vsel %vm216, %v1378, %v801
    %v2155 = vsel %vm217, %v1379, %v802
    %v2156 = vsel %vm218, %v1380, %v803
    %v2157 = vsel %vm219, %v1381, %v804
    %v2158 = vsel %vm220, %v1382, %v805
    %v2159 = vsel %vm221, %v1383, %v806
    %v2160 = vsel %vm222, %v1384, %v807
    %v2161 = vsel %vm223, %v1385, %v808
    %v2162 = vsel %vm224, %v1386, %v809
    %v2163 = vsel %vm225, %v1387, %v810
    %v2164 = vsel %vm226, %v1388, %v811
    %v2165 = vsel %vm227, %v1389, %v812
    %v2166 = vsel %vm228, %v1390, %v813
    %v2167 = vsel %vm229, %v1391, %v814
    %v2168 = vsel %vm230, %v1392, %v815
    %v2169 = vsel %vm231, %v1393, %v816
    %v2170 = vsel %vm232, %v1394, %v817
    %v2171 = vsel %vm233, %v1395, %v818
    %v2172 = vsel %vm234, %v1396, %v819
    %v2173 = vsel %vm235, %v1397, %v820
    %v2174 = vsel %vm236, %v1398, %v821
    %v2175 = vsel %vm237, %v1399, %v822
    %v2176 = vsel %vm238, %v1400, %v823
    %v2177 = vsel %vm239, %v1401, %v824
    %v2178 = vsel %vm240, %v1402, %v825
    %v2179 = vsel %vm241, %v1403, %v826
    %v2180 = vsel %vm242, %v1404, %v827
    %v2181 = vsel %vm243, %v1405, %v828
    %v2182 = vsel %vm244, %v1406, %v829
    %v2183 = vsel %vm245, %v1407, %v830
    %v2184 = vsel %vm246, %v1408, %v831
    %v2185 = vsel %vm247, %v1409, %v832
    %v2186 = vsel %vm248, %v1410, %v833
    %v2187 = vsel %vm185, %v1995, %v1931
    %v2188 = vsel %vm186, %v1996, %v1932
    %v2189 = vsel %vm187, %v1997, %v1933
    %v2190 = vsel %vm188, %v1998, %v1934
    %v2191 = vsel %vm189, %v1999, %v1935
    %v2192 = vsel %vm190, %v2000, %v1936
    %v2193 = vsel %vm191, %v2001, %v1937
    %v2194 = vsel %vm192, %v2002, %v1938
    %v2195 = vsel %vm193, %v2003, %v1939
    %v2196 = vsel %vm194, %v2004, %v1940
    %v2197 = vsel %vm195, %v2005, %v1941
    %v2198 = vsel %vm196, %v2006, %v1942
    %v2199 = vsel %vm197, %v2007, %v1943
    %v2200 = vsel %vm198, %v2008, %v1944
    %v2201 = vsel %vm199, %v2009, %v1945
    %v2202 = vsel %vm200, %v2010, %v1946
    %v2203 = vsel %vm201, %v2011, %v1947
    %v2204 = vsel %vm202, %v2012, %v1948
    %v2205 = vsel %vm203, %v2013, %v1949
    %v2206 = vsel %vm204, %v2014, %v1950
    %v2207 = vsel %vm205, %v2015, %v1951
    %v2208 = vsel %vm206, %v2016, %v1952
    %v2209 = vsel %vm207, %v2017, %v1953
    %v2210 = vsel %vm208, %v2018, %v1954
    %v2211 = vsel %vm209, %v2019, %v1955
    %v2212 = vsel %vm210, %v2020, %v1956
    %v2213 = vsel %vm211, %v2021, %v1957
    %v2214 = vsel %vm212, %v2022, %v1958
    %v2215 = vsel %vm213, %v2023, %v1959
    %v2216 = vsel %vm214, %v2024, %v1960
    %v2217 = vsel %vm215, %v2025, %v1961
    %v2218 = vsel %vm216, %v2026, %v1962
    %v2219 = vsel %vm217, %v2027, %v1963
    %v2220 = vsel %vm218, %v2028, %v1964
    %v2221 = vsel %vm219, %v2029, %v1965
    %v2222 = vsel %vm220, %v2030, %v1966
    %v2223 = vsel %vm221, %v2031, %v1967
    %v2224 = vsel %vm222, %v2032, %v1968
    %v2225 = vsel %vm223, %v2033, %v1969
    %v2226 = vsel %vm224, %v2034, %v1970
    %v2227 = vsel %vm225, %v2035, %v1971
    %v2228 = vsel %vm226, %v2036, %v1972
    %v2229 = vsel %vm227, %v2037, %v1973
    %v2230 = vsel %vm228, %v2038, %v1974
    %v2231 = vsel %vm229, %v2039, %v1975
    %v2232 = vsel %vm230, %v2040, %v1976
    %v2233 = vsel %vm231, %v2041, %v1977
    %v2234 = vsel %vm232, %v2042, %v1978
    %v2235 = vsel %vm233, %v2043, %v1979
    %v2236 = vsel %vm234, %v2044, %v1980
    %v2237 = vsel %vm235, %v2045, %v1981
    %v2238 = vsel %vm236, %v2046, %v1982
    %v2239 = vsel %vm237, %v2047, %v1983
    %v2240 = vsel %vm238, %v2048, %v1984
    %v2241 = vsel %vm239, %v2049, %v1985
    %v2242 = vsel %vm240, %v2050, %v1986
    %v2243 = vsel %vm241, %v2051, %v1987
    %v2244 = vsel %vm242, %v2052, %v1988
    %v2245 = vsel %vm243, %v2053, %v1989
    %v2246 = vsel %vm244, %v2054, %v1990
    %v2247 = vsel %vm245, %v2055, %v1991
    %v2248 = vsel %vm246, %v2056, %v1992
    %v2249 = vsel %vm247, %v2057, %v1993
    %v2250 = vsel %vm248, %v2058, %v1994
    %v2251 = vmul.f32 %v2059, %v2059
    %v2252 = vmul.f32 %v2060, %v2060
    %v2253 = vmul.f32 %v2061, %v2061
    %v2254 = vmul.f32 %v2062, %v2062
    %v2255 = vmul.f32 %v2063, %v2063
    %v2256 = vmul.f32 %v2064, %v2064
    %v2257 = vmul.f32 %v2065, %v2065
    %v2258 = vmul.f32 %v2066, %v2066
    %v2259 = vmul.f32 %v2067, %v2067
    %v2260 = vmul.f32 %v2068, %v2068
    %v2261 = vmul.f32 %v2069, %v2069
    %v2262 = vmul.f32 %v2070, %v2070
    %v2263 = vmul.f32 %v2071, %v2071
    %v2264 = vmul.f32 %v2072, %v2072
    %v2265 = vmul.f32 %v2073, %v2073
    %v2266 = vmul.f32 %v2074, %v2074
    %v2267 = vmul.f32 %v2075, %v2075
    %v2268 = vmul.f32 %v2076, %v2076
    %v2269 = vmul.f32 %v2077, %v2077
    %v2270 = vmul.f32 %v2078, %v2078
    %v2271 = vmul.f32 %v2079, %v2079
    %v2272 = vmul.f32 %v2080, %v2080
    %v2273 = vmul.f32 %v2081, %v2081
    %v2274 = vmul.f32 %v2082, %v2082
    %v2275 = vmul.f32 %v2083, %v2083
    %v2276 = vmul.f32 %v2084, %v2084
    %v2277 = vmul.f32 %v2085, %v2085
    %v2278 = vmul.f32 %v2086, %v2086
    %v2279 = vmul.f32 %v2087, %v2087
    %v2280 = vmul.f32 %v2088, %v2088
    %v2281 = vmul.f32 %v2089, %v2089
    %v2282 = vmul.f32 %v2090, %v2090
    %v2283 = vmul.f32 %v2091, %v2091
    %v2284 = vmul.f32 %v2092, %v2092
    %v2285 = vmul.f32 %v2093, %v2093
    %v2286 = vmul.f32 %v2094, %v2094
    %v2287 = vmul.f32 %v2095, %v2095
    %v2288 = vmul.f32 %v2096, %v2096
    %v2289 = vmul.f32 %v2097, %v2097
    %v2290 = vmul.f32 %v2098, %v2098
    %v2291 = vmul.f32 %v2099, %v2099
    %v2292 = vmul.f32 %v2100, %v2100
    %v2293 = vmul.f32 %v2101, %v2101
    %v2294 = vmul.f32 %v2102, %v2102
    %v2295 = vmul.f32 %v2103, %v2103
    %v2296 = vmul.f32 %v2104, %v2104
    %v2297 = vmul.f32 %v2105, %v2105
    %v2298 = vmul.f32 %v2106, %v2106
    %v2299 = vmul.f32 %v2107, %v2107
    %v2300 = vmul.f32 %v2108, %v2108
    %v2301 = vmul.f32 %v2109, %v2109
    %v2302 = vmul.f32 %v2110, %v2110
    %v2303 = vmul.f32 %v2111, %v2111
    %v2304 = vmul.f32 %v2112, %v2112
    %v2305 = vmul.f32 %v2113, %v2113
    %v2306 = vmul.f32 %v2114, %v2114
    %v2307 = vmul.f32 %v2115, %v2115
    %v2308 = vmul.f32 %v2116, %v2116
    %v2309 = vmul.f32 %v2117, %v2117
    %v2310 = vmul.f32 %v2118, %v2118
    %v2311 = vmul.f32 %v2119, %v2119
    %v2312 = vmul.f32 %v2120, %v2120
    %v2313 = vmul.f32 %v2121, %v2121
    %v2314 = vmul.f32 %v2122, %v2122
    %v2315 = vmul.f32 %v2123, %v2123
    %v2316 = vmul.f32 %v2124, %v2124
    %v2317 = vmul.f32 %v2125, %v2125
    %v2318 = vmul.f32 %v2126, %v2126
    %v2319 = vmul.f32 %v2127, %v2127
    %v2320 = vmul.f32 %v2128, %v2128
    %v2321 = vmul.f32 %v2129, %v2129
    %v2322 = vmul.f32 %v2130, %v2130
    %v2323 = vmul.f32 %v2131, %v2131
    %v2324 = vmul.f32 %v2132, %v2132
    %v2325 = vmul.f32 %v2133, %v2133
    %v2326 = vmul.f32 %v2134, %v2134
    %v2327 = vmul.f32 %v2135, %v2135
    %v2328 = vmul.f32 %v2136, %v2136
    %v2329 = vmul.f32 %v2137, %v2137
    %v2330 = vmul.f32 %v2138, %v2138
    %v2331 = vmul.f32 %v2139, %v2139
    %v2332 = vmul.f32 %v2140, %v2140
    %v2333 = vmul.f32 %v2141, %v2141
    %v2334 = vmul.f32 %v2142, %v2142
    %v2335 = vmul.f32 %v2143, %v2143
    %v2336 = vmul.f32 %v2144, %v2144
    %v2337 = vmul.f32 %v2145, %v2145
    %v2338 = vmul.f32 %v2146, %v2146
    %v2339 = vmul.f32 %v2147, %v2147
    %v2340 = vmul.f32 %v2148, %v2148
    %v2341 = vmul.f32 %v2149, %v2149
    %v2342 = vmul.f32 %v2150, %v2150
    %v2343 = vmul.f32 %v2151, %v2151
    %v2344 = vmul.f32 %v2152, %v2152
    %v2345 = vmul.f32 %v2153, %v2153
    %v2346 = vmul.f32 %v2154, %v2154
    %v2347 = vmul.f32 %v2155, %v2155
    %v2348 = vmul.f32 %v2156, %v2156
    %v2349 = vmul.f32 %v2157, %v2157
    %v2350 = vmul.f32 %v2158, %v2158
    %v2351 = vmul.f32 %v2159, %v2159
    %v2352 = vmul.f32 %v2160, %v2160
    %v2353 = vmul.f32 %v2161, %v2161
    %v2354 = vmul.f32 %v2162, %v2162
    %v2355 = vmul.f32 %v2163, %v2163
    %v2356 = vmul.f32 %v2164, %v2164
    %v2357 = vmul.f32 %v2165, %v2165
    %v2358 = vmul.f32 %v2166, %v2166
    %v2359 = vmul.f32 %v2167, %v2167
    %v2360 = vmul.f32 %v2168, %v2168
    %v2361 = vmul.f32 %v2169, %v2169
    %v2362 = vmul.f32 %v2170, %v2170
    %v2363 = vmul.f32 %v2171, %v2171
    %v2364 = vmul.f32 %v2172, %v2172
    %v2365 = vmul.f32 %v2173, %v2173
    %v2366 = vmul.f32 %v2174, %v2174
    %v2367 = vmul.f32 %v2175, %v2175
    %v2368 = vmul.f32 %v2176, %v2176
    %v2369 = vmul.f32 %v2177, %v2177
    %v2370 = vmul.f32 %v2178, %v2178
    %v2371 = vmul.f32 %v2179, %v2179
    %v2372 = vmul.f32 %v2180, %v2180
    %v2373 = vmul.f32 %v2181, %v2181
    %v2374 = vmul.f32 %v2182, %v2182
    %v2375 = vmul.f32 %v2183, %v2183
    %v2376 = vmul.f32 %v2184, %v2184
    %v2377 = vmul.f32 %v2185, %v2185
    %v2378 = vmul.f32 %v2186, %v2186
    %v2379 = vadd.f32 %v2251, %v2315
    %v2380 = vadd.f32 %v2252, %v2316
    %v2381 = vadd.f32 %v2253, %v2317
    %v2382 = vadd.f32 %v2254, %v2318
    %v2383 = vadd.f32 %v2255, %v2319
    %v2384 = vadd.f32 %v2256, %v2320
    %v2385 = vadd.f32 %v2257, %v2321
    %v2386 = vadd.f32 %v2258, %v2322
    %v2387 = vadd.f32 %v2259, %v2323
    %v2388 = vadd.f32 %v2260, %v2324
    %v2389 = vadd.f32 %v2261, %v2325
    %v2390 = vadd.f32 %v2262, %v2326
    %v2391 = vadd.f32 %v2263, %v2327
    %v2392 = vadd.f32 %v2264, %v2328
    %v2393 = vadd.f32 %v2265, %v2329
    %v2394 = vadd.f32 %v2266, %v2330
    %v2395 = vadd.f32 %v2267, %v2331
    %v2396 = vadd.f32 %v2268, %v2332
    %v2397 = vadd.f32 %v2269, %v2333
    %v2398 = vadd.f32 %v2270, %v2334
    %v2399 = vadd.f32 %v2271, %v2335
    %v2400 = vadd.f32 %v2272, %v2336
    %v2401 = vadd.f32 %v2273, %v2337
    %v2402 = vadd.f32 %v2274, %v2338
    %v2403 = vadd.f32 %v2275, %v2339
    %v2404 = vadd.f32 %v2276, %v2340
    %v2405 = vadd.f32 %v2277, %v2341
    %v2406 = vadd.f32 %v2278, %v2342
    %v2407 = vadd.f32 %v2279, %v2343
    %v2408 = vadd.f32 %v2280, %v2344
    %v2409 = vadd.f32 %v2281, %v2345
    %v2410 = vadd.f32 %v2282, %v2346
    %v2411 = vadd.f32 %v2283, %v2347
    %v2412 = vadd.f32 %v2284, %v2348
    %v2413 = vadd.f32 %v2285, %v2349
    %v2414 = vadd.f32 %v2286, %v2350
    %v2415 = vadd.f32 %v2287, %v2351
    %v2416 = vadd.f32 %v2288, %v2352
    %v2417 = vadd.f32 %v2289, %v2353
    %v2418 = vadd.f32 %v2290, %v2354
    %v2419 = vadd.f32 %v2291, %v2355
    %v2420 = vadd.f32 %v2292, %v2356
    %v2421 = vadd.f32 %v2293, %v2357
    %v2422 = vadd.f32 %v2294, %v2358
    %v2423 = vadd.f32 %v2295, %v2359
    %v2424 = vadd.f32 %v2296, %v2360
    %v2425 = vadd.f32 %v2297, %v2361
    %v2426 = vadd.f32 %v2298, %v2362
    %v2427 = vadd.f32 %v2299, %v2363
    %v2428 = vadd.f32 %v2300, %v2364
    %v2429 = vadd.f32 %v2301, %v2365
    %v2430 = vadd.f32 %v2302, %v2366
    %v2431 = vadd.f32 %v2303, %v2367
    %v2432 = vadd.f32 %v2304, %v2368
    %v2433 = vadd.f32 %v2305, %v2369
    %v2434 = vadd.f32 %v2306, %v2370
    %v2435 = vadd.f32 %v2307, %v2371
    %v2436 = vadd.f32 %v2308, %v2372
    %v2437 = vadd.f32 %v2309, %v2373
    %v2438 = vadd.f32 %v2310, %v2374
    %v2439 = vadd.f32 %v2311, %v2375
    %v2440 = vadd.f32 %v2312, %v2376
    %v2441 = vadd.f32 %v2313, %v2377
    %v2442 = vadd.f32 %v2314, %v2378
    %vm2443 = vcmp.gt.f32.partialorder %v2379, 0.0
    %vm2444 = vcmp.gt.f32.partialorder %v2380, 0.0
    %vm2445 = vcmp.gt.f32.partialorder %v2381, 0.0
    %vm2446 = vcmp.gt.f32.partialorder %v2382, 0.0
    %vm2447 = vcmp.gt.f32.partialorder %v2383, 0.0
    %vm2448 = vcmp.gt.f32.partialorder %v2384, 0.0
    %vm2449 = vcmp.gt.f32.partialorder %v2385, 0.0
    %vm2450 = vcmp.gt.f32.partialorder %v2386, 0.0
    %vm2451 = vcmp.gt.f32.partialorder %v2387, 0.0
    %vm2452 = vcmp.gt.f32.partialorder %v2388, 0.0
    %vm2453 = vcmp.gt.f32.partialorder %v2389, 0.0
    %vm2454 = vcmp.gt.f32.partialorder %v2390, 0.0
    %vm2455 = vcmp.gt.f32.partialorder %v2391, 0.0
    %vm2456 = vcmp.gt.f32.partialorder %v2392, 0.0
    %vm2457 = vcmp.gt.f32.partialorder %v2393, 0.0
    %vm2458 = vcmp.gt.f32.partialorder %v2394, 0.0
    %vm2459 = vcmp.gt.f32.partialorder %v2395, 0.0
    %vm2460 = vcmp.gt.f32.partialorder %v2396, 0.0
    %vm2461 = vcmp.gt.f32.partialorder %v2397, 0.0
    %vm2462 = vcmp.gt.f32.partialorder %v2398, 0.0
    %vm2463 = vcmp.gt.f32.partialorder %v2399, 0.0
    %vm2464 = vcmp.gt.f32.partialorder %v2400, 0.0
    %vm2465 = vcmp.gt.f32.partialorder %v2401, 0.0
    %vm2466 = vcmp.gt.f32.partialorder %v2402, 0.0
    %vm2467 = vcmp.gt.f32.partialorder %v2403, 0.0
    %vm2468 = vcmp.gt.f32.partialorder %v2404, 0.0
    %vm2469 = vcmp.gt.f32.partialorder %v2405, 0.0
    %vm2470 = vcmp.gt.f32.partialorder %v2406, 0.0
    %vm2471 = vcmp.gt.f32.partialorder %v2407, 0.0
    %vm2472 = vcmp.gt.f32.partialorder %v2408, 0.0
    %vm2473 = vcmp.gt.f32.partialorder %v2409, 0.0
    %vm2474 = vcmp.gt.f32.partialorder %v2410, 0.0
    %vm2475 = vcmp.gt.f32.partialorder %v2411, 0.0
    %vm2476 = vcmp.gt.f32.partialorder %v2412, 0.0
    %vm2477 = vcmp.gt.f32.partialorder %v2413, 0.0
    %vm2478 = vcmp.gt.f32.partialorder %v2414, 0.0
    %vm2479 = vcmp.gt.f32.partialorder %v2415, 0.0
    %vm2480 = vcmp.gt.f32.partialorder %v2416, 0.0
    %vm2481 = vcmp.gt.f32.partialorder %v2417, 0.0
    %vm2482 = vcmp.gt.f32.partialorder %v2418, 0.0
    %vm2483 = vcmp.gt.f32.partialorder %v2419, 0.0
    %vm2484 = vcmp.gt.f32.partialorder %v2420, 0.0
    %vm2485 = vcmp.gt.f32.partialorder %v2421, 0.0
    %vm2486 = vcmp.gt.f32.partialorder %v2422, 0.0
    %vm2487 = vcmp.gt.f32.partialorder %v2423, 0.0
    %vm2488 = vcmp.gt.f32.partialorder %v2424, 0.0
    %vm2489 = vcmp.gt.f32.partialorder %v2425, 0.0
    %vm2490 = vcmp.gt.f32.partialorder %v2426, 0.0
    %vm2491 = vcmp.gt.f32.partialorder %v2427, 0.0
    %vm2492 = vcmp.gt.f32.partialorder %v2428, 0.0
    %vm2493 = vcmp.gt.f32.partialorder %v2429, 0.0
    %vm2494 = vcmp.gt.f32.partialorder %v2430, 0.0
    %vm2495 = vcmp.gt.f32.partialorder %v2431, 0.0
    %vm2496 = vcmp.gt.f32.partialorder %v2432, 0.0
    %vm2497 = vcmp.gt.f32.partialorder %v2433, 0.0
    %vm2498 = vcmp.gt.f32.partialorder %v2434, 0.0
    %vm2499 = vcmp.gt.f32.partialorder %v2435, 0.0
    %vm2500 = vcmp.gt.f32.partialorder %v2436, 0.0
    %vm2501 = vcmp.gt.f32.partialorder %v2437, 0.0
    %vm2502 = vcmp.gt.f32.partialorder %v2438, 0.0
    %vm2503 = vcmp.gt.f32.partialorder %v2439, 0.0
    %vm2504 = vcmp.gt.f32.partialorder %v2440, 0.0
    %vm2505 = vcmp.gt.f32.partialorder %v2441, 0.0
    %vm2506 = vcmp.gt.f32.partialorder %v2442, 0.0
    %v2507 = vrsqrt.pop %v2379
    %v2508 = vmul.f32 %v2507, %v2379
    %v2509 = vmul.f32 %v2508, %v2507
    %v2510 = vmul.f32 0.5, %v2509
    %v2511 = vsub.f32 1.5, %v2510
    %v2512 = vmul.f32 %v2507, %v2511
    %vm2513 = vweird.f32 %v2379
    %vm2514 = vweird.f32 %v2507
    %vm2515 = vmor %vm2513, %vm2514
    %v2516 = vsel %vm2515, %v2507, %v2512
    %v2517 = vrsqrt.pop %v2380
    %v2518 = vmul.f32 %v2517, %v2380
    %v2519 = vmul.f32 %v2518, %v2517
    %v2520 = vmul.f32 0.5, %v2519
    %v2521 = vsub.f32 1.5, %v2520
    %v2522 = vmul.f32 %v2517, %v2521
    %vm2523 = vweird.f32 %v2380
    %vm2524 = vweird.f32 %v2517
    %vm2525 = vmor %vm2523, %vm2524
    %v2526 = vsel %vm2525, %v2517, %v2522
    %v2527 = vrsqrt.pop %v2381
    %v2528 = vmul.f32 %v2527, %v2381
    %v2529 = vmul.f32 %v2528, %v2527
    %v2530 = vmul.f32 0.5, %v2529
    %v2531 = vsub.f32 1.5, %v2530
    %v2532 = vmul.f32 %v2527, %v2531
    %vm2533 = vweird.f32 %v2381
    %vm2534 = vweird.f32 %v2527
    %vm2535 = vmor %vm2533, %vm2534
    %v2536 = vsel %vm2535, %v2527, %v2532
    %v2537 = vrsqrt.pop %v2382
    %v2538 = vmul.f32 %v2537, %v2382
    %v2539 = vmul.f32 %v2538, %v2537
    %v2540 = vmul.f32 0.5, %v2539
    %v2541 = vsub.f32 1.5, %v2540
    %v2542 = vmul.f32 %v2537, %v2541
    %vm2543 = vweird.f32 %v2382
    %vm2544 = vweird.f32 %v2537
    %vm2545 = vmor %vm2543, %vm2544
    %v2546 = vsel %vm2545, %v2537, %v2542
    %v2547 = vrsqrt.pop %v2383
    %v2548 = vmul.f32 %v2547, %v2383
    %v2549 = vmul.f32 %v2548, %v2547
    %v2550 = vmul.f32 0.5, %v2549
    %v2551 = vsub.f32 1.5, %v2550
    %v2552 = vmul.f32 %v2547, %v2551
    %vm2553 = vweird.f32 %v2383
    %vm2554 = vweird.f32 %v2547
    %vm2555 = vmor %vm2553, %vm2554
    %v2556 = vsel %vm2555, %v2547, %v2552
    %v2557 = vrsqrt.pop %v2384
    %v2558 = vmul.f32 %v2557, %v2384
    %v2559 = vmul.f32 %v2558, %v2557
    %v2560 = vmul.f32 0.5, %v2559
    %v2561 = vsub.f32 1.5, %v2560
    %v2562 = vmul.f32 %v2557, %v2561
    %vm2563 = vweird.f32 %v2384
    %vm2564 = vweird.f32 %v2557
    %vm2565 = vmor %vm2563, %vm2564
    %v2566 = vsel %vm2565, %v2557, %v2562
    %v2567 = vrsqrt.pop %v2385
    %v2568 = vmul.f32 %v2567, %v2385
    %v2569 = vmul.f32 %v2568, %v2567
    %v2570 = vmul.f32 0.5, %v2569
    %v2571 = vsub.f32 1.5, %v2570
    %v2572 = vmul.f32 %v2567, %v2571
    %vm2573 = vweird.f32 %v2385
    %vm2574 = vweird.f32 %v2567
    %vm2575 = vmor %vm2573, %vm2574
    %v2576 = vsel %vm2575, %v2567, %v2572
    %v2577 = vrsqrt.pop %v2386
    %v2578 = vmul.f32 %v2577, %v2386
    %v2579 = vmul.f32 %v2578, %v2577
    %v2580 = vmul.f32 0.5, %v2579
    %v2581 = vsub.f32 1.5, %v2580
    %v2582 = vmul.f32 %v2577, %v2581
    %vm2583 = vweird.f32 %v2386
    %vm2584 = vweird.f32 %v2577
    %vm2585 = vmor %vm2583, %vm2584
    %v2586 = vsel %vm2585, %v2577, %v2582
    %v2587 = vrsqrt.pop %v2387
    %v2588 = vmul.f32 %v2587, %v2387
    %v2589 = vmul.f32 %v2588, %v2587
    %v2590 = vmul.f32 0.5, %v2589
    %v2591 = vsub.f32 1.5, %v2590
    %v2592 = vmul.f32 %v2587, %v2591
    %vm2593 = vweird.f32 %v2387
    %vm2594 = vweird.f32 %v2587
    %vm2595 = vmor %vm2593, %vm2594
    %v2596 = vsel %vm2595, %v2587, %v2592
    %v2597 = vrsqrt.pop %v2388
    %v2598 = vmul.f32 %v2597, %v2388
    %v2599 = vmul.f32 %v2598, %v2597
    %v2600 = vmul.f32 0.5, %v2599
    %v2601 = vsub.f32 1.5, %v2600
    %v2602 = vmul.f32 %v2597, %v2601
    %vm2603 = vweird.f32 %v2388
    %vm2604 = vweird.f32 %v2597
    %vm2605 = vmor %vm2603, %vm2604
    %v2606 = vsel %vm2605, %v2597, %v2602
    %v2607 = vrsqrt.pop %v2389
    %v2608 = vmul.f32 %v2607, %v2389
    %v2609 = vmul.f32 %v2608, %v2607
    %v2610 = vmul.f32 0.5, %v2609
    %v2611 = vsub.f32 1.5, %v2610
    %v2612 = vmul.f32 %v2607, %v2611
    %vm2613 = vweird.f32 %v2389
    %vm2614 = vweird.f32 %v2607
    %vm2615 = vmor %vm2613, %vm2614
    %v2616 = vsel %vm2615, %v2607, %v2612
    %v2617 = vrsqrt.pop %v2390
    %v2618 = vmul.f32 %v2617, %v2390
    %v2619 = vmul.f32 %v2618, %v2617
    %v2620 = vmul.f32 0.5, %v2619
    %v2621 = vsub.f32 1.5, %v2620
    %v2622 = vmul.f32 %v2617, %v2621
    %vm2623 = vweird.f32 %v2390
    %vm2624 = vweird.f32 %v2617
    %vm2625 = vmor %vm2623, %vm2624
    %v2626 = vsel %vm2625, %v2617, %v2622
    %v2627 = vrsqrt.pop %v2391
    %v2628 = vmul.f32 %v2627, %v2391
    %v2629 = vmul.f32 %v2628, %v2627
    %v2630 = vmul.f32 0.5, %v2629
    %v2631 = vsub.f32 1.5, %v2630
    %v2632 = vmul.f32 %v2627, %v2631
    %vm2633 = vweird.f32 %v2391
    %vm2634 = vweird.f32 %v2627
    %vm2635 = vmor %vm2633, %vm2634
    %v2636 = vsel %vm2635, %v2627, %v2632
    %v2637 = vrsqrt.pop %v2392
    %v2638 = vmul.f32 %v2637, %v2392
    %v2639 = vmul.f32 %v2638, %v2637
    %v2640 = vmul.f32 0.5, %v2639
    %v2641 = vsub.f32 1.5, %v2640
    %v2642 = vmul.f32 %v2637, %v2641
    %vm2643 = vweird.f32 %v2392
    %vm2644 = vweird.f32 %v2637
    %vm2645 = vmor %vm2643, %vm2644
    %v2646 = vsel %vm2645, %v2637, %v2642
    %v2647 = vrsqrt.pop %v2393
    %v2648 = vmul.f32 %v2647, %v2393
    %v2649 = vmul.f32 %v2648, %v2647
    %v2650 = vmul.f32 0.5, %v2649
    %v2651 = vsub.f32 1.5, %v2650
    %v2652 = vmul.f32 %v2647, %v2651
    %vm2653 = vweird.f32 %v2393
    %vm2654 = vweird.f32 %v2647
    %vm2655 = vmor %vm2653, %vm2654
    %v2656 = vsel %vm2655, %v2647, %v2652
    %v2657 = vrsqrt.pop %v2394
    %v2658 = vmul.f32 %v2657, %v2394
    %v2659 = vmul.f32 %v2658, %v2657
    %v2660 = vmul.f32 0.5, %v2659
    %v2661 = vsub.f32 1.5, %v2660
    %v2662 = vmul.f32 %v2657, %v2661
    %vm2663 = vweird.f32 %v2394
    %vm2664 = vweird.f32 %v2657
    %vm2665 = vmor %vm2663, %vm2664
    %v2666 = vsel %vm2665, %v2657, %v2662
    %v2667 = vrsqrt.pop %v2395
    %v2668 = vmul.f32 %v2667, %v2395
    %v2669 = vmul.f32 %v2668, %v2667
    %v2670 = vmul.f32 0.5, %v2669
    %v2671 = vsub.f32 1.5, %v2670
    %v2672 = vmul.f32 %v2667, %v2671
    %vm2673 = vweird.f32 %v2395
    %vm2674 = vweird.f32 %v2667
    %vm2675 = vmor %vm2673, %vm2674
    %v2676 = vsel %vm2675, %v2667, %v2672
    %v2677 = vrsqrt.pop %v2396
    %v2678 = vmul.f32 %v2677, %v2396
    %v2679 = vmul.f32 %v2678, %v2677
    %v2680 = vmul.f32 0.5, %v2679
    %v2681 = vsub.f32 1.5, %v2680
    %v2682 = vmul.f32 %v2677, %v2681
    %vm2683 = vweird.f32 %v2396
    %vm2684 = vweird.f32 %v2677
    %vm2685 = vmor %vm2683, %vm2684
    %v2686 = vsel %vm2685, %v2677, %v2682
    %v2687 = vrsqrt.pop %v2397
    %v2688 = vmul.f32 %v2687, %v2397
    %v2689 = vmul.f32 %v2688, %v2687
    %v2690 = vmul.f32 0.5, %v2689
    %v2691 = vsub.f32 1.5, %v2690
    %v2692 = vmul.f32 %v2687, %v2691
    %vm2693 = vweird.f32 %v2397
    %vm2694 = vweird.f32 %v2687
    %vm2695 = vmor %vm2693, %vm2694
    %v2696 = vsel %vm2695, %v2687, %v2692
    %v2697 = vrsqrt.pop %v2398
    %v2698 = vmul.f32 %v2697, %v2398
    %v2699 = vmul.f32 %v2698, %v2697
    %v2700 = vmul.f32 0.5, %v2699
    %v2701 = vsub.f32 1.5, %v2700
    %v2702 = vmul.f32 %v2697, %v2701
    %vm2703 = vweird.f32 %v2398
    %vm2704 = vweird.f32 %v2697
    %vm2705 = vmor %vm2703, %vm2704
    %v2706 = vsel %vm2705, %v2697, %v2702
    %v2707 = vrsqrt.pop %v2399
    %v2708 = vmul.f32 %v2707, %v2399
    %v2709 = vmul.f32 %v2708, %v2707
    %v2710 = vmul.f32 0.5, %v2709
    %v2711 = vsub.f32 1.5, %v2710
    %v2712 = vmul.f32 %v2707, %v2711
    %vm2713 = vweird.f32 %v2399
    %vm2714 = vweird.f32 %v2707
    %vm2715 = vmor %vm2713, %vm2714
    %v2716 = vsel %vm2715, %v2707, %v2712
    %v2717 = vrsqrt.pop %v2400
    %v2718 = vmul.f32 %v2717, %v2400
    %v2719 = vmul.f32 %v2718, %v2717
    %v2720 = vmul.f32 0.5, %v2719
    %v2721 = vsub.f32 1.5, %v2720
    %v2722 = vmul.f32 %v2717, %v2721
    %vm2723 = vweird.f32 %v2400
    %vm2724 = vweird.f32 %v2717
    %vm2725 = vmor %vm2723, %vm2724
    %v2726 = vsel %vm2725, %v2717, %v2722
    %v2727 = vrsqrt.pop %v2401
    %v2728 = vmul.f32 %v2727, %v2401
    %v2729 = vmul.f32 %v2728, %v2727
    %v2730 = vmul.f32 0.5, %v2729
    %v2731 = vsub.f32 1.5, %v2730
    %v2732 = vmul.f32 %v2727, %v2731
    %vm2733 = vweird.f32 %v2401
    %vm2734 = vweird.f32 %v2727
    %vm2735 = vmor %vm2733, %vm2734
    %v2736 = vsel %vm2735, %v2727, %v2732
    %v2737 = vrsqrt.pop %v2402
    %v2738 = vmul.f32 %v2737, %v2402
    %v2739 = vmul.f32 %v2738, %v2737
    %v2740 = vmul.f32 0.5, %v2739
    %v2741 = vsub.f32 1.5, %v2740
    %v2742 = vmul.f32 %v2737, %v2741
    %vm2743 = vweird.f32 %v2402
    %vm2744 = vweird.f32 %v2737
    %vm2745 = vmor %vm2743, %vm2744
    %v2746 = vsel %vm2745, %v2737, %v2742
    %v2747 = vrsqrt.pop %v2403
    %v2748 = vmul.f32 %v2747, %v2403
    %v2749 = vmul.f32 %v2748, %v2747
    %v2750 = vmul.f32 0.5, %v2749
    %v2751 = vsub.f32 1.5, %v2750
    %v2752 = vmul.f32 %v2747, %v2751
    %vm2753 = vweird.f32 %v2403
    %vm2754 = vweird.f32 %v2747
    %vm2755 = vmor %vm2753, %vm2754
    %v2756 = vsel %vm2755, %v2747, %v2752
    %v2757 = vrsqrt.pop %v2404
    %v2758 = vmul.f32 %v2757, %v2404
    %v2759 = vmul.f32 %v2758, %v2757
    %v2760 = vmul.f32 0.5, %v2759
    %v2761 = vsub.f32 1.5, %v2760
    %v2762 = vmul.f32 %v2757, %v2761
    %vm2763 = vweird.f32 %v2404
    %vm2764 = vweird.f32 %v2757
    %vm2765 = vmor %vm2763, %vm2764
    %v2766 = vsel %vm2765, %v2757, %v2762
    %v2767 = vrsqrt.pop %v2405
    %v2768 = vmul.f32 %v2767, %v2405
    %v2769 = vmul.f32 %v2768, %v2767
    %v2770 = vmul.f32 0.5, %v2769
    %v2771 = vsub.f32 1.5, %v2770
    %v2772 = vmul.f32 %v2767, %v2771
    %vm2773 = vweird.f32 %v2405
    %vm2774 = vweird.f32 %v2767
    %vm2775 = vmor %vm2773, %vm2774
    %v2776 = vsel %vm2775, %v2767, %v2772
    %v2777 = vrsqrt.pop %v2406
    %v2778 = vmul.f32 %v2777, %v2406
    %v2779 = vmul.f32 %v2778, %v2777
    %v2780 = vmul.f32 0.5, %v2779
    %v2781 = vsub.f32 1.5, %v2780
    %v2782 = vmul.f32 %v2777, %v2781
    %vm2783 = vweird.f32 %v2406
    %vm2784 = vweird.f32 %v2777
    %vm2785 = vmor %vm2783, %vm2784
    %v2786 = vsel %vm2785, %v2777, %v2782
    %v2787 = vrsqrt.pop %v2407
    %v2788 = vmul.f32 %v2787, %v2407
    %v2789 = vmul.f32 %v2788, %v2787
    %v2790 = vmul.f32 0.5, %v2789
    %v2791 = vsub.f32 1.5, %v2790
    %v2792 = vmul.f32 %v2787, %v2791
    %vm2793 = vweird.f32 %v2407
    %vm2794 = vweird.f32 %v2787
    %vm2795 = vmor %vm2793, %vm2794
    %v2796 = vsel %vm2795, %v2787, %v2792
    %v2797 = vrsqrt.pop %v2408
    %v2798 = vmul.f32 %v2797, %v2408
    %v2799 = vmul.f32 %v2798, %v2797
    %v2800 = vmul.f32 0.5, %v2799
    %v2801 = vsub.f32 1.5, %v2800
    %v2802 = vmul.f32 %v2797, %v2801
    %vm2803 = vweird.f32 %v2408
    %vm2804 = vweird.f32 %v2797
    %vm2805 = vmor %vm2803, %vm2804
    %v2806 = vsel %vm2805, %v2797, %v2802
    %v2807 = vrsqrt.pop %v2409
    %v2808 = vmul.f32 %v2807, %v2409
    %v2809 = vmul.f32 %v2808, %v2807
    %v2810 = vmul.f32 0.5, %v2809
    %v2811 = vsub.f32 1.5, %v2810
    %v2812 = vmul.f32 %v2807, %v2811
    %vm2813 = vweird.f32 %v2409
    %vm2814 = vweird.f32 %v2807
    %vm2815 = vmor %vm2813, %vm2814
    %v2816 = vsel %vm2815, %v2807, %v2812
    %v2817 = vrsqrt.pop %v2410
    %v2818 = vmul.f32 %v2817, %v2410
    %v2819 = vmul.f32 %v2818, %v2817
    %v2820 = vmul.f32 0.5, %v2819
    %v2821 = vsub.f32 1.5, %v2820
    %v2822 = vmul.f32 %v2817, %v2821
    %vm2823 = vweird.f32 %v2410
    %vm2824 = vweird.f32 %v2817
    %vm2825 = vmor %vm2823, %vm2824
    %v2826 = vsel %vm2825, %v2817, %v2822
    %v2827 = vrsqrt.pop %v2411
    %v2828 = vmul.f32 %v2827, %v2411
    %v2829 = vmul.f32 %v2828, %v2827
    %v2830 = vmul.f32 0.5, %v2829
    %v2831 = vsub.f32 1.5, %v2830
    %v2832 = vmul.f32 %v2827, %v2831
    %vm2833 = vweird.f32 %v2411
    %vm2834 = vweird.f32 %v2827
    %vm2835 = vmor %vm2833, %vm2834
    %v2836 = vsel %vm2835, %v2827, %v2832
    %v2837 = vrsqrt.pop %v2412
    %v2838 = vmul.f32 %v2837, %v2412
    %v2839 = vmul.f32 %v2838, %v2837
    %v2840 = vmul.f32 0.5, %v2839
    %v2841 = vsub.f32 1.5, %v2840
    %v2842 = vmul.f32 %v2837, %v2841
    %vm2843 = vweird.f32 %v2412
    %vm2844 = vweird.f32 %v2837
    %vm2845 = vmor %vm2843, %vm2844
    %v2846 = vsel %vm2845, %v2837, %v2842
    %v2847 = vrsqrt.pop %v2413
    %v2848 = vmul.f32 %v2847, %v2413
    %v2849 = vmul.f32 %v2848, %v2847
    %v2850 = vmul.f32 0.5, %v2849
    %v2851 = vsub.f32 1.5, %v2850
    %v2852 = vmul.f32 %v2847, %v2851
    %vm2853 = vweird.f32 %v2413
    %vm2854 = vweird.f32 %v2847
    %vm2855 = vmor %vm2853, %vm2854
    %v2856 = vsel %vm2855, %v2847, %v2852
    %v2857 = vrsqrt.pop %v2414
    %v2858 = vmul.f32 %v2857, %v2414
    %v2859 = vmul.f32 %v2858, %v2857
    %v2860 = vmul.f32 0.5, %v2859
    %v2861 = vsub.f32 1.5, %v2860
    %v2862 = vmul.f32 %v2857, %v2861
    %vm2863 = vweird.f32 %v2414
    %vm2864 = vweird.f32 %v2857
    %vm2865 = vmor %vm2863, %vm2864
    %v2866 = vsel %vm2865, %v2857, %v2862
    %v2867 = vrsqrt.pop %v2415
    %v2868 = vmul.f32 %v2867, %v2415
    %v2869 = vmul.f32 %v2868, %v2867
    %v2870 = vmul.f32 0.5, %v2869
    %v2871 = vsub.f32 1.5, %v2870
    %v2872 = vmul.f32 %v2867, %v2871
    %vm2873 = vweird.f32 %v2415
    %vm2874 = vweird.f32 %v2867
    %vm2875 = vmor %vm2873, %vm2874
    %v2876 = vsel %vm2875, %v2867, %v2872
    %v2877 = vrsqrt.pop %v2416
    %v2878 = vmul.f32 %v2877, %v2416
    %v2879 = vmul.f32 %v2878, %v2877
    %v2880 = vmul.f32 0.5, %v2879
    %v2881 = vsub.f32 1.5, %v2880
    %v2882 = vmul.f32 %v2877, %v2881
    %vm2883 = vweird.f32 %v2416
    %vm2884 = vweird.f32 %v2877
    %vm2885 = vmor %vm2883, %vm2884
    %v2886 = vsel %vm2885, %v2877, %v2882
    %v2887 = vrsqrt.pop %v2417
    %v2888 = vmul.f32 %v2887, %v2417
    %v2889 = vmul.f32 %v2888, %v2887
    %v2890 = vmul.f32 0.5, %v2889
    %v2891 = vsub.f32 1.5, %v2890
    %v2892 = vmul.f32 %v2887, %v2891
    %vm2893 = vweird.f32 %v2417
    %vm2894 = vweird.f32 %v2887
    %vm2895 = vmor %vm2893, %vm2894
    %v2896 = vsel %vm2895, %v2887, %v2892
    %v2897 = vrsqrt.pop %v2418
    %v2898 = vmul.f32 %v2897, %v2418
    %v2899 = vmul.f32 %v2898, %v2897
    %v2900 = vmul.f32 0.5, %v2899
    %v2901 = vsub.f32 1.5, %v2900
    %v2902 = vmul.f32 %v2897, %v2901
    %vm2903 = vweird.f32 %v2418
    %vm2904 = vweird.f32 %v2897
    %vm2905 = vmor %vm2903, %vm2904
    %v2906 = vsel %vm2905, %v2897, %v2902
    %v2907 = vrsqrt.pop %v2419
    %v2908 = vmul.f32 %v2907, %v2419
    %v2909 = vmul.f32 %v2908, %v2907
    %v2910 = vmul.f32 0.5, %v2909
    %v2911 = vsub.f32 1.5, %v2910
    %v2912 = vmul.f32 %v2907, %v2911
    %vm2913 = vweird.f32 %v2419
    %vm2914 = vweird.f32 %v2907
    %vm2915 = vmor %vm2913, %vm2914
    %v2916 = vsel %vm2915, %v2907, %v2912
    %v2917 = vrsqrt.pop %v2420
    %v2918 = vmul.f32 %v2917, %v2420
    %v2919 = vmul.f32 %v2918, %v2917
    %v2920 = vmul.f32 0.5, %v2919
    %v2921 = vsub.f32 1.5, %v2920
    %v2922 = vmul.f32 %v2917, %v2921
    %vm2923 = vweird.f32 %v2420
    %vm2924 = vweird.f32 %v2917
    %vm2925 = vmor %vm2923, %vm2924
    %v2926 = vsel %vm2925, %v2917, %v2922
    %v2927 = vrsqrt.pop %v2421
    %v2928 = vmul.f32 %v2927, %v2421
    %v2929 = vmul.f32 %v2928, %v2927
    %v2930 = vmul.f32 0.5, %v2929
    %v2931 = vsub.f32 1.5, %v2930
    %v2932 = vmul.f32 %v2927, %v2931
    %vm2933 = vweird.f32 %v2421
    %vm2934 = vweird.f32 %v2927
    %vm2935 = vmor %vm2933, %vm2934
    %v2936 = vsel %vm2935, %v2927, %v2932
    %v2937 = vrsqrt.pop %v2422
    %v2938 = vmul.f32 %v2937, %v2422
    %v2939 = vmul.f32 %v2938, %v2937
    %v2940 = vmul.f32 0.5, %v2939
    %v2941 = vsub.f32 1.5, %v2940
    %v2942 = vmul.f32 %v2937, %v2941
    %vm2943 = vweird.f32 %v2422
    %vm2944 = vweird.f32 %v2937
    %vm2945 = vmor %vm2943, %vm2944
    %v2946 = vsel %vm2945, %v2937, %v2942
    %v2947 = vrsqrt.pop %v2423
    %v2948 = vmul.f32 %v2947, %v2423
    %v2949 = vmul.f32 %v2948, %v2947
    %v2950 = vmul.f32 0.5, %v2949
    %v2951 = vsub.f32 1.5, %v2950
    %v2952 = vmul.f32 %v2947, %v2951
    %vm2953 = vweird.f32 %v2423
    %vm2954 = vweird.f32 %v2947
    %vm2955 = vmor %vm2953, %vm2954
    %v2956 = vsel %vm2955, %v2947, %v2952
    %v2957 = vrsqrt.pop %v2424
    %v2958 = vmul.f32 %v2957, %v2424
    %v2959 = vmul.f32 %v2958, %v2957
    %v2960 = vmul.f32 0.5, %v2959
    %v2961 = vsub.f32 1.5, %v2960
    %v2962 = vmul.f32 %v2957, %v2961
    %vm2963 = vweird.f32 %v2424
    %vm2964 = vweird.f32 %v2957
    %vm2965 = vmor %vm2963, %vm2964
    %v2966 = vsel %vm2965, %v2957, %v2962
    %v2967 = vrsqrt.pop %v2425
    %v2968 = vmul.f32 %v2967, %v2425
    %v2969 = vmul.f32 %v2968, %v2967
    %v2970 = vmul.f32 0.5, %v2969
    %v2971 = vsub.f32 1.5, %v2970
    %v2972 = vmul.f32 %v2967, %v2971
    %vm2973 = vweird.f32 %v2425
    %vm2974 = vweird.f32 %v2967
    %vm2975 = vmor %vm2973, %vm2974
    %v2976 = vsel %vm2975, %v2967, %v2972
    %v2977 = vrsqrt.pop %v2426
    %v2978 = vmul.f32 %v2977, %v2426
    %v2979 = vmul.f32 %v2978, %v2977
    %v2980 = vmul.f32 0.5, %v2979
    %v2981 = vsub.f32 1.5, %v2980
    %v2982 = vmul.f32 %v2977, %v2981
    %vm2983 = vweird.f32 %v2426
    %vm2984 = vweird.f32 %v2977
    %vm2985 = vmor %vm2983, %vm2984
    %v2986 = vsel %vm2985, %v2977, %v2982
    %v2987 = vrsqrt.pop %v2427
    %v2988 = vmul.f32 %v2987, %v2427
    %v2989 = vmul.f32 %v2988, %v2987
    %v2990 = vmul.f32 0.5, %v2989
    %v2991 = vsub.f32 1.5, %v2990
    %v2992 = vmul.f32 %v2987, %v2991
    %vm2993 = vweird.f32 %v2427
    %vm2994 = vweird.f32 %v2987
    %vm2995 = vmor %vm2993, %vm2994
    %v2996 = vsel %vm2995, %v2987, %v2992
    %v2997 = vrsqrt.pop %v2428
    %v2998 = vmul.f32 %v2997, %v2428
    %v2999 = vmul.f32 %v2998, %v2997
    %v3000 = vmul.f32 0.5, %v2999
    %v3001 = vsub.f32 1.5, %v3000
    %v3002 = vmul.f32 %v2997, %v3001
    %vm3003 = vweird.f32 %v2428
    %vm3004 = vweird.f32 %v2997
    %vm3005 = vmor %vm3003, %vm3004
    %v3006 = vsel %vm3005, %v2997, %v3002
    %v3007 = vrsqrt.pop %v2429
    %v3008 = vmul.f32 %v3007, %v2429
    %v3009 = vmul.f32 %v3008, %v3007
    %v3010 = vmul.f32 0.5, %v3009
    %v3011 = vsub.f32 1.5, %v3010
    %v3012 = vmul.f32 %v3007, %v3011
    %vm3013 = vweird.f32 %v2429
    %vm3014 = vweird.f32 %v3007
    %vm3015 = vmor %vm3013, %vm3014
    %v3016 = vsel %vm3015, %v3007, %v3012
    %v3017 = vrsqrt.pop %v2430
    %v3018 = vmul.f32 %v3017, %v2430
    %v3019 = vmul.f32 %v3018, %v3017
    %v3020 = vmul.f32 0.5, %v3019
    %v3021 = vsub.f32 1.5, %v3020
    %v3022 = vmul.f32 %v3017, %v3021
    %vm3023 = vweird.f32 %v2430
    %vm3024 = vweird.f32 %v3017
    %vm3025 = vmor %vm3023, %vm3024
    %v3026 = vsel %vm3025, %v3017, %v3022
    %v3027 = vrsqrt.pop %v2431
    %v3028 = vmul.f32 %v3027, %v2431
    %v3029 = vmul.f32 %v3028, %v3027
    %v3030 = vmul.f32 0.5, %v3029
    %v3031 = vsub.f32 1.5, %v3030
    %v3032 = vmul.f32 %v3027, %v3031
    %vm3033 = vweird.f32 %v2431
    %vm3034 = vweird.f32 %v3027
    %vm3035 = vmor %vm3033, %vm3034
    %v3036 = vsel %vm3035, %v3027, %v3032
    %v3037 = vrsqrt.pop %v2432
    %v3038 = vmul.f32 %v3037, %v2432
    %v3039 = vmul.f32 %v3038, %v3037
    %v3040 = vmul.f32 0.5, %v3039
    %v3041 = vsub.f32 1.5, %v3040
    %v3042 = vmul.f32 %v3037, %v3041
    %vm3043 = vweird.f32 %v2432
    %vm3044 = vweird.f32 %v3037
    %vm3045 = vmor %vm3043, %vm3044
    %v3046 = vsel %vm3045, %v3037, %v3042
    %v3047 = vrsqrt.pop %v2433
    %v3048 = vmul.f32 %v3047, %v2433
    %v3049 = vmul.f32 %v3048, %v3047
    %v3050 = vmul.f32 0.5, %v3049
    %v3051 = vsub.f32 1.5, %v3050
    %v3052 = vmul.f32 %v3047, %v3051
    %vm3053 = vweird.f32 %v2433
    %vm3054 = vweird.f32 %v3047
    %vm3055 = vmor %vm3053, %vm3054
    %v3056 = vsel %vm3055, %v3047, %v3052
    %v3057 = vrsqrt.pop %v2434
    %v3058 = vmul.f32 %v3057, %v2434
    %v3059 = vmul.f32 %v3058, %v3057
    %v3060 = vmul.f32 0.5, %v3059
    %v3061 = vsub.f32 1.5, %v3060
    %v3062 = vmul.f32 %v3057, %v3061
    %vm3063 = vweird.f32 %v2434
    %vm3064 = vweird.f32 %v3057
    %vm3065 = vmor %vm3063, %vm3064
    %v3066 = vsel %vm3065, %v3057, %v3062
    %v3067 = vrsqrt.pop %v2435
    %v3068 = vmul.f32 %v3067, %v2435
    %v3069 = vmul.f32 %v3068, %v3067
    %v3070 = vmul.f32 0.5, %v3069
    %v3071 = vsub.f32 1.5, %v3070
    %v3072 = vmul.f32 %v3067, %v3071
    %vm3073 = vweird.f32 %v2435
    %vm3074 = vweird.f32 %v3067
    %vm3075 = vmor %vm3073, %vm3074
    %v3076 = vsel %vm3075, %v3067, %v3072
    %v3077 = vrsqrt.pop %v2436
    %v3078 = vmul.f32 %v3077, %v2436
    %v3079 = vmul.f32 %v3078, %v3077
    %v3080 = vmul.f32 0.5, %v3079
    %v3081 = vsub.f32 1.5, %v3080
    %v3082 = vmul.f32 %v3077, %v3081
    %vm3083 = vweird.f32 %v2436
    %vm3084 = vweird.f32 %v3077
    %vm3085 = vmor %vm3083, %vm3084
    %v3086 = vsel %vm3085, %v3077, %v3082
    %v3087 = vrsqrt.pop %v2437
    %v3088 = vmul.f32 %v3087, %v2437
    %v3089 = vmul.f32 %v3088, %v3087
    %v3090 = vmul.f32 0.5, %v3089
    %v3091 = vsub.f32 1.5, %v3090
    %v3092 = vmul.f32 %v3087, %v3091
    %vm3093 = vweird.f32 %v2437
    %vm3094 = vweird.f32 %v3087
    %vm3095 = vmor %vm3093, %vm3094
    %v3096 = vsel %vm3095, %v3087, %v3092
    %v3097 = vrsqrt.pop %v2438
    %v3098 = vmul.f32 %v3097, %v2438
    %v3099 = vmul.f32 %v3098, %v3097
    %v3100 = vmul.f32 0.5, %v3099
    %v3101 = vsub.f32 1.5, %v3100
    %v3102 = vmul.f32 %v3097, %v3101
    %vm3103 = vweird.f32 %v2438
    %vm3104 = vweird.f32 %v3097
    %vm3105 = vmor %vm3103, %vm3104
    %v3106 = vsel %vm3105, %v3097, %v3102
    %v3107 = vrsqrt.pop %v2439
    %v3108 = vmul.f32 %v3107, %v2439
    %v3109 = vmul.f32 %v3108, %v3107
    %v3110 = vmul.f32 0.5, %v3109
    %v3111 = vsub.f32 1.5, %v3110
    %v3112 = vmul.f32 %v3107, %v3111
    %vm3113 = vweird.f32 %v2439
    %vm3114 = vweird.f32 %v3107
    %vm3115 = vmor %vm3113, %vm3114
    %v3116 = vsel %vm3115, %v3107, %v3112
    %v3117 = vrsqrt.pop %v2440
    %v3118 = vmul.f32 %v3117, %v2440
    %v3119 = vmul.f32 %v3118, %v3117
    %v3120 = vmul.f32 0.5, %v3119
    %v3121 = vsub.f32 1.5, %v3120
    %v3122 = vmul.f32 %v3117, %v3121
    %vm3123 = vweird.f32 %v2440
    %vm3124 = vweird.f32 %v3117
    %vm3125 = vmor %vm3123, %vm3124
    %v3126 = vsel %vm3125, %v3117, %v3122
    %v3127 = vrsqrt.pop %v2441
    %v3128 = vmul.f32 %v3127, %v2441
    %v3129 = vmul.f32 %v3128, %v3127
    %v3130 = vmul.f32 0.5, %v3129
    %v3131 = vsub.f32 1.5, %v3130
    %v3132 = vmul.f32 %v3127, %v3131
    %vm3133 = vweird.f32 %v2441
    %vm3134 = vweird.f32 %v3127
    %vm3135 = vmor %vm3133, %vm3134
    %v3136 = vsel %vm3135, %v3127, %v3132
    %v3137 = vrsqrt.pop %v2442
    %v3138 = vmul.f32 %v3137, %v2442
    %v3139 = vmul.f32 %v3138, %v3137
    %v3140 = vmul.f32 0.5, %v3139
    %v3141 = vsub.f32 1.5, %v3140
    %v3142 = vmul.f32 %v3137, %v3141
    %vm3143 = vweird.f32 %v2442
    %vm3144 = vweird.f32 %v3137
    %vm3145 = vmor %vm3143, %vm3144
    %v3146 = vsel %vm3145, %v3137, %v3142
    %v3147 = vsel %vm2443, %v2516, 0.0
    %v3148 = vsel %vm2444, %v2526, 0.0
    %v3149 = vsel %vm2445, %v2536, 0.0
    %v3150 = vsel %vm2446, %v2546, 0.0
    %v3151 = vsel %vm2447, %v2556, 0.0
    %v3152 = vsel %vm2448, %v2566, 0.0
    %v3153 = vsel %vm2449, %v2576, 0.0
    %v3154 = vsel %vm2450, %v2586, 0.0
    %v3155 = vsel %vm2451, %v2596, 0.0
    %v3156 = vsel %vm2452, %v2606, 0.0
    %v3157 = vsel %vm2453, %v2616, 0.0
    %v3158 = vsel %vm2454, %v2626, 0.0
    %v3159 = vsel %vm2455, %v2636, 0.0
    %v3160 = vsel %vm2456, %v2646, 0.0
    %v3161 = vsel %vm2457, %v2656, 0.0
    %v3162 = vsel %vm2458, %v2666, 0.0
    %v3163 = vsel %vm2459, %v2676, 0.0
    %v3164 = vsel %vm2460, %v2686, 0.0
    %v3165 = vsel %vm2461, %v2696, 0.0
    %v3166 = vsel %vm2462, %v2706, 0.0
    %v3167 = vsel %vm2463, %v2716, 0.0
    %v3168 = vsel %vm2464, %v2726, 0.0
    %v3169 = vsel %vm2465, %v2736, 0.0
    %v3170 = vsel %vm2466, %v2746, 0.0
    %v3171 = vsel %vm2467, %v2756, 0.0
    %v3172 = vsel %vm2468, %v2766, 0.0
    %v3173 = vsel %vm2469, %v2776, 0.0
    %v3174 = vsel %vm2470, %v2786, 0.0
    %v3175 = vsel %vm2471, %v2796, 0.0
    %v3176 = vsel %vm2472, %v2806, 0.0
    %v3177 = vsel %vm2473, %v2816, 0.0
    %v3178 = vsel %vm2474, %v2826, 0.0
    %v3179 = vsel %vm2475, %v2836, 0.0
    %v3180 = vsel %vm2476, %v2846, 0.0
    %v3181 = vsel %vm2477, %v2856, 0.0
    %v3182 = vsel %vm2478, %v2866, 0.0
    %v3183 = vsel %vm2479, %v2876, 0.0
    %v3184 = vsel %vm2480, %v2886, 0.0
    %v3185 = vsel %vm2481, %v2896, 0.0
    %v3186 = vsel %vm2482, %v2906, 0.0
    %v3187 = vsel %vm2483, %v2916, 0.0
    %v3188 = vsel %vm2484, %v2926, 0.0
    %v3189 = vsel %vm2485, %v2936, 0.0
    %v3190 = vsel %vm2486, %v2946, 0.0
    %v3191 = vsel %vm2487, %v2956, 0.0
    %v3192 = vsel %vm2488, %v2966, 0.0
    %v3193 = vsel %vm2489, %v2976, 0.0
    %v3194 = vsel %vm2490, %v2986, 0.0
    %v3195 = vsel %vm2491, %v2996, 0.0
    %v3196 = vsel %vm2492, %v3006, 0.0
    %v3197 = vsel %vm2493, %v3016, 0.0
    %v3198 = vsel %vm2494, %v3026, 0.0
    %v3199 = vsel %vm2495, %v3036, 0.0
    %v3200 = vsel %vm2496, %v3046, 0.0
    %v3201 = vsel %vm2497, %v3056, 0.0
    %v3202 = vsel %vm2498, %v3066, 0.0
    %v3203 = vsel %vm2499, %v3076, 0.0
    %v3204 = vsel %vm2500, %v3086, 0.0
    %v3205 = vsel %vm2501, %v3096, 0.0
    %v3206 = vsel %vm2502, %v3106, 0.0
    %v3207 = vsel %vm2503, %v3116, 0.0
    %v3208 = vsel %vm2504, %v3126, 0.0
    %v3209 = vsel %vm2505, %v3136, 0.0
    %v3210 = vsel %vm2506, %v3146, 0.0
    %v3211 = vmul.f32 %v2379, %v3147
    %v3212 = vmul.f32 %v2380, %v3148
    %v3213 = vmul.f32 %v2381, %v3149
    %v3214 = vmul.f32 %v2382, %v3150
    %v3215 = vmul.f32 %v2383, %v3151
    %v3216 = vmul.f32 %v2384, %v3152
    %v3217 = vmul.f32 %v2385, %v3153
    %v3218 = vmul.f32 %v2386, %v3154
    %v3219 = vmul.f32 %v2387, %v3155
    %v3220 = vmul.f32 %v2388, %v3156
    %v3221 = vmul.f32 %v2389, %v3157
    %v3222 = vmul.f32 %v2390, %v3158
    %v3223 = vmul.f32 %v2391, %v3159
    %v3224 = vmul.f32 %v2392, %v3160
    %v3225 = vmul.f32 %v2393, %v3161
    %v3226 = vmul.f32 %v2394, %v3162
    %v3227 = vmul.f32 %v2395, %v3163
    %v3228 = vmul.f32 %v2396, %v3164
    %v3229 = vmul.f32 %v2397, %v3165
    %v3230 = vmul.f32 %v2398, %v3166
    %v3231 = vmul.f32 %v2399, %v3167
    %v3232 = vmul.f32 %v2400, %v3168
    %v3233 = vmul.f32 %v2401, %v3169
    %v3234 = vmul.f32 %v2402, %v3170
    %v3235 = vmul.f32 %v2403, %v3171
    %v3236 = vmul.f32 %v2404, %v3172
    %v3237 = vmul.f32 %v2405, %v3173
    %v3238 = vmul.f32 %v2406, %v3174
    %v3239 = vmul.f32 %v2407, %v3175
    %v3240 = vmul.f32 %v2408, %v3176
    %v3241 = vmul.f32 %v2409, %v3177
    %v3242 = vmul.f32 %v2410, %v3178
    %v3243 = vmul.f32 %v2411, %v3179
    %v3244 = vmul.f32 %v2412, %v3180
    %v3245 = vmul.f32 %v2413, %v3181
    %v3246 = vmul.f32 %v2414, %v3182
    %v3247 = vmul.f32 %v2415, %v3183
    %v3248 = vmul.f32 %v2416, %v3184
    %v3249 = vmul.f32 %v2417, %v3185
    %v3250 = vmul.f32 %v2418, %v3186
    %v3251 = vmul.f32 %v2419, %v3187
    %v3252 = vmul.f32 %v2420, %v3188
    %v3253 = vmul.f32 %v2421, %v3189
    %v3254 = vmul.f32 %v2422, %v3190
    %v3255 = vmul.f32 %v2423, %v3191
    %v3256 = vmul.f32 %v2424, %v3192
    %v3257 = vmul.f32 %v2425, %v3193
    %v3258 = vmul.f32 %v2426, %v3194
    %v3259 = vmul.f32 %v2427, %v3195
    %v3260 = vmul.f32 %v2428, %v3196
    %v3261 = vmul.f32 %v2429, %v3197
    %v3262 = vmul.f32 %v2430, %v3198
    %v3263 = vmul.f32 %v2431, %v3199
    %v3264 = vmul.f32 %v2432, %v3200
    %v3265 = vmul.f32 %v2433, %v3201
    %v3266 = vmul.f32 %v2434, %v3202
    %v3267 = vmul.f32 %v2435, %v3203
    %v3268 = vmul.f32 %v2436, %v3204
    %v3269 = vmul.f32 %v2437, %v3205
    %v3270 = vmul.f32 %v2438, %v3206
    %v3271 = vmul.f32 %v2439, %v3207
    %v3272 = vmul.f32 %v2440, %v3208
    %v3273 = vmul.f32 %v2441, %v3209
    %v3274 = vmul.f32 %v2442, %v3210
    %v3275 = vtanh.pop %v3211
    %v3276 = vtanh.pop %v3212
    %v3277 = vtanh.pop %v3213
    %v3278 = vtanh.pop %v3214
    %v3279 = vtanh.pop %v3215
    %v3280 = vtanh.pop %v3216
    %v3281 = vtanh.pop %v3217
    %v3282 = vtanh.pop %v3218
    %v3283 = vtanh.pop %v3219
    %v3284 = vtanh.pop %v3220
    %v3285 = vtanh.pop %v3221
    %v3286 = vtanh.pop %v3222
    %v3287 = vtanh.pop %v3223
    %v3288 = vtanh.pop %v3224
    %v3289 = vtanh.pop %v3225
    %v3290 = vtanh.pop %v3226
    %v3291 = vtanh.pop %v3227
    %v3292 = vtanh.pop %v3228
    %v3293 = vtanh.pop %v3229
    %v3294 = vtanh.pop %v3230
    %v3295 = vtanh.pop %v3231
    %v3296 = vtanh.pop %v3232
    %v3297 = vtanh.pop %v3233
    %v3298 = vtanh.pop %v3234
    %v3299 = vtanh.pop %v3235
    %v3300 = vtanh.pop %v3236
    %v3301 = vtanh.pop %v3237
    %v3302 = vtanh.pop %v3238
    %v3303 = vtanh.pop %v3239
    %v3304 = vtanh.pop %v3240
    %v3305 = vtanh.pop %v3241
    %v3306 = vtanh.pop %v3242
    %v3307 = vtanh.pop %v3243
    %v3308 = vtanh.pop %v3244
    %v3309 = vtanh.pop %v3245
    %v3310 = vtanh.pop %v3246
    %v3311 = vtanh.pop %v3247
    %v3312 = vtanh.pop %v3248
    %v3313 = vtanh.pop %v3249
    %v3314 = vtanh.pop %v3250
    %v3315 = vtanh.pop %v3251
    %v3316 = vtanh.pop %v3252
    %v3317 = vtanh.pop %v3253
    %v3318 = vtanh.pop %v3254
    %v3319 = vtanh.pop %v3255
    %v3320 = vtanh.pop %v3256
    %v3321 = vtanh.pop %v3257
    %v3322 = vtanh.pop %v3258
    %v3323 = vtanh.pop %v3259
    %v3324 = vtanh.pop %v3260
    %v3325 = vtanh.pop %v3261
    %v3326 = vtanh.pop %v3262
    %v3327 = vtanh.pop %v3263
    %v3328 = vtanh.pop %v3264
    %v3329 = vtanh.pop %v3265
    %v3330 = vtanh.pop %v3266
    %v3331 = vtanh.pop %v3267
    %v3332 = vtanh.pop %v3268
    %v3333 = vtanh.pop %v3269
    %v3334 = vtanh.pop %v3270
    %v3335 = vtanh.pop %v3271
    %v3336 = vtanh.pop %v3272
    %v3337 = vtanh.pop %v3273
    %v3338 = vtanh.pop %v3274
    %v3339 = vmul.f32 %v3275, %v3147
    %v3340 = vmul.f32 %v3276, %v3148
    %v3341 = vmul.f32 %v3277, %v3149
    %v3342 = vmul.f32 %v3278, %v3150
    %v3343 = vmul.f32 %v3279, %v3151
    %v3344 = vmul.f32 %v3280, %v3152
    %v3345 = vmul.f32 %v3281, %v3153
    %v3346 = vmul.f32 %v3282, %v3154
    %v3347 = vmul.f32 %v3283, %v3155
    %v3348 = vmul.f32 %v3284, %v3156
    %v3349 = vmul.f32 %v3285, %v3157
    %v3350 = vmul.f32 %v3286, %v3158
    %v3351 = vmul.f32 %v3287, %v3159
    %v3352 = vmul.f32 %v3288, %v3160
    %v3353 = vmul.f32 %v3289, %v3161
    %v3354 = vmul.f32 %v3290, %v3162
    %v3355 = vmul.f32 %v3291, %v3163
    %v3356 = vmul.f32 %v3292, %v3164
    %v3357 = vmul.f32 %v3293, %v3165
    %v3358 = vmul.f32 %v3294, %v3166
    %v3359 = vmul.f32 %v3295, %v3167
    %v3360 = vmul.f32 %v3296, %v3168
    %v3361 = vmul.f32 %v3297, %v3169
    %v3362 = vmul.f32 %v3298, %v3170
    %v3363 = vmul.f32 %v3299, %v3171
    %v3364 = vmul.f32 %v3300, %v3172
    %v3365 = vmul.f32 %v3301, %v3173
    %v3366 = vmul.f32 %v3302, %v3174
    %v3367 = vmul.f32 %v3303, %v3175
    %v3368 = vmul.f32 %v3304, %v3176
    %v3369 = vmul.f32 %v3305, %v3177
    %v3370 = vmul.f32 %v3306, %v3178
    %v3371 = vmul.f32 %v3307, %v3179
    %v3372 = vmul.f32 %v3308, %v3180
    %v3373 = vmul.f32 %v3309, %v3181
    %v3374 = vmul.f32 %v3310, %v3182
    %v3375 = vmul.f32 %v3311, %v3183
    %v3376 = vmul.f32 %v3312, %v3184
    %v3377 = vmul.f32 %v3313, %v3185
    %v3378 = vmul.f32 %v3314, %v3186
    %v3379 = vmul.f32 %v3315, %v3187
    %v3380 = vmul.f32 %v3316, %v3188
    %v3381 = vmul.f32 %v3317, %v3189
    %v3382 = vmul.f32 %v3318, %v3190
    %v3383 = vmul.f32 %v3319, %v3191
    %v3384 = vmul.f32 %v3320, %v3192
    %v3385 = vmul.f32 %v3321, %v3193
    %v3386 = vmul.f32 %v3322, %v3194
    %v3387 = vmul.f32 %v3323, %v3195
    %v3388 = vmul.f32 %v3324, %v3196
    %v3389 = vmul.f32 %v3325, %v3197
    %v3390 = vmul.f32 %v3326, %v3198
    %v3391 = vmul.f32 %v3327, %v3199
    %v3392 = vmul.f32 %v3328, %v3200
    %v3393 = vmul.f32 %v3329, %v3201
    %v3394 = vmul.f32 %v3330, %v3202
    %v3395 = vmul.f32 %v3331, %v3203
    %v3396 = vmul.f32 %v3332, %v3204
    %v3397 = vmul.f32 %v3333, %v3205
    %v3398 = vmul.f32 %v3334, %v3206
    %v3399 = vmul.f32 %v3335, %v3207
    %v3400 = vmul.f32 %v3336, %v3208
    %v3401 = vmul.f32 %v3337, %v3209
    %v3402 = vmul.f32 %v3338, %v3210
    %v3403 = vmul.f32 %v2123, %v2187
    %v3404 = vmul.f32 %v2124, %v2188
    %v3405 = vmul.f32 %v2125, %v2189
    %v3406 = vmul.f32 %v2126, %v2190
    %v3407 = vmul.f32 %v2127, %v2191
    %v3408 = vmul.f32 %v2128, %v2192
    %v3409 = vmul.f32 %v2129, %v2193
    %v3410 = vmul.f32 %v2130, %v2194
    %v3411 = vmul.f32 %v2131, %v2195
    %v3412 = vmul.f32 %v2132, %v2196
    %v3413 = vmul.f32 %v2133, %v2197
    %v3414 = vmul.f32 %v2134, %v2198
    %v3415 = vmul.f32 %v2135, %v2199
    %v3416 = vmul.f32 %v2136, %v2200
    %v3417 = vmul.f32 %v2137, %v2201
    %v3418 = vmul.f32 %v2138, %v2202
    %v3419 = vmul.f32 %v2139, %v2203
    %v3420 = vmul.f32 %v2140, %v2204
    %v3421 = vmul.f32 %v2141, %v2205
    %v3422 = vmul.f32 %v2142, %v2206
    %v3423 = vmul.f32 %v2143, %v2207
    %v3424 = vmul.f32 %v2144, %v2208
    %v3425 = vmul.f32 %v2145, %v2209
    %v3426 = vmul.f32 %v2146, %v2210
    %v3427 = vmul.f32 %v2147, %v2211
    %v3428 = vmul.f32 %v2148, %v2212
    %v3429 = vmul.f32 %v2149, %v2213
    %v3430 = vmul.f32 %v2150, %v2214
    %v3431 = vmul.f32 %v2151, %v2215
    %v3432 = vmul.f32 %v2152, %v2216
    %v3433 = vmul.f32 %v2153, %v2217
    %v3434 = vmul.f32 %v2154, %v2218
    %v3435 = vmul.f32 %v2155, %v2219
    %v3436 = vmul.f32 %v2156, %v2220
    %v3437 = vmul.f32 %v2157, %v2221
    %v3438 = vmul.f32 %v2158, %v2222
    %v3439 = vmul.f32 %v2159, %v2223
    %v3440 = vmul.f32 %v2160, %v2224
    %v3441 = vmul.f32 %v2161, %v2225
    %v3442 = vmul.f32 %v2162, %v2226
    %v3443 = vmul.f32 %v2163, %v2227
    %v3444 = vmul.f32 %v2164, %v2228
    %v3445 = vmul.f32 %v2165, %v2229
    %v3446 = vmul.f32 %v2166, %v2230
    %v3447 = vmul.f32 %v2167, %v2231
    %v3448 = vmul.f32 %v2168, %v2232
    %v3449 = vmul.f32 %v2169, %v2233
    %v3450 = vmul.f32 %v2170, %v2234
    %v3451 = vmul.f32 %v2171, %v2235
    %v3452 = vmul.f32 %v2172, %v2236
    %v3453 = vmul.f32 %v2173, %v2237
    %v3454 = vmul.f32 %v2174, %v2238
    %v3455 = vmul.f32 %v2175, %v2239
    %v3456 = vmul.f32 %v2176, %v2240
    %v3457 = vmul.f32 %v2177, %v2241
    %v3458 = vmul.f32 %v2178, %v2242
    %v3459 = vmul.f32 %v2179, %v2243
    %v3460 = vmul.f32 %v2180, %v2244
    %v3461 = vmul.f32 %v2181, %v2245
    %v3462 = vmul.f32 %v2182, %v2246
    %v3463 = vmul.f32 %v2183, %v2247
    %v3464 = vmul.f32 %v2184, %v2248
    %v3465 = vmul.f32 %v2185, %v2249
    %v3466 = vmul.f32 %v2186, %v2250
    %v3467 = vmul.f32 %v2059, %v1419
    %v3468 = vmul.f32 %v2060, %v1420
    %v3469 = vmul.f32 %v2061, %v1421
    %v3470 = vmul.f32 %v2062, %v1422
    %v3471 = vmul.f32 %v2063, %v1423
    %v3472 = vmul.f32 %v2064, %v1424
    %v3473 = vmul.f32 %v2065, %v1425
    %v3474 = vmul.f32 %v2066, %v1426
    %v3475 = vmul.f32 %v2067, %v1427
    %v3476 = vmul.f32 %v2068, %v1428
    %v3477 = vmul.f32 %v2069, %v1429
    %v3478 = vmul.f32 %v2070, %v1430
    %v3479 = vmul.f32 %v2071, %v1431
    %v3480 = vmul.f32 %v2072, %v1432
    %v3481 = vmul.f32 %v2073, %v1433
    %v3482 = vmul.f32 %v2074, %v1434
    %v3483 = vmul.f32 %v2075, %v1435
    %v3484 = vmul.f32 %v2076, %v1436
    %v3485 = vmul.f32 %v2077, %v1437
    %v3486 = vmul.f32 %v2078, %v1438
    %v3487 = vmul.f32 %v2079, %v1439
    %v3488 = vmul.f32 %v2080, %v1440
    %v3489 = vmul.f32 %v2081, %v1441
    %v3490 = vmul.f32 %v2082, %v1442
    %v3491 = vmul.f32 %v2083, %v1443
    %v3492 = vmul.f32 %v2084, %v1444
    %v3493 = vmul.f32 %v2085, %v1445
    %v3494 = vmul.f32 %v2086, %v1446
    %v3495 = vmul.f32 %v2087, %v1447
    %v3496 = vmul.f32 %v2088, %v1448
    %v3497 = vmul.f32 %v2089, %v1449
    %v3498 = vmul.f32 %v2090, %v1450
    %v3499 = vmul.f32 %v2091, %v1451
    %v3500 = vmul.f32 %v2092, %v1452
    %v3501 = vmul.f32 %v2093, %v1453
    %v3502 = vmul.f32 %v2094, %v1454
    %v3503 = vmul.f32 %v2095, %v1455
    %v3504 = vmul.f32 %v2096, %v1456
    %v3505 = vmul.f32 %v2097, %v1457
    %v3506 = vmul.f32 %v2098, %v1458
    %v3507 = vmul.f32 %v2099, %v1459
    %v3508 = vmul.f32 %v2100, %v1460
    %v3509 = vmul.f32 %v2101, %v1461
    %v3510 = vmul.f32 %v2102, %v1462
    %v3511 = vmul.f32 %v2103, %v1463
    %v3512 = vmul.f32 %v2104, %v1464
    %v3513 = vmul.f32 %v2105, %v1465
    %v3514 = vmul.f32 %v2106, %v1466
    %v3515 = vmul.f32 %v2107, %v1467
    %v3516 = vmul.f32 %v2108, %v1468
    %v3517 = vmul.f32 %v2109, %v1469
    %v3518 = vmul.f32 %v2110, %v1470
    %v3519 = vmul.f32 %v2111, %v1471
    %v3520 = vmul.f32 %v2112, %v1472
    %v3521 = vmul.f32 %v2113, %v1473
    %v3522 = vmul.f32 %v2114, %v1474
    %v3523 = vmul.f32 %v2115, %v1475
    %v3524 = vmul.f32 %v2116, %v1476
    %v3525 = vmul.f32 %v2117, %v1477
    %v3526 = vmul.f32 %v2118, %v1478
    %v3527 = vmul.f32 %v2119, %v1479
    %v3528 = vmul.f32 %v2120, %v1480
    %v3529 = vmul.f32 %v2121, %v1481
    %v3530 = vmul.f32 %v2122, %v1482
    %v3531 = vsub.f32 0.0, %v3403
    %v3532 = vsub.f32 0.0, %v3404
    %v3533 = vsub.f32 0.0, %v3405
    %v3534 = vsub.f32 0.0, %v3406
    %v3535 = vsub.f32 0.0, %v3407
    %v3536 = vsub.f32 0.0, %v3408
    %v3537 = vsub.f32 0.0, %v3409
    %v3538 = vsub.f32 0.0, %v3410
    %v3539 = vsub.f32 0.0, %v3411
    %v3540 = vsub.f32 0.0, %v3412
    %v3541 = vsub.f32 0.0, %v3413
    %v3542 = vsub.f32 0.0, %v3414
    %v3543 = vsub.f32 0.0, %v3415
    %v3544 = vsub.f32 0.0, %v3416
    %v3545 = vsub.f32 0.0, %v3417
    %v3546 = vsub.f32 0.0, %v3418
    %v3547 = vsub.f32 0.0, %v3419
    %v3548 = vsub.f32 0.0, %v3420
    %v3549 = vsub.f32 0.0, %v3421
    %v3550 = vsub.f32 0.0, %v3422
    %v3551 = vsub.f32 0.0, %v3423
    %v3552 = vsub.f32 0.0, %v3424
    %v3553 = vsub.f32 0.0, %v3425
    %v3554 = vsub.f32 0.0, %v3426
    %v3555 = vsub.f32 0.0, %v3427
    %v3556 = vsub.f32 0.0, %v3428
    %v3557 = vsub.f32 0.0, %v3429
    %v3558 = vsub.f32 0.0, %v3430
    %v3559 = vsub.f32 0.0, %v3431
    %v3560 = vsub.f32 0.0, %v3432
    %v3561 = vsub.f32 0.0, %v3433
    %v3562 = vsub.f32 0.0, %v3434
    %v3563 = vsub.f32 0.0, %v3435
    %v3564 = vsub.f32 0.0, %v3436
    %v3565 = vsub.f32 0.0, %v3437
    %v3566 = vsub.f32 0.0, %v3438
    %v3567 = vsub.f32 0.0, %v3439
    %v3568 = vsub.f32 0.0, %v3440
    %v3569 = vsub.f32 0.0, %v3441
    %v3570 = vsub.f32 0.0, %v3442
    %v3571 = vsub.f32 0.0, %v3443
    %v3572 = vsub.f32 0.0, %v3444
    %v3573 = vsub.f32 0.0, %v3445
    %v3574 = vsub.f32 0.0, %v3446
    %v3575 = vsub.f32 0.0, %v3447
    %v3576 = vsub.f32 0.0, %v3448
    %v3577 = vsub.f32 0.0, %v3449
    %v3578 = vsub.f32 0.0, %v3450
    %v3579 = vsub.f32 0.0, %v3451
    %v3580 = vsub.f32 0.0, %v3452
    %v3581 = vsub.f32 0.0, %v3453
    %v3582 = vsub.f32 0.0, %v3454
    %v3583 = vsub.f32 0.0, %v3455
    %v3584 = vsub.f32 0.0, %v3456
    %v3585 = vsub.f32 0.0, %v3457
    %v3586 = vsub.f32 0.0, %v3458
    %v3587 = vsub.f32 0.0, %v3459
    %v3588 = vsub.f32 0.0, %v3460
    %v3589 = vsub.f32 0.0, %v3461
    %v3590 = vsub.f32 0.0, %v3462
    %v3591 = vsub.f32 0.0, %v3463
    %v3592 = vsub.f32 0.0, %v3464
    %v3593 = vsub.f32 0.0, %v3465
    %v3594 = vsub.f32 0.0, %v3466
    %v3595 = vsel %vm185, %v3531, %v3403
    %v3596 = vsel %vm186, %v3532, %v3404
    %v3597 = vsel %vm187, %v3533, %v3405
    %v3598 = vsel %vm188, %v3534, %v3406
    %v3599 = vsel %vm189, %v3535, %v3407
    %v3600 = vsel %vm190, %v3536, %v3408
    %v3601 = vsel %vm191, %v3537, %v3409
    %v3602 = vsel %vm192, %v3538, %v3410
    %v3603 = vsel %vm193, %v3539, %v3411
    %v3604 = vsel %vm194, %v3540, %v3412
    %v3605 = vsel %vm195, %v3541, %v3413
    %v3606 = vsel %vm196, %v3542, %v3414
    %v3607 = vsel %vm197, %v3543, %v3415
    %v3608 = vsel %vm198, %v3544, %v3416
    %v3609 = vsel %vm199, %v3545, %v3417
    %v3610 = vsel %vm200, %v3546, %v3418
    %v3611 = vsel %vm201, %v3547, %v3419
    %v3612 = vsel %vm202, %v3548, %v3420
    %v3613 = vsel %vm203, %v3549, %v3421
    %v3614 = vsel %vm204, %v3550, %v3422
    %v3615 = vsel %vm205, %v3551, %v3423
    %v3616 = vsel %vm206, %v3552, %v3424
    %v3617 = vsel %vm207, %v3553, %v3425
    %v3618 = vsel %vm208, %v3554, %v3426
    %v3619 = vsel %vm209, %v3555, %v3427
    %v3620 = vsel %vm210, %v3556, %v3428
    %v3621 = vsel %vm211, %v3557, %v3429
    %v3622 = vsel %vm212, %v3558, %v3430
    %v3623 = vsel %vm213, %v3559, %v3431
    %v3624 = vsel %vm214, %v3560, %v3432
    %v3625 = vsel %vm215, %v3561, %v3433
    %v3626 = vsel %vm216, %v3562, %v3434
    %v3627 = vsel %vm217, %v3563, %v3435
    %v3628 = vsel %vm218, %v3564, %v3436
    %v3629 = vsel %vm219, %v3565, %v3437
    %v3630 = vsel %vm220, %v3566, %v3438
    %v3631 = vsel %vm221, %v3567, %v3439
    %v3632 = vsel %vm222, %v3568, %v3440
    %v3633 = vsel %vm223, %v3569, %v3441
    %v3634 = vsel %vm224, %v3570, %v3442
    %v3635 = vsel %vm225, %v3571, %v3443
    %v3636 = vsel %vm226, %v3572, %v3444
    %v3637 = vsel %vm227, %v3573, %v3445
    %v3638 = vsel %vm228, %v3574, %v3446
    %v3639 = vsel %vm229, %v3575, %v3447
    %v3640 = vsel %vm230, %v3576, %v3448
    %v3641 = vsel %vm231, %v3577, %v3449
    %v3642 = vsel %vm232, %v3578, %v3450
    %v3643 = vsel %vm233, %v3579, %v3451
    %v3644 = vsel %vm234, %v3580, %v3452
    %v3645 = vsel %vm235, %v3581, %v3453
    %v3646 = vsel %vm236, %v3582, %v3454
    %v3647 = vsel %vm237, %v3583, %v3455
    %v3648 = vsel %vm238, %v3584, %v3456
    %v3649 = vsel %vm239, %v3585, %v3457
    %v3650 = vsel %vm240, %v3586, %v3458
    %v3651 = vsel %vm241, %v3587, %v3459
    %v3652 = vsel %vm242, %v3588, %v3460
    %v3653 = vsel %vm243, %v3589, %v3461
    %v3654 = vsel %vm244, %v3590, %v3462
    %v3655 = vsel %vm245, %v3591, %v3463
    %v3656 = vsel %vm246, %v3592, %v3464
    %v3657 = vsel %vm247, %v3593, %v3465
    %v3658 = vsel %vm248, %v3594, %v3466
    %v3659 = vadd.f32 %v3467, %v3595
    %v3660 = vadd.f32 %v3468, %v3596
    %v3661 = vadd.f32 %v3469, %v3597
    %v3662 = vadd.f32 %v3470, %v3598
    %v3663 = vadd.f32 %v3471, %v3599
    %v3664 = vadd.f32 %v3472, %v3600
    %v3665 = vadd.f32 %v3473, %v3601
    %v3666 = vadd.f32 %v3474, %v3602
    %v3667 = vadd.f32 %v3475, %v3603
    %v3668 = vadd.f32 %v3476, %v3604
    %v3669 = vadd.f32 %v3477, %v3605
    %v3670 = vadd.f32 %v3478, %v3606
    %v3671 = vadd.f32 %v3479, %v3607
    %v3672 = vadd.f32 %v3480, %v3608
    %v3673 = vadd.f32 %v3481, %v3609
    %v3674 = vadd.f32 %v3482, %v3610
    %v3675 = vadd.f32 %v3483, %v3611
    %v3676 = vadd.f32 %v3484, %v3612
    %v3677 = vadd.f32 %v3485, %v3613
    %v3678 = vadd.f32 %v3486, %v3614
    %v3679 = vadd.f32 %v3487, %v3615
    %v3680 = vadd.f32 %v3488, %v3616
    %v3681 = vadd.f32 %v3489, %v3617
    %v3682 = vadd.f32 %v3490, %v3618
    %v3683 = vadd.f32 %v3491, %v3619
    %v3684 = vadd.f32 %v3492, %v3620
    %v3685 = vadd.f32 %v3493, %v3621
    %v3686 = vadd.f32 %v3494, %v3622
    %v3687 = vadd.f32 %v3495, %v3623
    %v3688 = vadd.f32 %v3496, %v3624
    %v3689 = vadd.f32 %v3497, %v3625
    %v3690 = vadd.f32 %v3498, %v3626
    %v3691 = vadd.f32 %v3499, %v3627
    %v3692 = vadd.f32 %v3500, %v3628
    %v3693 = vadd.f32 %v3501, %v3629
    %v3694 = vadd.f32 %v3502, %v3630
    %v3695 = vadd.f32 %v3503, %v3631
    %v3696 = vadd.f32 %v3504, %v3632
    %v3697 = vadd.f32 %v3505, %v3633
    %v3698 = vadd.f32 %v3506, %v3634
    %v3699 = vadd.f32 %v3507, %v3635
    %v3700 = vadd.f32 %v3508, %v3636
    %v3701 = vadd.f32 %v3509, %v3637
    %v3702 = vadd.f32 %v3510, %v3638
    %v3703 = vadd.f32 %v3511, %v3639
    %v3704 = vadd.f32 %v3512, %v3640
    %v3705 = vadd.f32 %v3513, %v3641
    %v3706 = vadd.f32 %v3514, %v3642
    %v3707 = vadd.f32 %v3515, %v3643
    %v3708 = vadd.f32 %v3516, %v3644
    %v3709 = vadd.f32 %v3517, %v3645
    %v3710 = vadd.f32 %v3518, %v3646
    %v3711 = vadd.f32 %v3519, %v3647
    %v3712 = vadd.f32 %v3520, %v3648
    %v3713 = vadd.f32 %v3521, %v3649
    %v3714 = vadd.f32 %v3522, %v3650
    %v3715 = vadd.f32 %v3523, %v3651
    %v3716 = vadd.f32 %v3524, %v3652
    %v3717 = vadd.f32 %v3525, %v3653
    %v3718 = vadd.f32 %v3526, %v3654
    %v3719 = vadd.f32 %v3527, %v3655
    %v3720 = vadd.f32 %v3528, %v3656
    %v3721 = vadd.f32 %v3529, %v3657
    %v3722 = vadd.f32 %v3530, %v3658
    %v3723 = vmul.f32 %v3339, %v3659
    %v3724 = vmul.f32 %v3340, %v3660
    %v3725 = vmul.f32 %v3341, %v3661
    %v3726 = vmul.f32 %v3342, %v3662
    %v3727 = vmul.f32 %v3343, %v3663
    %v3728 = vmul.f32 %v3344, %v3664
    %v3729 = vmul.f32 %v3345, %v3665
    %v3730 = vmul.f32 %v3346, %v3666
    %v3731 = vmul.f32 %v3347, %v3667
    %v3732 = vmul.f32 %v3348, %v3668
    %v3733 = vmul.f32 %v3349, %v3669
    %v3734 = vmul.f32 %v3350, %v3670
    %v3735 = vmul.f32 %v3351, %v3671
    %v3736 = vmul.f32 %v3352, %v3672
    %v3737 = vmul.f32 %v3353, %v3673
    %v3738 = vmul.f32 %v3354, %v3674
    %v3739 = vmul.f32 %v3355, %v3675
    %v3740 = vmul.f32 %v3356, %v3676
    %v3741 = vmul.f32 %v3357, %v3677
    %v3742 = vmul.f32 %v3358, %v3678
    %v3743 = vmul.f32 %v3359, %v3679
    %v3744 = vmul.f32 %v3360, %v3680
    %v3745 = vmul.f32 %v3361, %v3681
    %v3746 = vmul.f32 %v3362, %v3682
    %v3747 = vmul.f32 %v3363, %v3683
    %v3748 = vmul.f32 %v3364, %v3684
    %v3749 = vmul.f32 %v3365, %v3685
    %v3750 = vmul.f32 %v3366, %v3686
    %v3751 = vmul.f32 %v3367, %v3687
    %v3752 = vmul.f32 %v3368, %v3688
    %v3753 = vmul.f32 %v3369, %v3689
    %v3754 = vmul.f32 %v3370, %v3690
    %v3755 = vmul.f32 %v3371, %v3691
    %v3756 = vmul.f32 %v3372, %v3692
    %v3757 = vmul.f32 %v3373, %v3693
    %v3758 = vmul.f32 %v3374, %v3694
    %v3759 = vmul.f32 %v3375, %v3695
    %v3760 = vmul.f32 %v3376, %v3696
    %v3761 = vmul.f32 %v3377, %v3697
    %v3762 = vmul.f32 %v3378, %v3698
    %v3763 = vmul.f32 %v3379, %v3699
    %v3764 = vmul.f32 %v3380, %v3700
    %v3765 = vmul.f32 %v3381, %v3701
    %v3766 = vmul.f32 %v3382, %v3702
    %v3767 = vmul.f32 %v3383, %v3703
    %v3768 = vmul.f32 %v3384, %v3704
    %v3769 = vmul.f32 %v3385, %v3705
    %v3770 = vmul.f32 %v3386, %v3706
    %v3771 = vmul.f32 %v3387, %v3707
    %v3772 = vmul.f32 %v3388, %v3708
    %v3773 = vmul.f32 %v3389, %v3709
    %v3774 = vmul.f32 %v3390, %v3710
    %v3775 = vmul.f32 %v3391, %v3711
    %v3776 = vmul.f32 %v3392, %v3712
    %v3777 = vmul.f32 %v3393, %v3713
    %v3778 = vmul.f32 %v3394, %v3714
    %v3779 = vmul.f32 %v3395, %v3715
    %v3780 = vmul.f32 %v3396, %v3716
    %v3781 = vmul.f32 %v3397, %v3717
    %v3782 = vmul.f32 %v3398, %v3718
    %v3783 = vmul.f32 %v3399, %v3719
    %v3784 = vmul.f32 %v3400, %v3720
    %v3785 = vmul.f32 %v3401, %v3721
    %v3786 = vmul.f32 %v3402, %v3722
    %v3851 = vrot.slane %v3724, 7
    %v3852 = vrot.slane %v3725, 6
    %v3853 = vrot.slane %v3726, 5
    %v3854 = vrot.slane %v3727, 4
    %v3855 = vrot.slane %v3728, 3
    %v3856 = vrot.slane %v3729, 2
    %v3857 = vrot.slane %v3730, 1
    %v3858 = vrot.slane %v3732, 7
    %v3859 = vrot.slane %v3733, 6
    %v3860 = vrot.slane %v3734, 5
    %v3861 = vrot.slane %v3735, 4
    %v3862 = vrot.slane %v3736, 3
    %v3863 = vrot.slane %v3737, 2
    %v3864 = vrot.slane %v3738, 1
    %v3865 = vrot.slane %v3740, 7
    %v3866 = vrot.slane %v3741, 6
    %v3867 = vrot.slane %v3742, 5
    %v3868 = vrot.slane %v3743, 4
    %v3869 = vrot.slane %v3744, 3
    %v3870 = vrot.slane %v3745, 2
    %v3871 = vrot.slane %v3746, 1
    %v3872 = vrot.slane %v3748, 7
    %v3873 = vrot.slane %v3749, 6
    %v3874 = vrot.slane %v3750, 5
    %v3875 = vrot.slane %v3751, 4
    %v3876 = vrot.slane %v3752, 3
    %v3877 = vrot.slane %v3753, 2
    %v3878 = vrot.slane %v3754, 1
    %v3879 = vrot.slane %v3756, 7
    %v3880 = vrot.slane %v3757, 6
    %v3881 = vrot.slane %v3758, 5
    %v3882 = vrot.slane %v3759, 4
    %v3883 = vrot.slane %v3760, 3
    %v3884 = vrot.slane %v3761, 2
    %v3885 = vrot.slane %v3762, 1
    %v3886 = vrot.slane %v3764, 7
    %v3887 = vrot.slane %v3765, 6
    %v3888 = vrot.slane %v3766, 5
    %v3889 = vrot.slane %v3767, 4
    %v3890 = vrot.slane %v3768, 3
    %v3891 = vrot.slane %v3769, 2
    %v3892 = vrot.slane %v3770, 1
    %v3893 = vrot.slane %v3772, 7
    %v3894 = vrot.slane %v3773, 6
    %v3895 = vrot.slane %v3774, 5
    %v3896 = vrot.slane %v3775, 4
    %v3897 = vrot.slane %v3776, 3
    %v3898 = vrot.slane %v3777, 2
    %v3899 = vrot.slane %v3778, 1
    %v3900 = vrot.slane %v3780, 7
    %v3901 = vrot.slane %v3781, 6
    %v3902 = vrot.slane %v3782, 5
    %v3903 = vrot.slane %v3783, 4
    %v3904 = vrot.slane %v3784, 3
    %v3905 = vrot.slane %v3785, 2
    %v3906 = vrot.slane %v3786, 1
    %vm3907 = vcmask 1040384
    %v3908 = vsel %vm3907, %v3723, %v3851
    %vm3909 = vcmask 1042434
    %v3910 = vsel %vm3909, %v3852, %v3853
    %vm3911 = vcmask 1041408
    %v3912 = vsel %vm3911, %v3908, %v3910
    %vm3913 = vcmask 1044484
    %v3914 = vsel %vm3913, %v3854, %v3855
    %vm3915 = vcmask 1046534
    %v3916 = vsel %vm3915, %v3856, %v3857
    %vm3917 = vcmask 1045508
    %v3918 = vsel %vm3917, %v3914, %v3916
    %vm3919 = vcmask 1043456
    %v3920 = vsel %vm3919, %v3912, %v3918
    %v3921 = vsel %vm3907, %v3731, %v3858
    %v3922 = vsel %vm3909, %v3859, %v3860
    %v3923 = vsel %vm3911, %v3921, %v3922
    %v3924 = vsel %vm3913, %v3861, %v3862
    %v3925 = vsel %vm3915, %v3863, %v3864
    %v3926 = vsel %vm3917, %v3924, %v3925
    %v3927 = vsel %vm3919, %v3923, %v3926
    %v3928 = vsel %vm3907, %v3739, %v3865
    %v3929 = vsel %vm3909, %v3866, %v3867
    %v3930 = vsel %vm3911, %v3928, %v3929
    %v3931 = vsel %vm3913, %v3868, %v3869
    %v3932 = vsel %vm3915, %v3870, %v3871
    %v3933 = vsel %vm3917, %v3931, %v3932
    %v3934 = vsel %vm3919, %v3930, %v3933
    %v3935 = vsel %vm3907, %v3747, %v3872
    %v3936 = vsel %vm3909, %v3873, %v3874
    %v3937 = vsel %vm3911, %v3935, %v3936
    %v3938 = vsel %vm3913, %v3875, %v3876
    %v3939 = vsel %vm3915, %v3877, %v3878
    %v3940 = vsel %vm3917, %v3938, %v3939
    %v3941 = vsel %vm3919, %v3937, %v3940
    %v3942 = vsel %vm3907, %v3755, %v3879
    %v3943 = vsel %vm3909, %v3880, %v3881
    %v3944 = vsel %vm3911, %v3942, %v3943
    %v3945 = vsel %vm3913, %v3882, %v3883
    %v3946 = vsel %vm3915, %v3884, %v3885
    %v3947 = vsel %vm3917, %v3945, %v3946
    %v3948 = vsel %vm3919, %v3944, %v3947
    %v3949 = vsel %vm3907, %v3763, %v3886
    %v3950 = vsel %vm3909, %v3887, %v3888
    %v3951 = vsel %vm3911, %v3949, %v3950
    %v3952 = vsel %vm3913, %v3889, %v3890
    %v3953 = vsel %vm3915, %v3891, %v3892
    %v3954 = vsel %vm3917, %v3952, %v3953
    %v3955 = vsel %vm3919, %v3951, %v3954
    %v3956 = vsel %vm3907, %v3771, %v3893
    %v3957 = vsel %vm3909, %v3894, %v3895
    %v3958 = vsel %vm3911, %v3956, %v3957
    %v3959 = vsel %vm3913, %v3896, %v3897
    %v3960 = vsel %vm3915, %v3898, %v3899
    %v3961 = vsel %vm3917, %v3959, %v3960
    %v3962 = vsel %vm3919, %v3958, %v3961
    %v3963 = vsel %vm3907, %v3779, %v3900
    %v3964 = vsel %vm3909, %v3901, %v3902
    %v3965 = vsel %vm3911, %v3963, %v3964
    %v3966 = vsel %vm3913, %v3903, %v3904
    %v3967 = vsel %vm3915, %v3905, %v3906
    %v3968 = vsel %vm3917, %v3966, %v3967
    %v3969 = vsel %vm3919, %v3965, %v3968
    %3978 = vst [vmem:[#allocation7] sm:$0xff] %v3920
    %3979 = vst [vmem:[#allocation7 + $0x8] sm:$0xff] %v3927
    %3980 = vst [vmem:[#allocation7 + $0x10] sm:$0xff] %v3934
    %3981 = vst [vmem:[#allocation7 + $0x18] sm:$0xff] %v3941
    %3982 = vst [vmem:[#allocation7 + $0x20] sm:$0xff] %v3948
    %3983 = vst [vmem:[#allocation7 + $0x28] sm:$0xff] %v3955
    %3984 = vst [vmem:[#allocation7 + $0x30] sm:$0xff] %v3962
    %3985 = vst [vmem:[#allocation7 + $0x38] sm:$0xff] %v3969
    // Predicated region
    $region18: #{tpu_custom_call.1} parent=1 // pred_check
      _
    $region19: #{tpu_custom_call.1} parent=1 // pred_check_branch
      %3987 = sbr.rel (0) target = $region21
    $region20: #{tpu_custom_call.1} parent=1 // pred_region
      %3989 = vsyncadd [#allocation4], 0
      %s3991 = sshll.u32 [#allocation7], 4
      %s3992 = int_to_ptr.vmem [resolvable:$true] %s3991
      %s3993 = sshll.u32 %s2, 4
      %s3994 = int_to_ptr.hbm [resolvable:$true] %s3993
      %3996 = dma.vmem_to_hbm [thread:$0]  %s3992, 1024, %s3994, [#allocation4]
    $region21: #{tpu_custom_call.1} parent=1 // pred_fallthru
      _
    // Predicated region
    $region22: #{tpu_custom_call.1} parent=1 // pred_check
      _
    $region23: #{tpu_custom_call.1} parent=1 // pred_check_branch
      %3998 = sbr.rel (0) target = $region25
    $region24: #{tpu_custom_call.1} parent=1 // pred_region
      %4000 = dma.done [#allocation4], 1024
    $region25: #{tpu_custom_call.1} parent=1 // pred_fallthru
      _
    %4001 = vsyncpa [#allocation3], 1
    %4002 = vsyncpa [#allocation6], 1
    %4003 = vsyncpa [#allocation4], 1

</llo_original>
